<compile_context>
chip_gen: v6e
topology: v6e:2x2x1
jax: 0.10.0
libtpu: 0.0.40
codegen_flags: <defaults>
</compile_context>

<pallas_src>
import jax
import jax.numpy as jnp
from jax.experimental import pallas as pl
from jax.experimental.pallas import tpu as pltpu

FILT = 5      # conv kernel size
PAD = 4       # ZeroPad2d(4)


# ---------------------------------------------------------------------------
# Kernel A: fused conv(5x5) + bias + 2x2 maxpool + tanh, one image per step.
#   x00..x11 : (1, K, Ho*Wo) bf16   pool-parity im2col slabs, K = Ci*25
#   wk_ref   : (Co, K)        bf16  wk[co, (kh*5+kw)*Ci + ci] = W[co,ci,kh,kw]
#   b_ref    : (Co, 1)        f32
#   o_ref    : (1, Co, Ho*Wo) bf16  tanh(maxpool(conv + b))
# ---------------------------------------------------------------------------
def _conv_pool_tanh_kernel(x00_ref, x01_ref, x10_ref, x11_ref,
                           wk_ref, b_ref, o_ref):
    w = wk_ref[...]                       # hoisted: loaded once per grid step

    def mm(x_ref):
        return jnp.dot(w, x_ref[0], preferred_element_type=jnp.float32)

    m = jnp.maximum(jnp.maximum(mm(x00_ref), mm(x01_ref)),
                    jnp.maximum(mm(x10_ref), mm(x11_ref)))
    o_ref[0] = jnp.tanh(m + b_ref[...]).astype(o_ref.dtype)


def conv_pool_tanh_block(x, w, b):
    """x: (N, Ci, H, W) -> tanh(maxpool2x2(conv5x5(pad4(x)) + b)).

    Returns (N, Co, Ho, Wo) in bf16 with Ho = (H+4)//2, Wo = (W+4)//2.
    """
    n, ci, h, wsp = x.shape
    co = w.shape[0]
    hp, wp = h + 2 * PAD, wsp + 2 * PAD
    hc, wc = hp - (FILT - 1), wp - (FILT - 1)
    ho, wo = hc // 2, wc // 2
    k = ci * FILT * FILT

    xp = jnp.pad(x, ((0, 0), (0, 0), (PAD, PAD), (PAD, PAD))).astype(jnp.bfloat16)

    # Pool-parity im2col: for parity (a, b) of the 2x2 pool window,
    #   slab[(kh*5+kw)*Ci + ci, ho*Wo + wo] = xp[ci, 2*ho + a + kh, 2*wo + b + kw]
    def parity_slab(a, bb):
        taps = []
        for kh in range(FILT):
            for kw in range(FILT):
                hs, ws = a + kh, bb + kw
                taps.append(xp[:, :, hs:hs + 2 * ho - 1:2, ws:ws + 2 * wo - 1:2])
        t = jnp.stack(taps, axis=1)                      # (N, 25, Ci, Ho, Wo)
        return t.reshape(n, k, ho * wo)

    x00 = parity_slab(0, 0)
    x01 = parity_slab(0, 1)
    x10 = parity_slab(1, 0)
    x11 = parity_slab(1, 1)

    wk = w.transpose(0, 2, 3, 1).reshape(co, k).astype(jnp.bfloat16)
    bk = b.reshape(co, 1).astype(jnp.float32)

    slab_spec = pl.BlockSpec((1, k, ho * wo), lambda i: (i, 0, 0))
    out = pl.pallas_call(
        _conv_pool_tanh_kernel,
        out_shape=jax.ShapeDtypeStruct((n, co, ho * wo), jnp.bfloat16),
        grid=(n,),
        in_specs=[slab_spec, slab_spec, slab_spec, slab_spec,
                  pl.BlockSpec((co, k), lambda i: (0, 0)),
                  pl.BlockSpec((co, 1), lambda i: (0, 0))],
        out_specs=pl.BlockSpec((1, co, ho * wo), lambda i: (i, 0, 0)),
        compiler_params=pltpu.CompilerParams(dimension_semantics=("parallel",)),
    )(x00, x01, x10, x11, wk, bk)
    return out.reshape(n, co, ho, wo)


# ---------------------------------------------------------------------------
# Kernel B: fused tail for both siamese branches.
#   Linear(fc) -> tanh-RNN over the *batch* dim (seq=N, batch=1, h0=0)
#   -> mean over seq -> fc1 logits -> pairwise L2 distance.
#   f1/f2 : (N, F) bf16, wfc : (F, E) bf16, wih/whh : (E, E) bf16,
#   wfc1  : (E, C) bf16, biases f32.
# ---------------------------------------------------------------------------
def _tail_kernel(f1_ref, f2_ref, wfc_ref, bfc_ref, wih_ref, whh_ref,
                 bih_ref, bhh_ref, wfc1_ref, bfc1_ref,
                 p1_ref, p2_ref, s1_ref, s2_ref, d_ref):
    n = f1_ref.shape[0]
    e = bfc_ref.shape[1]

    wfc = wfc_ref[...]
    wih = wih_ref[...]
    whh = whh_ref[...]
    bfc = bfc_ref[...]
    brnn = bih_ref[...] + bhh_ref[...]

    def branch(feat):
        emb = jnp.dot(feat, wfc, preferred_element_type=jnp.float32) + bfc    # (N, E)
        # Input projection for ALL timesteps in one matmul (hoisted out of the
        # sequential recurrence); only h @ W_hh remains in the serial chain.
        xin = jnp.dot(emb.astype(jnp.bfloat16), wih,
                      preferred_element_type=jnp.float32) + brnn              # (N, E)
        h = jnp.zeros((1, e), jnp.float32)
        acc = jnp.zeros((1, e), jnp.float32)
        for t in range(n):                      # sequence = torch batch dim; N small
            h = jnp.tanh(xin[t:t + 1, :] +
                         jnp.dot(h.astype(jnp.bfloat16), whh,
                                 preferred_element_type=jnp.float32))
            acc = acc + h
        return acc * (1.0 / n)                  # mean over the sequence axis

    p1 = branch(f1_ref[...])
    p2 = branch(f2_ref[...])
    p1_ref[...] = p1
    p2_ref[...] = p2

    wfc1 = wfc1_ref[...]
    bfc1 = bfc1_ref[...]
    s1_ref[...] = jnp.dot(p1.astype(jnp.bfloat16), wfc1,
                          preferred_element_type=jnp.float32) + bfc1
    s2_ref[...] = jnp.dot(p2.astype(jnp.bfloat16), wfc1,
                          preferred_element_type=jnp.float32) + bfc1

    diff = (p1 - p2) + 1e-6                     # torch PairwiseDistance eps
    d_ref[...] = jnp.sqrt(jnp.sum(diff * diff, axis=-1, keepdims=True))


# ---------------------------------------------------------------------------
# Full forward pass (FullModel: shared CNN_RNN on p1 and p2, fc1, pdist).
# ---------------------------------------------------------------------------
def _cnn_feats(x, params):
    x = conv_pool_tanh_block(x, params["w1"], params["b1"])
    x = conv_pool_tanh_block(x, params["w2"], params["b2"])
    x = conv_pool_tanh_block(x, params["w3"], params["b3"])
    n = x.shape[0]
    return x.reshape(n, -1)          # == torch .view(-1, nFilters[2]*10*8)


def full_model_forward(p1, p2, params):
    # TODO(synk): nn.Dropout is identity in inference mode; train-mode RNG
    # dropout is intentionally not implemented.
    f1 = _cnn_feats(p1, params)      # (N, F) bf16
    f2 = _cnn_feats(p2, params)

    e = params["bfc"].shape[1]
    c = params["bfc1"].shape[1]
    P1, P2, s1, s2, dist = pl.pallas_call(
        _tail_kernel,
        out_shape=(jax.ShapeDtypeStruct((1, e), jnp.float32),
                   jax.ShapeDtypeStruct((1, e), jnp.float32),
                   jax.ShapeDtypeStruct((1, c), jnp.float32),
                   jax.ShapeDtypeStruct((1, c), jnp.float32),
                   jax.ShapeDtypeStruct((1, 1), jnp.float32)),
    )(f1, f2,
      params["wfc"].astype(jnp.bfloat16), params["bfc"],
      params["wih_t"].astype(jnp.bfloat16), params["whh_t"].astype(jnp.bfloat16),
      params["bih"], params["bhh"],
      params["wfc1"].astype(jnp.bfloat16), params["bfc1"])
    return P1, P2, s1, s2, dist.reshape(1)


def init_params(key, n_filters, embedding_size, n_categories, in_channels=5):
    ks = jax.random.split(key, 14)

    def nrm(k, shape, scale=0.1):
        return (scale * jax.random.normal(k, shape)).astype(jnp.float32)

    f_dim = n_filters[2] * 10 * 8
    e = embedding_size
    return {
        "w1": nrm(ks[0], (n_filters[0], in_channels, FILT, FILT)),
        "b1": nrm(ks[1], (n_filters[0],)),
        "w2": nrm(ks[2], (n_filters[1], n_filters[0], FILT, FILT)),
        "b2": nrm(ks[3], (n_filters[1],)),
        "w3": nrm(ks[4], (n_filters[2], n_filters[1], FILT, FILT)),
        "b3": nrm(ks[5], (n_filters[2],)),
        "wfc": nrm(ks[6], (f_dim, e)),      # stored as torch fc.weight.T
        "bfc": nrm(ks[7], (1, e)),
        "wih_t": nrm(ks[8], (e, e)),        # torch rnn.weight_ih_l0.T
        "whh_t": nrm(ks[9], (e, e)),        # torch rnn.weight_hh_l0.T
        "bih": nrm(ks[10], (1, e)),
        "bhh": nrm(ks[11], (1, e)),
        "wfc1": nrm(ks[12], (e, n_categories)),  # torch fc1.weight.T
        "bfc1": nrm(ks[13], (1, n_categories)),
    }


if __name__ == "__main__":
    key = jax.random.PRNGKey(0)
    k1, k2, kp = jax.random.split(key, 3)

    n_filters = [4, 6, 8]
    embedding_size = 32
    n_categories = 10
    batch = 2
    # Input spatial dims 52x36 are the ones implied by the module: three
    # (pad4 -> conv5 -> pool2) blocks take 52x36 -> 28x20 -> 16x12 -> 10x8,
    # matching fc(in_features = nFilters[2]*10*8).
    p1 = jax.random.normal(k1, (batch, 5, 52, 36), dtype=jnp.float32)
    p2 = jax.random.normal(k2, (batch, 5, 52, 36), dtype=jnp.float32)
    params = init_params(kp, n_filters, embedding_size, n_categories)

    outs = jax.jit(full_model_forward)(p1, p2, params)
    outs = jax.block_until_ready(outs)
    P1, P2, soft1, soft2, pairout = outs

    assert P1.shape == (1, embedding_size), P1.shape
    assert P2.shape == (1, embedding_size), P2.shape
    assert soft1.shape == (1, n_categories), soft1.shape
    assert soft2.shape == (1, n_categories), soft2.shape
    assert pairout.shape == (1,), pairout.shape
    for o in outs:
        assert jnp.all(jnp.isfinite(o))
    print("KERNEL_OK")
</pallas_src>

<mosaic_0001>
module attributes {stable_mosaic.version = 11 : i64} {
  func.func @_conv_pool_tanh_kernel(%arg0: i32, %arg1: memref<1x125x560xbf16, #tpu.memory_space<vmem>>, %arg2: memref<1x125x560xbf16, #tpu.memory_space<vmem>>, %arg3: memref<1x125x560xbf16, #tpu.memory_space<vmem>>, %arg4: memref<1x125x560xbf16, #tpu.memory_space<vmem>>, %arg5: memref<4x125xbf16, #tpu.memory_space<vmem>>, %arg6: memref<4x1xf32, #tpu.memory_space<vmem>>, %arg7: memref<1x4x560xbf16, #tpu.memory_space<vmem>>) attributes {dimension_semantics = [#tpu.dimension_semantics<parallel>], iteration_bounds = array<i64: 2>, scalar_prefetch = 0 : i64, scratch_operands = 0 : i64, tpu.core_type = #tpu.core_type<tc>, window_params = [{transform_indices = @transform_0, window_bounds = array<i64: 1, 125, 560>}, {transform_indices = @transform_1, window_bounds = array<i64: 1, 125, 560>}, {transform_indices = @transform_2, window_bounds = array<i64: 1, 125, 560>}, {transform_indices = @transform_3, window_bounds = array<i64: 1, 125, 560>}, {pipeline_mode = #tpu.pipeline_mode<synchronous>, transform_indices = @transform_4, window_bounds = array<i64: 4, 125>}, {pipeline_mode = #tpu.pipeline_mode<synchronous>, transform_indices = @transform_5, window_bounds = array<i64: 4, 1>}, {transform_indices = @transform_6, window_bounds = array<i64: 1, 4, 560>}]} {
    %c0 = arith.constant 0 : index
    %c0_0 = arith.constant 0 : index
    %0 = vector.load %arg5[%c0, %c0_0] : memref<4x125xbf16, #tpu.memory_space<vmem>>, vector<4x125xbf16>
    %c0_1 = arith.constant 0 : index
    %c0_2 = arith.constant 0 : index
    %c0_3 = arith.constant 0 : index
    %1 = vector.load %arg1[%c0_1, %c0_2, %c0_3] : memref<1x125x560xbf16, #tpu.memory_space<vmem>>, vector<1x125x560xbf16>
    %2 = vector.shape_cast %1 : vector<1x125x560xbf16> to vector<125x560xbf16>
    %cst = arith.constant dense<0.000000e+00> : vector<4x560xf32>
    %3 = tpu.matmul %0, %2, %cst {dimension_numbers = #tpu.dot_dimension_numbers<[1], [0], [0], [1], [0, 0, 1, 1], [], []>} : vector<4x125xbf16>, vector<125x560xbf16>, vector<4x560xf32> -> vector<4x560xf32>
    %c0_4 = arith.constant 0 : index
    %c0_5 = arith.constant 0 : index
    %c0_6 = arith.constant 0 : index
    %4 = vector.load %arg2[%c0_4, %c0_5, %c0_6] : memref<1x125x560xbf16, #tpu.memory_space<vmem>>, vector<1x125x560xbf16>
    %5 = vector.shape_cast %4 : vector<1x125x560xbf16> to vector<125x560xbf16>
    %cst_7 = arith.constant dense<0.000000e+00> : vector<4x560xf32>
    %6 = tpu.matmul %0, %5, %cst_7 {dimension_numbers = #tpu.dot_dimension_numbers<[1], [0], [0], [1], [0, 0, 1, 1], [], []>} : vector<4x125xbf16>, vector<125x560xbf16>, vector<4x560xf32> -> vector<4x560xf32>
    %7 = arith.maximumf %3, %6 : vector<4x560xf32>
    %c0_8 = arith.constant 0 : index
    %c0_9 = arith.constant 0 : index
    %c0_10 = arith.constant 0 : index
    %8 = vector.load %arg3[%c0_8, %c0_9, %c0_10] : memref<1x125x560xbf16, #tpu.memory_space<vmem>>, vector<1x125x560xbf16>
    %9 = vector.shape_cast %8 : vector<1x125x560xbf16> to vector<125x560xbf16>
    %cst_11 = arith.constant dense<0.000000e+00> : vector<4x560xf32>
    %10 = tpu.matmul %0, %9, %cst_11 {dimension_numbers = #tpu.dot_dimension_numbers<[1], [0], [0], [1], [0, 0, 1, 1], [], []>} : vector<4x125xbf16>, vector<125x560xbf16>, vector<4x560xf32> -> vector<4x560xf32>
    %c0_12 = arith.constant 0 : index
    %c0_13 = arith.constant 0 : index
    %c0_14 = arith.constant 0 : index
    %11 = vector.load %arg4[%c0_12, %c0_13, %c0_14] : memref<1x125x560xbf16, #tpu.memory_space<vmem>>, vector<1x125x560xbf16>
    %12 = vector.shape_cast %11 : vector<1x125x560xbf16> to vector<125x560xbf16>
    %cst_15 = arith.constant dense<0.000000e+00> : vector<4x560xf32>
    %13 = tpu.matmul %0, %12, %cst_15 {dimension_numbers = #tpu.dot_dimension_numbers<[1], [0], [0], [1], [0, 0, 1, 1], [], []>} : vector<4x125xbf16>, vector<125x560xbf16>, vector<4x560xf32> -> vector<4x560xf32>
    %14 = arith.maximumf %10, %13 : vector<4x560xf32>
    %15 = arith.maximumf %7, %14 : vector<4x560xf32>
    %c0_16 = arith.constant 0 : index
    %c0_17 = arith.constant 0 : index
    %16 = vector.load %arg6[%c0_16, %c0_17] : memref<4x1xf32, #tpu.memory_space<vmem>>, vector<4x1xf32>
    %17 = vector.broadcast %16 : vector<4x1xf32> to vector<4x560xf32>
    %18 = arith.addf %15, %17 : vector<4x560xf32>
    %19 = math.tanh %18 : vector<4x560xf32>
    %20 = arith.truncf %19 : vector<4x560xf32> to vector<4x560xbf16>
    %c0_18 = arith.constant 0 : index
    %c0_19 = arith.constant 0 : index
    %c0_20 = arith.constant 0 : index
    %21 = vector.load %arg7[%c0_18, %c0_19, %c0_20] : memref<1x4x560xbf16, #tpu.memory_space<vmem>>, vector<1x4x560xbf16>
    %22 = vector.shape_cast %21 : vector<1x4x560xbf16> to vector<4x560xbf16>
    %23 = vector.shape_cast %20 : vector<4x560xbf16> to vector<1x4x560xbf16>
    tpu.vector_store %arg7[%c0_18, %c0_19, %c0_20], %23 {strides = array<i32>} : memref<1x4x560xbf16, #tpu.memory_space<vmem>>, vector<1x4x560xbf16>,
    return
  }
  func.func @transform_0(%arg0: i32) -> (i32, i32, i32) {
    %c0_i32 = arith.constant 0 : i32
    %c0_i32_0 = arith.constant 0 : i32
    %c0_i32_1 = arith.constant 0 : i32
    return %arg0, %c0_i32, %c0_i32_0 : i32, i32, i32
  }
  func.func @transform_1(%arg0: i32) -> (i32, i32, i32) {
    %c0_i32 = arith.constant 0 : i32
    %c0_i32_0 = arith.constant 0 : i32
    %c0_i32_1 = arith.constant 0 : i32
    return %arg0, %c0_i32, %c0_i32_0 : i32, i32, i32
  }
  func.func @transform_2(%arg0: i32) -> (i32, i32, i32) {
    %c0_i32 = arith.constant 0 : i32
    %c0_i32_0 = arith.constant 0 : i32
    %c0_i32_1 = arith.constant 0 : i32
    return %arg0, %c0_i32, %c0_i32_0 : i32, i32, i32
  }
  func.func @transform_3(%arg0: i32) -> (i32, i32, i32) {
    %c0_i32 = arith.constant 0 : i32
    %c0_i32_0 = arith.constant 0 : i32
    %c0_i32_1 = arith.constant 0 : i32
    return %arg0, %c0_i32, %c0_i32_0 : i32, i32, i32
  }
  func.func @transform_4(%arg0: i32) -> (i32, i32) {
    %c0_i32 = arith.constant 0 : i32
    %c0_i32_0 = arith.constant 0 : i32
    %c0_i32_1 = arith.constant 0 : i32
    return %c0_i32, %c0_i32_0 : i32, i32
  }
  func.func @transform_5(%arg0: i32) -> (i32, i32) {
    %c0_i32 = arith.constant 0 : i32
    %c0_i32_0 = arith.constant 0 : i32
    %c0_i32_1 = arith.constant 0 : i32
    return %c0_i32, %c0_i32_0 : i32, i32
  }
  func.func @transform_6(%arg0: i32) -> (i32, i32, i32) {
    %c0_i32 = arith.constant 0 : i32
    %c0_i32_0 = arith.constant 0 : i32
    %c0_i32_1 = arith.constant 0 : i32
    return %arg0, %c0_i32, %c0_i32_0 : i32, i32, i32
  }
}

module attributes {stable_mosaic.version = 11 : i64} {
  func.func @_conv_pool_tanh_kernel(%arg0: i32, %arg1: memref<1x100x192xbf16, #tpu.memory_space<vmem>>, %arg2: memref<1x100x192xbf16, #tpu.memory_space<vmem>>, %arg3: memref<1x100x192xbf16, #tpu.memory_space<vmem>>, %arg4: memref<1x100x192xbf16, #tpu.memory_space<vmem>>, %arg5: memref<6x100xbf16, #tpu.memory_space<vmem>>, %arg6: memref<6x1xf32, #tpu.memory_space<vmem>>, %arg7: memref<1x6x192xbf16, #tpu.memory_space<vmem>>) attributes {dimension_semantics = [#tpu.dimension_semantics<parallel>], iteration_bounds = array<i64: 2>, scalar_prefetch = 0 : i64, scratch_operands = 0 : i64, tpu.core_type = #tpu.core_type<tc>, window_params = [{transform_indices = @transform_0, window_bounds = array<i64: 1, 100, 192>}, {transform_indices = @transform_1, window_bounds = array<i64: 1, 100, 192>}, {transform_indices = @transform_2, window_bounds = array<i64: 1, 100, 192>}, {transform_indices = @transform_3, window_bounds = array<i64: 1, 100, 192>}, {pipeline_mode = #tpu.pipeline_mode<synchronous>, transform_indices = @transform_4, window_bounds = array<i64: 6, 100>}, {pipeline_mode = #tpu.pipeline_mode<synchronous>, transform_indices = @transform_5, window_bounds = array<i64: 6, 1>}, {transform_indices = @transform_6, window_bounds = array<i64: 1, 6, 192>}]} {
    %c0 = arith.constant 0 : index
    %c0_0 = arith.constant 0 : index
    %0 = vector.load %arg5[%c0, %c0_0] : memref<6x100xbf16, #tpu.memory_space<vmem>>, vector<6x100xbf16>
    %c0_1 = arith.constant 0 : index
    %c0_2 = arith.constant 0 : index
    %c0_3 = arith.constant 0 : index
    %1 = vector.load %arg1[%c0_1, %c0_2, %c0_3] : memref<1x100x192xbf16, #tpu.memory_space<vmem>>, vector<1x100x192xbf16>
    %2 = vector.shape_cast %1 : vector<1x100x192xbf16> to vector<100x192xbf16>
    %cst = arith.constant dense<0.000000e+00> : vector<6x192xf32>
    %3 = tpu.matmul %0, %2, %cst {dimension_numbers = #tpu.dot_dimension_numbers<[1], [0], [0], [1], [0, 0, 1, 1], [], []>} : vector<6x100xbf16>, vector<100x192xbf16>, vector<6x192xf32> -> vector<6x192xf32>
    %c0_4 = arith.constant 0 : index
    %c0_5 = arith.constant 0 : index
    %c0_6 = arith.constant 0 : index
    %4 = vector.load %arg2[%c0_4, %c0_5, %c0_6] : memref<1x100x192xbf16, #tpu.memory_space<vmem>>, vector<1x100x192xbf16>
    %5 = vector.shape_cast %4 : vector<1x100x192xbf16> to vector<100x192xbf16>
    %cst_7 = arith.constant dense<0.000000e+00> : vector<6x192xf32>
    %6 = tpu.matmul %0, %5, %cst_7 {dimension_numbers = #tpu.dot_dimension_numbers<[1], [0], [0], [1], [0, 0, 1, 1], [], []>} : vector<6x100xbf16>, vector<100x192xbf16>, vector<6x192xf32> -> vector<6x192xf32>
    %7 = arith.maximumf %3, %6 : vector<6x192xf32>
    %c0_8 = arith.constant 0 : index
    %c0_9 = arith.constant 0 : index
    %c0_10 = arith.constant 0 : index
    %8 = vector.load %arg3[%c0_8, %c0_9, %c0_10] : memref<1x100x192xbf16, #tpu.memory_space<vmem>>, vector<1x100x192xbf16>
    %9 = vector.shape_cast %8 : vector<1x100x192xbf16> to vector<100x192xbf16>
    %cst_11 = arith.constant dense<0.000000e+00> : vector<6x192xf32>
    %10 = tpu.matmul %0, %9, %cst_11 {dimension_numbers = #tpu.dot_dimension_numbers<[1], [0], [0], [1], [0, 0, 1, 1], [], []>} : vector<6x100xbf16>, vector<100x192xbf16>, vector<6x192xf32> -> vector<6x192xf32>
    %c0_12 = arith.constant 0 : index
    %c0_13 = arith.constant 0 : index
    %c0_14 = arith.constant 0 : index
    %11 = vector.load %arg4[%c0_12, %c0_13, %c0_14] : memref<1x100x192xbf16, #tpu.memory_space<vmem>>, vector<1x100x192xbf16>
    %12 = vector.shape_cast %11 : vector<1x100x192xbf16> to vector<100x192xbf16>
    %cst_15 = arith.constant dense<0.000000e+00> : vector<6x192xf32>
    %13 = tpu.matmul %0, %12, %cst_15 {dimension_numbers = #tpu.dot_dimension_numbers<[1], [0], [0], [1], [0, 0, 1, 1], [], []>} : vector<6x100xbf16>, vector<100x192xbf16>, vector<6x192xf32> -> vector<6x192xf32>
    %14 = arith.maximumf %10, %13 : vector<6x192xf32>
    %15 = arith.maximumf %7, %14 : vector<6x192xf32>
    %c0_16 = arith.constant 0 : index
    %c0_17 = arith.constant 0 : index
    %16 = vector.load %arg6[%c0_16, %c0_17] : memref<6x1xf32, #tpu.memory_space<vmem>>, vector<6x1xf32>
    %17 = vector.broadcast %16 : vector<6x1xf32> to vector<6x192xf32>
    %18 = arith.addf %15, %17 : vector<6x192xf32>
    %19 = math.tanh %18 : vector<6x192xf32>
    %20 = arith.truncf %19 : vector<6x192xf32> to vector<6x192xbf16>
    %c0_18 = arith.constant 0 : index
    %c0_19 = arith.constant 0 : index
    %c0_20 = arith.constant 0 : index
    %21 = vector.load %arg7[%c0_18, %c0_19, %c0_20] : memref<1x6x192xbf16, #tpu.memory_space<vmem>>, vector<1x6x192xbf16>
    %22 = vector.shape_cast %21 : vector<1x6x192xbf16> to vector<6x192xbf16>
    %23 = vector.shape_cast %20 : vector<6x192xbf16> to vector<1x6x192xbf16>
    tpu.vector_store %arg7[%c0_18, %c0_19, %c0_20], %23 {strides = array<i32>} : memref<1x6x192xbf16, #tpu.memory_space<vmem>>, vector<1x6x192xbf16>,
    return
  }
  func.func @transform_0(%arg0: i32) -> (i32, i32, i32) {
    %c0_i32 = arith.constant 0 : i32
    %c0_i32_0 = arith.constant 0 : i32
    %c0_i32_1 = arith.constant 0 : i32
    return %arg0, %c0_i32, %c0_i32_0 : i32, i32, i32
  }
  func.func @transform_1(%arg0: i32) -> (i32, i32, i32) {
    %c0_i32 = arith.constant 0 : i32
    %c0_i32_0 = arith.constant 0 : i32
    %c0_i32_1 = arith.constant 0 : i32
    return %arg0, %c0_i32, %c0_i32_0 : i32, i32, i32
  }
  func.func @transform_2(%arg0: i32) -> (i32, i32, i32) {
    %c0_i32 = arith.constant 0 : i32
    %c0_i32_0 = arith.constant 0 : i32
    %c0_i32_1 = arith.constant 0 : i32
    return %arg0, %c0_i32, %c0_i32_0 : i32, i32, i32
  }
  func.func @transform_3(%arg0: i32) -> (i32, i32, i32) {
    %c0_i32 = arith.constant 0 : i32
    %c0_i32_0 = arith.constant 0 : i32
    %c0_i32_1 = arith.constant 0 : i32
    return %arg0, %c0_i32, %c0_i32_0 : i32, i32, i32
  }
  func.func @transform_4(%arg0: i32) -> (i32, i32) {
    %c0_i32 = arith.constant 0 : i32
    %c0_i32_0 = arith.constant 0 : i32
    %c0_i32_1 = arith.constant 0 : i32
    return %c0_i32, %c0_i32_0 : i32, i32
  }
  func.func @transform_5(%arg0: i32) -> (i32, i32) {
    %c0_i32 = arith.constant 0 : i32
    %c0_i32_0 = arith.constant 0 : i32
    %c0_i32_1 = arith.constant 0 : i32
    return %c0_i32, %c0_i32_0 : i32, i32
  }
  func.func @transform_6(%arg0: i32) -> (i32, i32, i32) {
    %c0_i32 = arith.constant 0 : i32
    %c0_i32_0 = arith.constant 0 : i32
    %c0_i32_1 = arith.constant 0 : i32
    return %arg0, %c0_i32, %c0_i32_0 : i32, i32, i32
  }
}

module attributes {stable_mosaic.version = 11 : i64} {
  func.func @_tail_kernel(%arg0: memref<2x640xbf16, #tpu.memory_space<vmem>>, %arg1: memref<2x640xbf16, #tpu.memory_space<vmem>>, %arg2: memref<640x32xbf16, #tpu.memory_space<vmem>>, %arg3: memref<1x32xf32, #tpu.memory_space<vmem>>, %arg4: memref<32x32xbf16, #tpu.memory_space<vmem>>, %arg5: memref<32x32xbf16, #tpu.memory_space<vmem>>, %arg6: memref<1x32xf32, #tpu.memory_space<vmem>>, %arg7: memref<1x32xf32, #tpu.memory_space<vmem>>, %arg8: memref<32x10xbf16, #tpu.memory_space<vmem>>, %arg9: memref<1x10xf32, #tpu.memory_space<vmem>>, %arg10: memref<1x32xf32, #tpu.memory_space<vmem>>, %arg11: memref<1x32xf32, #tpu.memory_space<vmem>>, %arg12: memref<1x10xf32, #tpu.memory_space<vmem>>, %arg13: memref<1x10xf32, #tpu.memory_space<vmem>>, %arg14: memref<1x1xf32, #tpu.memory_space<vmem>>) attributes {dimension_semantics = [], scalar_prefetch = 0 : i64, scratch_operands = 0 : i64, tpu.core_type = #tpu.core_type<tc>} {
    %c0 = arith.constant 0 : index
    %c0_0 = arith.constant 0 : index
    %0 = vector.load %arg2[%c0, %c0_0] : memref<640x32xbf16, #tpu.memory_space<vmem>>, vector<640x32xbf16>
    %c0_1 = arith.constant 0 : index
    %c0_2 = arith.constant 0 : index
    %1 = vector.load %arg4[%c0_1, %c0_2] : memref<32x32xbf16, #tpu.memory_space<vmem>>, vector<32x32xbf16>
    %c0_3 = arith.constant 0 : index
    %c0_4 = arith.constant 0 : index
    %2 = vector.load %arg5[%c0_3, %c0_4] : memref<32x32xbf16, #tpu.memory_space<vmem>>, vector<32x32xbf16>
    %c0_5 = arith.constant 0 : index
    %c0_6 = arith.constant 0 : index
    %3 = vector.load %arg3[%c0_5, %c0_6] : memref<1x32xf32, #tpu.memory_space<vmem>>, vector<1x32xf32>
    %c0_7 = arith.constant 0 : index
    %c0_8 = arith.constant 0 : index
    %4 = vector.load %arg6[%c0_7, %c0_8] : memref<1x32xf32, #tpu.memory_space<vmem>>, vector<1x32xf32>
    %c0_9 = arith.constant 0 : index
    %c0_10 = arith.constant 0 : index
    %5 = vector.load %arg7[%c0_9, %c0_10] : memref<1x32xf32, #tpu.memory_space<vmem>>, vector<1x32xf32>
    %6 = arith.addf %4, %5 : vector<1x32xf32>
    %c0_11 = arith.constant 0 : index
    %c0_12 = arith.constant 0 : index
    %7 = vector.load %arg0[%c0_11, %c0_12] : memref<2x640xbf16, #tpu.memory_space<vmem>>, vector<2x640xbf16>
    %cst = arith.constant dense<0.000000e+00> : vector<2x32xf32>
    %8 = tpu.matmul %7, %0, %cst {dimension_numbers = #tpu.dot_dimension_numbers<[1], [0], [0], [1], [0, 0, 1, 1], [], []>} : vector<2x640xbf16>, vector<640x32xbf16>, vector<2x32xf32> -> vector<2x32xf32>
    %9 = vector.broadcast %3 : vector<1x32xf32> to vector<2x32xf32>
    %10 = arith.addf %8, %9 : vector<2x32xf32>
    %11 = arith.truncf %10 : vector<2x32xf32> to vector<2x32xbf16>
    %cst_13 = arith.constant dense<0.000000e+00> : vector<2x32xf32>
    %12 = tpu.matmul %11, %1, %cst_13 {dimension_numbers = #tpu.dot_dimension_numbers<[1], [0], [0], [1], [0, 0, 1, 1], [], []>} : vector<2x32xbf16>, vector<32x32xbf16>, vector<2x32xf32> -> vector<2x32xf32>
    %13 = vector.broadcast %6 : vector<1x32xf32> to vector<2x32xf32>
    %14 = arith.addf %12, %13 : vector<2x32xf32>
    %cst_14 = arith.constant 0.000000e+00 : f32
    %15 = vector.broadcast %cst_14 : f32 to vector<1x32xf32>
    %cst_15 = arith.constant 0.000000e+00 : f32
    %16 = vector.broadcast %cst_15 : f32 to vector<1x32xf32>
    %17 = vector.extract_strided_slice %14 {offsets = [0, 0], sizes = [1, 32], strides = [1, 1]} : vector<2x32xf32> to vector<1x32xf32>
    %18 = arith.truncf %15 : vector<1x32xf32> to vector<1x32xbf16>
    %cst_16 = arith.constant dense<0.000000e+00> : vector<1x32xf32>
    %19 = tpu.matmul %18, %2, %cst_16 {dimension_numbers = #tpu.dot_dimension_numbers<[1], [0], [0], [1], [0, 0, 1, 1], [], []>} : vector<1x32xbf16>, vector<32x32xbf16>, vector<1x32xf32> -> vector<1x32xf32>
    %20 = arith.addf %17, %19 : vector<1x32xf32>
    %21 = math.tanh %20 : vector<1x32xf32>
    %22 = arith.addf %16, %21 : vector<1x32xf32>
    %23 = vector.extract_strided_slice %14 {offsets = [1, 0], sizes = [1, 32], strides = [1, 1]} : vector<2x32xf32> to vector<1x32xf32>
    %24 = arith.truncf %21 : vector<1x32xf32> to vector<1x32xbf16>
    %cst_17 = arith.constant dense<0.000000e+00> : vector<1x32xf32>
    %25 = tpu.matmul %24, %2, %cst_17 {dimension_numbers = #tpu.dot_dimension_numbers<[1], [0], [0], [1], [0, 0, 1, 1], [], []>} : vector<1x32xbf16>, vector<32x32xbf16>, vector<1x32xf32> -> vector<1x32xf32>
    %26 = arith.addf %23, %25 : vector<1x32xf32>
    %27 = math.tanh %26 : vector<1x32xf32>
    %28 = arith.addf %22, %27 : vector<1x32xf32>
    %cst_18 = arith.constant 5.000000e-01 : f32
    %29 = vector.broadcast %cst_18 : f32 to vector<1x32xf32>
    %30 = arith.mulf %28, %29 : vector<1x32xf32>
    %c0_19 = arith.constant 0 : index
    %c0_20 = arith.constant 0 : index
    %31 = vector.load %arg1[%c0_19, %c0_20] : memref<2x640xbf16, #tpu.memory_space<vmem>>, vector<2x640xbf16>
    %cst_21 = arith.constant dense<0.000000e+00> : vector<2x32xf32>
    %32 = tpu.matmul %31, %0, %cst_21 {dimension_numbers = #tpu.dot_dimension_numbers<[1], [0], [0], [1], [0, 0, 1, 1], [], []>} : vector<2x640xbf16>, vector<640x32xbf16>, vector<2x32xf32> -> vector<2x32xf32>
    %33 = vector.broadcast %3 : vector<1x32xf32> to vector<2x32xf32>
    %34 = arith.addf %32, %33 : vector<2x32xf32>
    %35 = arith.truncf %34 : vector<2x32xf32> to vector<2x32xbf16>
    %cst_22 = arith.constant dense<0.000000e+00> : vector<2x32xf32>
    %36 = tpu.matmul %35, %1, %cst_22 {dimension_numbers = #tpu.dot_dimension_numbers<[1], [0], [0], [1], [0, 0, 1, 1], [], []>} : vector<2x32xbf16>, vector<32x32xbf16>, vector<2x32xf32> -> vector<2x32xf32>
    %37 = vector.broadcast %6 : vector<1x32xf32> to vector<2x32xf32>
    %38 = arith.addf %36, %37 : vector<2x32xf32>
    %cst_23 = arith.constant 0.000000e+00 : f32
    %39 = vector.broadcast %cst_23 : f32 to vector<1x32xf32>
    %cst_24 = arith.constant 0.000000e+00 : f32
    %40 = vector.broadcast %cst_24 : f32 to vector<1x32xf32>
    %41 = vector.extract_strided_slice %38 {offsets = [0, 0], sizes = [1, 32], strides = [1, 1]} : vector<2x32xf32> to vector<1x32xf32>
    %42 = arith.truncf %39 : vector<1x32xf32> to vector<1x32xbf16>
    %cst_25 = arith.constant dense<0.000000e+00> : vector<1x32xf32>
    %43 = tpu.matmul %42, %2, %cst_25 {dimension_numbers = #tpu.dot_dimension_numbers<[1], [0], [0], [1], [0, 0, 1, 1], [], []>} : vector<1x32xbf16>, vector<32x32xbf16>, vector<1x32xf32> -> vector<1x32xf32>
    %44 = arith.addf %41, %43 : vector<1x32xf32>
    %45 = math.tanh %44 : vector<1x32xf32>
    %46 = arith.addf %40, %45 : vector<1x32xf32>
    %47 = vector.extract_strided_slice %38 {offsets = [1, 0], sizes = [1, 32], strides = [1, 1]} : vector<2x32xf32> to vector<1x32xf32>
    %48 = arith.truncf %45 : vector<1x32xf32> to vector<1x32xbf16>
    %cst_26 = arith.constant dense<0.000000e+00> : vector<1x32xf32>
    %49 = tpu.matmul %48, %2, %cst_26 {dimension_numbers = #tpu.dot_dimension_numbers<[1], [0], [0], [1], [0, 0, 1, 1], [], []>} : vector<1x32xbf16>, vector<32x32xbf16>, vector<1x32xf32> -> vector<1x32xf32>
    %50 = arith.addf %47, %49 : vector<1x32xf32>
    %51 = math.tanh %50 : vector<1x32xf32>
    %52 = arith.addf %46, %51 : vector<1x32xf32>
    %cst_27 = arith.constant 5.000000e-01 : f32
    %53 = vector.broadcast %cst_27 : f32 to vector<1x32xf32>
    %54 = arith.mulf %52, %53 : vector<1x32xf32>
    %c0_28 = arith.constant 0 : index
    %c0_29 = arith.constant 0 : index
    %55 = vector.load %arg10[%c0_28, %c0_29] : memref<1x32xf32, #tpu.memory_space<vmem>>, vector<1x32xf32>
    tpu.vector_store %arg10[%c0_28, %c0_29], %30 {strides = array<i32>} : memref<1x32xf32, #tpu.memory_space<vmem>>, vector<1x32xf32>,
    %c0_30 = arith.constant 0 : index
    %c0_31 = arith.constant 0 : index
    %56 = vector.load %arg11[%c0_30, %c0_31] : memref<1x32xf32, #tpu.memory_space<vmem>>, vector<1x32xf32>
    tpu.vector_store %arg11[%c0_30, %c0_31], %54 {strides = array<i32>} : memref<1x32xf32, #tpu.memory_space<vmem>>, vector<1x32xf32>,
    %c0_32 = arith.constant 0 : index
    %c0_33 = arith.constant 0 : index
    %57 = vector.load %arg8[%c0_32, %c0_33] : memref<32x10xbf16, #tpu.memory_space<vmem>>, vector<32x10xbf16>
    %c0_34 = arith.constant 0 : index
    %c0_35 = arith.constant 0 : index
    %58 = vector.load %arg9[%c0_34, %c0_35] : memref<1x10xf32, #tpu.memory_space<vmem>>, vector<1x10xf32>
    %59 = arith.truncf %30 : vector<1x32xf32> to vector<1x32xbf16>
    %cst_36 = arith.constant dense<0.000000e+00> : vector<1x10xf32>
    %60 = tpu.matmul %59, %57, %cst_36 {dimension_numbers = #tpu.dot_dimension_numbers<[1], [0], [0], [1], [0, 0, 1, 1], [], []>} : vector<1x32xbf16>, vector<32x10xbf16>, vector<1x10xf32> -> vector<1x10xf32>
    %61 = arith.addf %60, %58 : vector<1x10xf32>
    %c0_37 = arith.constant 0 : index
    %c0_38 = arith.constant 0 : index
    %62 = vector.load %arg12[%c0_37, %c0_38] : memref<1x10xf32, #tpu.memory_space<vmem>>, vector<1x10xf32>
    tpu.vector_store %arg12[%c0_37, %c0_38], %61 {strides = array<i32>} : memref<1x10xf32, #tpu.memory_space<vmem>>, vector<1x10xf32>,
    %63 = arith.truncf %54 : vector<1x32xf32> to vector<1x32xbf16>
    %cst_39 = arith.constant dense<0.000000e+00> : vector<1x10xf32>
    %64 = tpu.matmul %63, %57, %cst_39 {dimension_numbers = #tpu.dot_dimension_numbers<[1], [0], [0], [1], [0, 0, 1, 1], [], []>} : vector<1x32xbf16>, vector<32x10xbf16>, vector<1x10xf32> -> vector<1x10xf32>
    %65 = arith.addf %64, %58 : vector<1x10xf32>
    %c0_40 = arith.constant 0 : index
    %c0_41 = arith.constant 0 : index
    %66 = vector.load %arg13[%c0_40, %c0_41] : memref<1x10xf32, #tpu.memory_space<vmem>>, vector<1x10xf32>
    tpu.vector_store %arg13[%c0_40, %c0_41], %65 {strides = array<i32>} : memref<1x10xf32, #tpu.memory_space<vmem>>, vector<1x10xf32>,
    %67 = arith.subf %30, %54 : vector<1x32xf32>
    %cst_42 = arith.constant 9.99999997E-7 : f32
    %68 = vector.broadcast %cst_42 : f32 to vector<1x32xf32>
    %69 = arith.addf %67, %68 : vector<1x32xf32>
    %70 = arith.mulf %69, %69 : vector<1x32xf32>
    %cst_43 = arith.constant dense<0.000000e+00> : vector<1xf32>
    %71 = vector.multi_reduction <add>, %70, %cst_43 [1] : vector<1x32xf32> to vector<1xf32>
    %72 = vector.shape_cast %71 : vector<1xf32> to vector<1x1xf32>
    %73 = math.sqrt %72 : vector<1x1xf32>
    %c0_44 = arith.constant 0 : index
    %c0_45 = arith.constant 0 : index
    %74 = vector.load %arg14[%c0_44, %c0_45] : memref<1x1xf32, #tpu.memory_space<vmem>>, vector<1x1xf32>
    tpu.vector_store %arg14[%c0_44, %c0_45], %73 {strides = array<i32>} : memref<1x1xf32, #tpu.memory_space<vmem>>, vector<1x1xf32>,
    return
  }
}

module attributes {stable_mosaic.version = 11 : i64} {
  func.func @_conv_pool_tanh_kernel(%arg0: i32, %arg1: memref<1x150x80xbf16, #tpu.memory_space<vmem>>, %arg2: memref<1x150x80xbf16, #tpu.memory_space<vmem>>, %arg3: memref<1x150x80xbf16, #tpu.memory_space<vmem>>, %arg4: memref<1x150x80xbf16, #tpu.memory_space<vmem>>, %arg5: memref<8x150xbf16, #tpu.memory_space<vmem>>, %arg6: memref<8x1xf32, #tpu.memory_space<vmem>>, %arg7: memref<1x8x80xbf16, #tpu.memory_space<vmem>>) attributes {dimension_semantics = [#tpu.dimension_semantics<parallel>], iteration_bounds = array<i64: 2>, scalar_prefetch = 0 : i64, scratch_operands = 0 : i64, tpu.core_type = #tpu.core_type<tc>, window_params = [{transform_indices = @transform_0, window_bounds = array<i64: 1, 150, 80>}, {transform_indices = @transform_1, window_bounds = array<i64: 1, 150, 80>}, {transform_indices = @transform_2, window_bounds = array<i64: 1, 150, 80>}, {transform_indices = @transform_3, window_bounds = array<i64: 1, 150, 80>}, {pipeline_mode = #tpu.pipeline_mode<synchronous>, transform_indices = @transform_4, window_bounds = array<i64: 8, 150>}, {pipeline_mode = #tpu.pipeline_mode<synchronous>, transform_indices = @transform_5, window_bounds = array<i64: 8, 1>}, {transform_indices = @transform_6, window_bounds = array<i64: 1, 8, 80>}]} {
    %c0 = arith.constant 0 : index
    %c0_0 = arith.constant 0 : index
    %0 = vector.load %arg5[%c0, %c0_0] : memref<8x150xbf16, #tpu.memory_space<vmem>>, vector<8x150xbf16>
    %c0_1 = arith.constant 0 : index
    %c0_2 = arith.constant 0 : index
    %c0_3 = arith.constant 0 : index
    %1 = vector.load %arg1[%c0_1, %c0_2, %c0_3] : memref<1x150x80xbf16, #tpu.memory_space<vmem>>, vector<1x150x80xbf16>
    %2 = vector.shape_cast %1 : vector<1x150x80xbf16> to vector<150x80xbf16>
    %cst = arith.constant dense<0.000000e+00> : vector<8x80xf32>
    %3 = tpu.matmul %0, %2, %cst {dimension_numbers = #tpu.dot_dimension_numbers<[1], [0], [0], [1], [0, 0, 1, 1], [], []>} : vector<8x150xbf16>, vector<150x80xbf16>, vector<8x80xf32> -> vector<8x80xf32>
    %c0_4 = arith.constant 0 : index
    %c0_5 = arith.constant 0 : index
    %c0_6 = arith.constant 0 : index
    %4 = vector.load %arg2[%c0_4, %c0_5, %c0_6] : memref<1x150x80xbf16, #tpu.memory_space<vmem>>, vector<1x150x80xbf16>
    %5 = vector.shape_cast %4 : vector<1x150x80xbf16> to vector<150x80xbf16>
    %cst_7 = arith.constant dense<0.000000e+00> : vector<8x80xf32>
    %6 = tpu.matmul %0, %5, %cst_7 {dimension_numbers = #tpu.dot_dimension_numbers<[1], [0], [0], [1], [0, 0, 1, 1], [], []>} : vector<8x150xbf16>, vector<150x80xbf16>, vector<8x80xf32> -> vector<8x80xf32>
    %7 = arith.maximumf %3, %6 : vector<8x80xf32>
    %c0_8 = arith.constant 0 : index
    %c0_9 = arith.constant 0 : index
    %c0_10 = arith.constant 0 : index
    %8 = vector.load %arg3[%c0_8, %c0_9, %c0_10] : memref<1x150x80xbf16, #tpu.memory_space<vmem>>, vector<1x150x80xbf16>
    %9 = vector.shape_cast %8 : vector<1x150x80xbf16> to vector<150x80xbf16>
    %cst_11 = arith.constant dense<0.000000e+00> : vector<8x80xf32>
    %10 = tpu.matmul %0, %9, %cst_11 {dimension_numbers = #tpu.dot_dimension_numbers<[1], [0], [0], [1], [0, 0, 1, 1], [], []>} : vector<8x150xbf16>, vector<150x80xbf16>, vector<8x80xf32> -> vector<8x80xf32>
    %c0_12 = arith.constant 0 : index
    %c0_13 = arith.constant 0 : index
    %c0_14 = arith.constant 0 : index
    %11 = vector.load %arg4[%c0_12, %c0_13, %c0_14] : memref<1x150x80xbf16, #tpu.memory_space<vmem>>, vector<1x150x80xbf16>
    %12 = vector.shape_cast %11 : vector<1x150x80xbf16> to vector<150x80xbf16>
    %cst_15 = arith.constant dense<0.000000e+00> : vector<8x80xf32>
    %13 = tpu.matmul %0, %12, %cst_15 {dimension_numbers = #tpu.dot_dimension_numbers<[1], [0], [0], [1], [0, 0, 1, 1], [], []>} : vector<8x150xbf16>, vector<150x80xbf16>, vector<8x80xf32> -> vector<8x80xf32>
    %14 = arith.maximumf %10, %13 : vector<8x80xf32>
    %15 = arith.maximumf %7, %14 : vector<8x80xf32>
    %c0_16 = arith.constant 0 : index
    %c0_17 = arith.constant 0 : index
    %16 = vector.load %arg6[%c0_16, %c0_17] : memref<8x1xf32, #tpu.memory_space<vmem>>, vector<8x1xf32>
    %17 = vector.broadcast %16 : vector<8x1xf32> to vector<8x80xf32>
    %18 = arith.addf %15, %17 : vector<8x80xf32>
    %19 = math.tanh %18 : vector<8x80xf32>
    %20 = arith.truncf %19 : vector<8x80xf32> to vector<8x80xbf16>
    %c0_18 = arith.constant 0 : index
    %c0_19 = arith.constant 0 : index
    %c0_20 = arith.constant 0 : index
    %21 = vector.load %arg7[%c0_18, %c0_19, %c0_20] : memref<1x8x80xbf16, #tpu.memory_space<vmem>>, vector<1x8x80xbf16>
    %22 = vector.shape_cast %21 : vector<1x8x80xbf16> to vector<8x80xbf16>
    %23 = vector.shape_cast %20 : vector<8x80xbf16> to vector<1x8x80xbf16>
    tpu.vector_store %arg7[%c0_18, %c0_19, %c0_20], %23 {strides = array<i32>} : memref<1x8x80xbf16, #tpu.memory_space<vmem>>, vector<1x8x80xbf16>,
    return
  }
  func.func @transform_0(%arg0: i32) -> (i32, i32, i32) {
    %c0_i32 = arith.constant 0 : i32
    %c0_i32_0 = arith.constant 0 : i32
    %c0_i32_1 = arith.constant 0 : i32
    return %arg0, %c0_i32, %c0_i32_0 : i32, i32, i32
  }
  func.func @transform_1(%arg0: i32) -> (i32, i32, i32) {
    %c0_i32 = arith.constant 0 : i32
    %c0_i32_0 = arith.constant 0 : i32
    %c0_i32_1 = arith.constant 0 : i32
    return %arg0, %c0_i32, %c0_i32_0 : i32, i32, i32
  }
  func.func @transform_2(%arg0: i32) -> (i32, i32, i32) {
    %c0_i32 = arith.constant 0 : i32
    %c0_i32_0 = arith.constant 0 : i32
    %c0_i32_1 = arith.constant 0 : i32
    return %arg0, %c0_i32, %c0_i32_0 : i32, i32, i32
  }
  func.func @transform_3(%arg0: i32) -> (i32, i32, i32) {
    %c0_i32 = arith.constant 0 : i32
    %c0_i32_0 = arith.constant 0 : i32
    %c0_i32_1 = arith.constant 0 : i32
    return %arg0, %c0_i32, %c0_i32_0 : i32, i32, i32
  }
  func.func @transform_4(%arg0: i32) -> (i32, i32) {
    %c0_i32 = arith.constant 0 : i32
    %c0_i32_0 = arith.constant 0 : i32
    %c0_i32_1 = arith.constant 0 : i32
    return %c0_i32, %c0_i32_0 : i32, i32
  }
  func.func @transform_5(%arg0: i32) -> (i32, i32) {
    %c0_i32 = arith.constant 0 : i32
    %c0_i32_0 = arith.constant 0 : i32
    %c0_i32_1 = arith.constant 0 : i32
    return %c0_i32, %c0_i32_0 : i32, i32
  }
  func.func @transform_6(%arg0: i32) -> (i32, i32, i32) {
    %c0_i32 = arith.constant 0 : i32
    %c0_i32_0 = arith.constant 0 : i32
    %c0_i32_1 = arith.constant 0 : i32
    return %arg0, %c0_i32, %c0_i32_0 : i32, i32, i32
  }
}

</mosaic_0001>

<llo_original>
// kernel: full_model_forward.10
$region0: #{full_model_forward.10}
  #allocation0 [shape = 'u32[]', space=smem, size = 0x4, offset = 0x4, fixed_abs, tag = 'smem constant byte address 0x4 - core index']
  #allocation1 [shape = 'u32[144,128]{1,0:T(1,128)}', space=vmem, size = 0x12000, scoped, tag = 'internal scratch']
  %s0 = inlined_call_operand.vmem [shape: bf16[2,125,560], index: 0, kind: input, shape index: {}]
  %s1 = inlined_call_operand.vmem [shape: bf16[2,125,560], index: 1, kind: input, shape index: {}]
  %s2 = inlined_call_operand.vmem [shape: bf16[2,125,560], index: 2, kind: input, shape index: {}]
  %s3 = inlined_call_operand.vmem [shape: bf16[2,125,560], index: 3, kind: input, shape index: {}]
  %s4 = inlined_call_operand.vmem [shape: bf16[4,125], index: 4, kind: input, shape index: {}]
  %s5 = inlined_call_operand.vmem [shape: f32[4,1], index: 5, kind: input, shape index: {}]
  %s6 = inlined_call_operand.vmem [shape: bf16[2,4,560], index: 6, kind: output, shape index: {}]
  %s7 = sld [smem:[#allocation0]]
  $region57: #{full_model_forward.10} parent=0
    _
  %s9 = ssub.s32 1, %s7
  %s10 = scalar_select 0, %s9, %s7
  loop: start=0, step=1, limit=4
  $region2: #{full_model_forward.10} parent=0 // loop_pre_header
    _
  $region3: #{full_model_forward.10} parent=0 // loop_header
    %s12 = sphi 0, %s16
    %p13 = scmp.ge.s32.totalorder %s12, 4
    %s22 = sphi 0, %s24
    %s25 = sphi 0, %s22
    %s26 = sphi 0, %s25
    %s42 = sphi 0, %s26
    %s48 = sphi 0, %s50
    %s51 = sphi 0, %s48
    %s52 = sphi 0, %s51
    %s68 = sphi 0, %s52
    %s74 = sphi 0, %s76
    %s77 = sphi 0, %s74
    %s78 = sphi 0, %s77
    %s94 = sphi 0, %s78
    %s100 = sphi 0, %s102
    %s103 = sphi 0, %s100
    %s104 = sphi 0, %s103
    %s120 = sphi 0, %s104
    %s124 = sphi 0, %s124
    %s126 = sphi 0, %s124
    %s127 = sphi 0, %s126
    %s141 = sphi 0, %s127
    %s145 = sphi 0, %s145
    %s147 = sphi 0, %s145
    %s148 = sphi 0, %s147
    %s162 = sphi 0, %s148
    %s168 = sphi 0, %s170
    %s171 = sphi 0, %s168
    %s172 = sphi 0, %s171
    %s188 = sphi 0, %s172
  $region4: #{full_model_forward.10} parent=0 // loop_header_branch
    %15 = sbr.rel (%p13) target = $region8
  $region5: #{full_model_forward.10} parent=0 // loop_body
    %s17 = ssub.s32 %s12, 1
    %s18 = ssub.s32 %s12, 2
    %s19 = sadd.s32 %s12, 1
    %s20 = ssub.s32 %s12, %s19
    %p21 = scmp.eq.s32.totalorder %s20, 0
    %s23 = sadd.s32 %s22, 1
    %s24 = scalar_select %p21, %s22, %s23
    %p27 = pneg %p21
    %p28 = scmp.eq.s32.totalorder %s12, 1
    %p29 = por %p27, %p28
    %p30 = scmp.ne.s32.totalorder %s22, %s25
    %p31 = scmp.eq.s32.totalorder %s12, 0
    %p32 = por %p30, %p31
    %p33 = scmp.ne.s32.totalorder %s22, %s25
    %p34 = scmp.eq.s32.totalorder %s17, 1
    %p35 = por %p33, %p34
    %p36 = scmp.ne.s32.totalorder %s25, %s26
    %p37 = scmp.eq.s32.totalorder %s17, 0
    %p38 = por %p36, %p37
    %p39 = scmp.ne.s32.totalorder %s25, %s26
    %p40 = scmp.eq.s32.totalorder %s18, 1
    %p41 = por %p39, %p40
    %p43 = scmp.ne.s32.totalorder %s26, %s42
    %p44 = scmp.eq.s32.totalorder %s18, 0
    %p45 = por %p43, %p44
    %s46 = ssub.s32 %s12, %s19
    %p47 = scmp.eq.s32.totalorder %s46, 0
    %s49 = sadd.s32 %s48, 1
    %s50 = scalar_select %p47, %s48, %s49
    %p53 = pneg %p47
    %p54 = scmp.eq.s32.totalorder %s12, 1
    %p55 = por %p53, %p54
    %p56 = scmp.ne.s32.totalorder %s48, %s51
    %p57 = scmp.eq.s32.totalorder %s12, 0
    %p58 = por %p56, %p57
    %p59 = scmp.ne.s32.totalorder %s48, %s51
    %p60 = scmp.eq.s32.totalorder %s17, 1
    %p61 = por %p59, %p60
    %p62 = scmp.ne.s32.totalorder %s51, %s52
    %p63 = scmp.eq.s32.totalorder %s17, 0
    %p64 = por %p62, %p63
    %p65 = scmp.ne.s32.totalorder %s51, %s52
    %p66 = scmp.eq.s32.totalorder %s18, 1
    %p67 = por %p65, %p66
    %p69 = scmp.ne.s32.totalorder %s52, %s68
    %p70 = scmp.eq.s32.totalorder %s18, 0
    %p71 = por %p69, %p70
    %s72 = ssub.s32 %s12, %s19
    %p73 = scmp.eq.s32.totalorder %s72, 0
    %s75 = sadd.s32 %s74, 1
    %s76 = scalar_select %p73, %s74, %s75
    %p79 = pneg %p73
    %p80 = scmp.eq.s32.totalorder %s12, 1
    %p81 = por %p79, %p80
    %p82 = scmp.ne.s32.totalorder %s74, %s77
    %p83 = scmp.eq.s32.totalorder %s12, 0
    %p84 = por %p82, %p83
    %p85 = scmp.ne.s32.totalorder %s74, %s77
    %p86 = scmp.eq.s32.totalorder %s17, 1
    %p87 = por %p85, %p86
    %p88 = scmp.ne.s32.totalorder %s77, %s78
    %p89 = scmp.eq.s32.totalorder %s17, 0
    %p90 = por %p88, %p89
    %p91 = scmp.ne.s32.totalorder %s77, %s78
    %p92 = scmp.eq.s32.totalorder %s18, 1
    %p93 = por %p91, %p92
    %p95 = scmp.ne.s32.totalorder %s78, %s94
    %p96 = scmp.eq.s32.totalorder %s18, 0
    %p97 = por %p95, %p96
    %s98 = ssub.s32 %s12, %s19
    %p99 = scmp.eq.s32.totalorder %s98, 0
    %s101 = sadd.s32 %s100, 1
    %s102 = scalar_select %p99, %s100, %s101
    %p105 = pneg %p99
    %p106 = scmp.eq.s32.totalorder %s12, 1
    %p107 = por %p105, %p106
    %p108 = scmp.ne.s32.totalorder %s100, %s103
    %p109 = scmp.eq.s32.totalorder %s12, 0
    %p110 = por %p108, %p109
    %p111 = scmp.ne.s32.totalorder %s100, %s103
    %p112 = scmp.eq.s32.totalorder %s17, 1
    %p113 = por %p111, %p112
    %p114 = scmp.ne.s32.totalorder %s103, %s104
    %p115 = scmp.eq.s32.totalorder %s17, 0
    %p116 = por %p114, %p115
    %p117 = scmp.ne.s32.totalorder %s103, %s104
    %p118 = scmp.eq.s32.totalorder %s18, 1
    %p119 = por %p117, %p118
    %p121 = scmp.ne.s32.totalorder %s104, %s120
    %p122 = scmp.eq.s32.totalorder %s18, 0
    %p123 = por %p121, %p122
    %s125 = sadd.s32 %s124, 1
    %p128 = scmp.eq.s32.totalorder %s12, 1
    %p129 = scmp.ne.s32.totalorder %s124, %s126
    %p130 = scmp.eq.s32.totalorder %s12, 0
    %p131 = por %p129, %p130
    %p132 = scmp.ne.s32.totalorder %s124, %s126
    %p133 = scmp.eq.s32.totalorder %s17, 1
    %p134 = por %p132, %p133
    %p135 = scmp.ne.s32.totalorder %s126, %s127
    %p136 = scmp.eq.s32.totalorder %s17, 0
    %p137 = por %p135, %p136
    %p138 = scmp.ne.s32.totalorder %s126, %s127
    %p139 = scmp.eq.s32.totalorder %s18, 1
    %p140 = por %p138, %p139
    %p142 = scmp.ne.s32.totalorder %s127, %s141
    %p143 = scmp.eq.s32.totalorder %s18, 0
    %p144 = por %p142, %p143
    %s146 = sadd.s32 %s145, 1
    %p149 = scmp.eq.s32.totalorder %s12, 1
    %p150 = scmp.ne.s32.totalorder %s145, %s147
    %p151 = scmp.eq.s32.totalorder %s12, 0
    %p152 = por %p150, %p151
    %p153 = scmp.ne.s32.totalorder %s145, %s147
    %p154 = scmp.eq.s32.totalorder %s17, 1
    %p155 = por %p153, %p154
    %p156 = scmp.ne.s32.totalorder %s147, %s148
    %p157 = scmp.eq.s32.totalorder %s17, 0
    %p158 = por %p156, %p157
    %p159 = scmp.ne.s32.totalorder %s147, %s148
    %p160 = scmp.eq.s32.totalorder %s18, 1
    %p161 = por %p159, %p160
    %p163 = scmp.ne.s32.totalorder %s148, %s162
    %p164 = scmp.eq.s32.totalorder %s18, 0
    %p165 = por %p163, %p164
    %s166 = ssub.s32 %s12, %s19
    %p167 = scmp.eq.s32.totalorder %s166, 0
    %s169 = sadd.s32 %s168, 1
    %s170 = scalar_select %p167, %s168, %s169
    %p173 = pneg %p167
    %p174 = scmp.eq.s32.totalorder %s12, 1
    %p175 = por %p173, %p174
    %p176 = scmp.ne.s32.totalorder %s168, %s171
    %p177 = scmp.eq.s32.totalorder %s12, 0
    %p178 = por %p176, %p177
    %p179 = scmp.ne.s32.totalorder %s168, %s171
    %p180 = scmp.eq.s32.totalorder %s17, 1
    %p181 = por %p179, %p180
    %p182 = scmp.ne.s32.totalorder %s171, %s172
    %p183 = scmp.eq.s32.totalorder %s17, 0
    %p184 = por %p182, %p183
    %p185 = scmp.ne.s32.totalorder %s171, %s172
    %p186 = scmp.eq.s32.totalorder %s18, 1
    %p187 = por %p185, %p186
    %p189 = scmp.ne.s32.totalorder %s172, %s188
    %p190 = scmp.eq.s32.totalorder %s18, 0
    %p191 = por %p189, %p190
    %p192 = scmp.le.s32.totalorder 1, %s12
    %p193 = scmp.lt.s32.totalorder %s12, 3
    %p194 = pnand %p192, %p193
    %p195 = pneg %p194
    // Predicated region
    $region9: #{full_model_forward.10} parent=5 // pred_check
      _
    $region10: #{full_model_forward.10} parent=5 // pred_check_branch
      %197 = sbr.rel (%p194) target = $region12
    $region11: #{full_model_forward.10} parent=5 // pred_region
      %s198 = ssub.s32 %s12, 1
      // Predicated region
      $region13: #{full_model_forward.10} parent=11 // pred_check
        %p199 = pneg %p137
      $region14: #{full_model_forward.10} parent=11 // pred_check_branch
        %201 = sbr.rel (%p199) target = $region16
      $region15: #{full_model_forward.10} parent=11 // pred_region
        _
      $region16: #{full_model_forward.10} parent=11 // pred_fallthru
        _
      // Predicated region
      $region17: #{full_model_forward.10} parent=11 // pred_check
        %p202 = pneg %p158
      $region18: #{full_model_forward.10} parent=11 // pred_check_branch
        %204 = sbr.rel (%p202) target = $region20
      $region19: #{full_model_forward.10} parent=11 // pred_region
        _
      $region20: #{full_model_forward.10} parent=11 // pred_fallthru
        _
    $region12: #{full_model_forward.10} parent=5 // pred_fallthru
      _
    %p205 = scmp.lt.s32.totalorder %s12, 2
    // Predicated region
    $region21: #{full_model_forward.10} parent=5 // pred_check
      %p206 = pneg %p205
    $region22: #{full_model_forward.10} parent=5 // pred_check_branch
      %208 = sbr.rel (%p206) target = $region24
    $region23: #{full_model_forward.10} parent=5 // pred_region
      // Predicated region
      $region25: #{full_model_forward.10} parent=23 // pred_check
        %p209 = pneg %p32
      $region26: #{full_model_forward.10} parent=23 // pred_check_branch
        %211 = sbr.rel (%p209) target = $region28
      $region27: #{full_model_forward.10} parent=23 // pred_region
        %p212 = scmp.lt.s32.totalorder %s12, 1
        %s213 = scalar_select %p212, %s12, 1
        %s214 = smul.addr %s213, 80
        %s215 = smul.addr %s214, 4
        %s216 = scalar_lea.vmem %s0, %s215
      $region28: #{full_model_forward.10} parent=23 // pred_fallthru
        _
      // Predicated region
      $region29: #{full_model_forward.10} parent=23 // pred_check
        %p217 = pneg %p58
      $region30: #{full_model_forward.10} parent=23 // pred_check_branch
        %219 = sbr.rel (%p217) target = $region32
      $region31: #{full_model_forward.10} parent=23 // pred_region
        %p220 = scmp.lt.s32.totalorder %s12, 1
        %s221 = scalar_select %p220, %s12, 1
        %s222 = smul.addr %s221, 80
        %s223 = smul.addr %s222, 4
        %s224 = scalar_lea.vmem %s1, %s223
      $region32: #{full_model_forward.10} parent=23 // pred_fallthru
        _
      // Predicated region
      $region33: #{full_model_forward.10} parent=23 // pred_check
        %p225 = pneg %p84
      $region34: #{full_model_forward.10} parent=23 // pred_check_branch
        %227 = sbr.rel (%p225) target = $region36
      $region35: #{full_model_forward.10} parent=23 // pred_region
        %p228 = scmp.lt.s32.totalorder %s12, 1
        %s229 = scalar_select %p228, %s12, 1
        %s230 = smul.addr %s229, 80
        %s231 = smul.addr %s230, 4
        %s232 = scalar_lea.vmem %s2, %s231
      $region36: #{full_model_forward.10} parent=23 // pred_fallthru
        _
      // Predicated region
      $region37: #{full_model_forward.10} parent=23 // pred_check
        %p233 = pneg %p110
      $region38: #{full_model_forward.10} parent=23 // pred_check_branch
        %235 = sbr.rel (%p233) target = $region40
      $region39: #{full_model_forward.10} parent=23 // pred_region
        %p236 = scmp.lt.s32.totalorder %s12, 1
        %s237 = scalar_select %p236, %s12, 1
        %s238 = smul.addr %s237, 80
        %s239 = smul.addr %s238, 4
        %s240 = scalar_lea.vmem %s3, %s239
      $region40: #{full_model_forward.10} parent=23 // pred_fallthru
        _
    $region24: #{full_model_forward.10} parent=5 // pred_fallthru
      _
    %p241 = scmp.le.s32.totalorder 1, %s12
    %p242 = scmp.lt.s32.totalorder %s12, 3
    %p243 = pnand %p241, %p242
    %p244 = pneg %p243
    // Predicated region
    $region41: #{full_model_forward.10} parent=5 // pred_check
      _
    $region42: #{full_model_forward.10} parent=5 // pred_check_branch
      %246 = sbr.rel (%p243) target = $region44
    $region43: #{full_model_forward.10} parent=5 // pred_region
      %s247 = ssub.s32 %s12, 1
      %p248 = scmp.lt.s32.totalorder %s17, 1
      %s249 = scalar_select %p248, %s17, 1
      %s250 = smul.addr %s249, 80
      %s251 = smul.addr %s250, 4
      %s252 = scalar_lea.vmem %s0, %s251
      %p253 = pneg %p38
      %p254 = pneg %p35
      %p255 = scmp.lt.s32.totalorder %s17, 1
      %s256 = scalar_select %p255, %s17, 1
      %s257 = smul.addr %s256, 80
      %s258 = smul.addr %s257, 4
      %s259 = scalar_lea.vmem %s1, %s258
      %p260 = pneg %p64
      %p261 = pneg %p61
      %p262 = scmp.lt.s32.totalorder %s17, 1
      %s263 = scalar_select %p262, %s17, 1
      %s264 = smul.addr %s263, 80
      %s265 = smul.addr %s264, 4
      %s266 = scalar_lea.vmem %s2, %s265
      %p267 = pneg %p90
      %p268 = pneg %p87
      %p269 = scmp.lt.s32.totalorder %s17, 1
      %s270 = scalar_select %p269, %s17, 1
      %s271 = smul.addr %s270, 80
      %s272 = smul.addr %s271, 4
      %s273 = scalar_lea.vmem %s3, %s272
      %p274 = pneg %p116
      %p275 = pneg %p113
      %p276 = pneg %p137
      %p277 = pneg %p134
      %p278 = pneg %p158
      %p279 = pneg %p155
      %p280 = pneg %p184
      %p281 = pneg %p181
      %p282 = scmp.lt.s32.totalorder %s17, 1
      %s283 = scalar_select %p282, %s17, 1
      %s284 = smul.addr %s283, 5
      %s285 = smul.addr %s284, 2
      %s286 = scalar_lea.vmem %s6, %s285
      %p287 = scmp.lt.s32.totalorder %s17, 1
      %s288 = scalar_select %p287, %s17, 1
      %s289 = smul.addr %s288, 80
      %s290 = smul.addr %s289, 4
      %s291 = scalar_lea.vmem %s0, %s290
      %p292 = scmp.lt.s32.totalorder %s17, 1
      %s293 = scalar_select %p292, %s17, 1
      %s294 = smul.addr %s293, 80
      %s295 = smul.addr %s294, 4
      %s296 = scalar_lea.vmem %s1, %s295
      %p297 = scmp.lt.s32.totalorder %s17, 1
      %s298 = scalar_select %p297, %s17, 1
      %s299 = smul.addr %s298, 80
      %s300 = smul.addr %s299, 4
      %s301 = scalar_lea.vmem %s2, %s300
      %p302 = scmp.lt.s32.totalorder %s17, 1
      %s303 = scalar_select %p302, %s17, 1
      %s304 = smul.addr %s303, 80
      %s305 = smul.addr %s304, 4
      %s306 = scalar_lea.vmem %s3, %s305
      %p307 = scmp.lt.s32.totalorder %s17, 1
      %s308 = scalar_select %p307, %s17, 1
      %s309 = smul.addr %s308, 5
      %s310 = smul.addr %s309, 2
      %s311 = scalar_lea.vmem %s6, %s310
      %v313 = vld [vmem:[%s4] sm:$0x3]
      %v314 = vld [vmem:[%s291] sm:$0xff]
      %v315 = vld [vmem:[%s291 + $0x8] sm:$0xff]
      %v316 = vld [vmem:[%s291 + $0x10] sm:$0xf]
      %v317 = vld [vmem:[%s291 + $0x14] sm:$0xff]
      %v318 = vld [vmem:[%s291 + $0x1c] sm:$0xff]
      %v319 = vld [vmem:[%s291 + $0x24] sm:$0xf]
      %v320 = vld [vmem:[%s291 + $0x28] sm:$0xff]
      %v321 = vld [vmem:[%s291 + $0x30] sm:$0xff]
      %v322 = vld [vmem:[%s291 + $0x38] sm:$0xf]
      %v323 = vld [vmem:[%s291 + $0x3c] sm:$0xff]
      %v324 = vld [vmem:[%s291 + $0x44] sm:$0xff]
      %v325 = vld [vmem:[%s291 + $0x4c] sm:$0xf]
      %v326 = vld [vmem:[%s291 + $0x50] sm:$0xff]
      %v327 = vld [vmem:[%s291 + $0x58] sm:$0xff]
      %v328 = vld [vmem:[%s291 + $0x60] sm:$0xf]
      %v329 = vld [vmem:[%s291 + $0x64] sm:$0xff]
      %v330 = vld [vmem:[%s291 + $0x6c] sm:$0xff]
      %v331 = vld [vmem:[%s291 + $0x74] sm:$0xf]
      %v332 = vld [vmem:[%s291 + $0x78] sm:$0xff]
      %v333 = vld [vmem:[%s291 + $0x80] sm:$0xff]
      %v334 = vld [vmem:[%s291 + $0x88] sm:$0xf]
      %v335 = vld [vmem:[%s291 + $0x8c] sm:$0xff]
      %v336 = vld [vmem:[%s291 + $0x94] sm:$0xff]
      %v337 = vld [vmem:[%s291 + $0x9c] sm:$0xf]
      %v338 = vld [vmem:[%s291 + $0xa0] sm:$0xff]
      %v339 = vld [vmem:[%s291 + $0xa8] sm:$0xff]
      %v340 = vld [vmem:[%s291 + $0xb0] sm:$0xf]
      %v341 = vld [vmem:[%s291 + $0xb4] sm:$0xff]
      %v342 = vld [vmem:[%s291 + $0xbc] sm:$0xff]
      %v343 = vld [vmem:[%s291 + $0xc4] sm:$0xf]
      %v344 = vld [vmem:[%s291 + $0xc8] sm:$0xff]
      %v345 = vld [vmem:[%s291 + $0xd0] sm:$0xff]
      %v346 = vld [vmem:[%s291 + $0xd8] sm:$0xf]
      %v347 = vld [vmem:[%s291 + $0xdc] sm:$0xff]
      %v348 = vld [vmem:[%s291 + $0xe4] sm:$0xff]
      %v349 = vld [vmem:[%s291 + $0xec] sm:$0xf]
      %v350 = vld [vmem:[%s291 + $0xf0] sm:$0xff]
      %v351 = vld [vmem:[%s291 + $0xf8] sm:$0xff]
      %v352 = vld [vmem:[%s291 + $0x100] sm:$0xf]
      %v353 = vld [vmem:[%s291 + $0x104] sm:$0xff]
      %v354 = vld [vmem:[%s291 + $0x10c] sm:$0xff]
      %v355 = vld [vmem:[%s291 + $0x114] sm:$0xf]
      %v356 = vld [vmem:[%s291 + $0x118] sm:$0xff]
      %v357 = vld [vmem:[%s291 + $0x120] sm:$0xff]
      %v358 = vld [vmem:[%s291 + $0x128] sm:$0xf]
      %v359 = vld [vmem:[%s291 + $0x12c] sm:$0x77]
      %v360 = vld [vmem:[%s291 + $0x134] sm:$0x77]
      %v361 = vld [vmem:[%s291 + $0x13c] sm:$0x7]
      %v410 = vunpack.c.l.b16 %v314
      %v411 = vunpack.c.h.b16 %v314
      %v412 = vunpack.c.l.b16 %v315
      %v413 = vunpack.c.h.b16 %v315
      %v414 = vunpack.c.l.b16 %v316
      %v415 = vunpack.c.l.b16 %v317
      %v416 = vunpack.c.h.b16 %v317
      %v417 = vunpack.c.l.b16 %v318
      %v418 = vunpack.c.h.b16 %v318
      %v419 = vunpack.c.l.b16 %v319
      %v420 = vunpack.c.l.b16 %v320
      %v421 = vunpack.c.h.b16 %v320
      %v422 = vunpack.c.l.b16 %v321
      %v423 = vunpack.c.h.b16 %v321
      %v424 = vunpack.c.l.b16 %v322
      %v425 = vunpack.c.l.b16 %v323
      %v426 = vunpack.c.h.b16 %v323
      %v427 = vunpack.c.l.b16 %v324
      %v428 = vunpack.c.h.b16 %v324
      %v429 = vunpack.c.l.b16 %v325
      %v430 = vunpack.c.l.b16 %v326
      %v431 = vunpack.c.h.b16 %v326
      %v432 = vunpack.c.l.b16 %v327
      %v433 = vunpack.c.h.b16 %v327
      %v434 = vunpack.c.l.b16 %v328
      %v435 = vunpack.c.l.b16 %v329
      %v436 = vunpack.c.h.b16 %v329
      %v437 = vunpack.c.l.b16 %v330
      %v438 = vunpack.c.h.b16 %v330
      %v439 = vunpack.c.l.b16 %v331
      %v440 = vunpack.c.l.b16 %v332
      %v441 = vunpack.c.h.b16 %v332
      %v442 = vunpack.c.l.b16 %v333
      %v443 = vunpack.c.h.b16 %v333
      %v444 = vunpack.c.l.b16 %v334
      %v445 = vunpack.c.l.b16 %v335
      %v446 = vunpack.c.h.b16 %v335
      %v447 = vunpack.c.l.b16 %v336
      %v448 = vunpack.c.h.b16 %v336
      %v449 = vunpack.c.l.b16 %v337
      %v450 = vunpack.c.l.b16 %v338
      %v451 = vunpack.c.h.b16 %v338
      %v452 = vunpack.c.l.b16 %v339
      %v453 = vunpack.c.h.b16 %v339
      %v454 = vunpack.c.l.b16 %v340
      %v455 = vunpack.c.l.b16 %v341
      %v456 = vunpack.c.h.b16 %v341
      %v457 = vunpack.c.l.b16 %v342
      %v458 = vunpack.c.h.b16 %v342
      %v459 = vunpack.c.l.b16 %v343
      %v460 = vunpack.c.l.b16 %v344
      %v461 = vunpack.c.h.b16 %v344
      %v462 = vunpack.c.l.b16 %v345
      %v463 = vunpack.c.h.b16 %v345
      %v464 = vunpack.c.l.b16 %v346
      %v465 = vunpack.c.l.b16 %v347
      %v466 = vunpack.c.h.b16 %v347
      %v467 = vunpack.c.l.b16 %v348
      %v468 = vunpack.c.h.b16 %v348
      %v469 = vunpack.c.l.b16 %v349
      %v470 = vunpack.c.l.b16 %v350
      %v471 = vunpack.c.h.b16 %v350
      %v472 = vunpack.c.l.b16 %v351
      %v473 = vunpack.c.h.b16 %v351
      %v474 = vunpack.c.l.b16 %v352
      %v475 = vunpack.c.l.b16 %v353
      %v476 = vunpack.c.h.b16 %v353
      %v477 = vunpack.c.l.b16 %v354
      %v478 = vunpack.c.h.b16 %v354
      %v479 = vunpack.c.l.b16 %v355
      %v480 = vunpack.c.l.b16 %v356
      %v481 = vunpack.c.h.b16 %v356
      %v482 = vunpack.c.l.b16 %v357
      %v483 = vunpack.c.h.b16 %v357
      %v484 = vunpack.c.l.b16 %v358
      %v485 = vunpack.c.l.b16 %v359
      %v486 = vunpack.c.h.b16 %v359
      %v487 = vunpack.c.l.b16 %v360
      %v488 = vunpack.c.h.b16 %v360
      %v489 = vunpack.c.l.b16 %v361
      %v490 = vpack.c.b16 %v415, %v410
      %v491 = vpack.c.b16 %v416, %v411
      %v492 = vpack.c.b16 %v417, %v412
      %v493 = vpack.c.b16 %v418, %v413
      %v494 = vpack.c.b16 %v419, %v414
      %v495 = vpack.c.b16 %v425, %v420
      %v496 = vpack.c.b16 %v426, %v421
      %v497 = vpack.c.b16 %v427, %v422
      %v498 = vpack.c.b16 %v428, %v423
      %v499 = vpack.c.b16 %v429, %v424
      %v500 = vpack.c.b16 %v435, %v430
      %v501 = vpack.c.b16 %v436, %v431
      %v502 = vpack.c.b16 %v437, %v432
      %v503 = vpack.c.b16 %v438, %v433
      %v504 = vpack.c.b16 %v439, %v434
      %v505 = vpack.c.b16 %v445, %v440
      %v506 = vpack.c.b16 %v446, %v441
      %v507 = vpack.c.b16 %v447, %v442
      %v508 = vpack.c.b16 %v448, %v443
      %v509 = vpack.c.b16 %v449, %v444
      %v510 = vpack.c.b16 %v455, %v450
      %v511 = vpack.c.b16 %v456, %v451
      %v512 = vpack.c.b16 %v457, %v452
      %v513 = vpack.c.b16 %v458, %v453
      %v514 = vpack.c.b16 %v459, %v454
      %v515 = vpack.c.b16 %v465, %v460
      %v516 = vpack.c.b16 %v466, %v461
      %v517 = vpack.c.b16 %v467, %v462
      %v518 = vpack.c.b16 %v468, %v463
      %v519 = vpack.c.b16 %v469, %v464
      %v520 = vpack.c.b16 %v475, %v470
      %v521 = vpack.c.b16 %v476, %v471
      %v522 = vpack.c.b16 %v477, %v472
      %v523 = vpack.c.b16 %v478, %v473
      %v524 = vpack.c.b16 %v479, %v474
      %v525 = vpack.c.b16 %v485, %v480
      %v526 = vpack.c.b16 %v486, %v481
      %v527 = vpack.c.b16 %v487, %v482
      %v528 = vpack.c.b16 %v488, %v483
      %v529 = vpack.c.b16 %v489, %v484
      %vm565 = vcmask 1022976
      %v567 = vsel %vm565, %v313, 0
      %vm569 = vcmask 1045504
      %vm570 = vcmask 1046528
      %v571 = vsel %vm569, 4294967295, 65535
      %v572 = vsel %vm570, %v571, 0
      %v574 = vand.u32 %v525, %v572
      %v577 = vand.u32 %v526, %v572
      %v580 = vand.u32 %v527, %v572
      %v583 = vand.u32 %v528, %v572
      %v586 = vand.u32 %v529, %v572
      %588 = vmatprep.subr.bf16.mxu0 %v577
      %589 = vmatpush1.bf16.msra.mxu0 %v574
      %590 = vmatprep.subr.bf16.mxu0 %v521
      %591 = vmatpush1.bf16.msra.mxu0 %v520
      %592 = vmatprep.subr.bf16.mxu0 %v516
      %593 = vmatpush1.bf16.msra.mxu0 %v515
      %594 = vmatprep.subr.bf16.mxu0 %v511
      %595 = vmatpush1.bf16.msra.mxu0 %v510
      %596 = vmatprep.subr.bf16.mxu0 %v506
      %597 = vmatpush1.bf16.msra.mxu0 %v505
      %598 = vmatprep.subr.bf16.mxu0 %v501
      %599 = vmatpush1.bf16.msra.mxu0 %v500
      %600 = vmatprep.subr.bf16.mxu0 %v496
      %601 = vmatpush1.bf16.msra.mxu0 %v495
      %602 = vmatprep.subr.bf16.mxu0 %v491
      %603 = vmatpush1.bf16.msra.mxu0 %v490
      %604 = vmatprep.subr.bf16.mxu0 0
      %605 = vmatpush2.bf16.msra.mxu0 0
      %606 = vmatprep.subr.bf16.mxu0 0
      %607 = vmatpush2.bf16.msra.mxu0 0
      %608 = vmatprep.subr.bf16.mxu0 0
      %609 = vmatpush2.bf16.msra.mxu0 0
      %610 = vmatprep.subr.bf16.mxu0 0
      %611 = vmatpush2.bf16.msra.mxu0 0
      %612 = vmatprep.subr.bf16.mxu0 0
      %613 = vmatpush2.bf16.msra.mxu0 0
      %614 = vmatprep.subr.bf16.mxu0 0
      %615 = vmatpush2.bf16.msra.mxu0 0
      %616 = vmatprep.subr.bf16.mxu0 0
      %617 = vmatpush2.bf16.msra.mxu0 0
      %618 = vmatprep.subr.bf16.mxu0 0
      %619 = vmatpush2.bf16.msra.mxu0 0
      %620 = vmatprep.mubr.bf16.mxu0 0
      %621 = vmatmul.mubr.bf16.gmra.mxu0 %v567
      %v622 = vpop.f32.mrf.mxu0
      %v623 = vadd.f32 0.0, %v622
      %v624 = vpop.f32.mrf.mxu0
      %v625 = vadd.f32 0.0, %v624
      %v626 = vpop.f32.mrf.mxu0
      %v627 = vpop.f32.mrf.mxu0
      %628 = vdwg.mxu0
      %629 = vmatprep.subr.bf16.mxu0 %v583
      %630 = vmatpush1.bf16.msra.mxu0 %v580
      %631 = vmatprep.subr.bf16.mxu0 %v523
      %632 = vmatpush1.bf16.msra.mxu0 %v522
      %633 = vmatprep.subr.bf16.mxu0 %v518
      %634 = vmatpush1.bf16.msra.mxu0 %v517
      %635 = vmatprep.subr.bf16.mxu0 %v513
      %636 = vmatpush1.bf16.msra.mxu0 %v512
      %637 = vmatprep.subr.bf16.mxu0 %v508
      %638 = vmatpush1.bf16.msra.mxu0 %v507
      %639 = vmatprep.subr.bf16.mxu0 %v503
      %640 = vmatpush1.bf16.msra.mxu0 %v502
      %641 = vmatprep.subr.bf16.mxu0 %v498
      %642 = vmatpush1.bf16.msra.mxu0 %v497
      %643 = vmatprep.subr.bf16.mxu0 %v493
      %644 = vmatpush1.bf16.msra.mxu0 %v492
      %645 = vmatprep.subr.bf16.mxu0 0
      %646 = vmatpush2.bf16.msra.mxu0 0
      %647 = vmatprep.subr.bf16.mxu0 0
      %648 = vmatpush2.bf16.msra.mxu0 0
      %649 = vmatprep.subr.bf16.mxu0 0
      %650 = vmatpush2.bf16.msra.mxu0 0
      %651 = vmatprep.subr.bf16.mxu0 0
      %652 = vmatpush2.bf16.msra.mxu0 0
      %653 = vmatprep.subr.bf16.mxu0 0
      %654 = vmatpush2.bf16.msra.mxu0 0
      %655 = vmatprep.subr.bf16.mxu0 0
      %656 = vmatpush2.bf16.msra.mxu0 0
      %657 = vmatprep.subr.bf16.mxu0 0
      %658 = vmatpush2.bf16.msra.mxu0 0
      %659 = vmatprep.subr.bf16.mxu0 0
      %660 = vmatpush2.bf16.msra.mxu0 0
      %661 = vmatprep.mubr.bf16.mxu0 0
      %662 = vmatmul.mubr.bf16.gmra.mxu0 %v567
      %v663 = vpop.f32.mrf.mxu0
      %v664 = vadd.f32 0.0, %v663
      %v665 = vpop.f32.mrf.mxu0
      %v666 = vadd.f32 0.0, %v665
      %v667 = vpop.f32.mrf.mxu0
      %v668 = vpop.f32.mrf.mxu0
      %669 = vdwg.mxu0
      %670 = vmatprep.subr.bf16.mxu0 0
      %671 = vmatpush1.bf16.msra.mxu0 %v586
      %672 = vmatprep.subr.bf16.mxu0 0
      %673 = vmatpush1.bf16.msra.mxu0 %v524
      %674 = vmatprep.subr.bf16.mxu0 0
      %675 = vmatpush1.bf16.msra.mxu0 %v519
      %676 = vmatprep.subr.bf16.mxu0 0
      %677 = vmatpush1.bf16.msra.mxu0 %v514
      %678 = vmatprep.subr.bf16.mxu0 0
      %679 = vmatpush1.bf16.msra.mxu0 %v509
      %680 = vmatprep.subr.bf16.mxu0 0
      %681 = vmatpush1.bf16.msra.mxu0 %v504
      %682 = vmatprep.subr.bf16.mxu0 0
      %683 = vmatpush1.bf16.msra.mxu0 %v499
      %684 = vmatprep.subr.bf16.mxu0 0
      %685 = vmatpush1.bf16.msra.mxu0 %v494
      %686 = vmatprep.subr.bf16.mxu0 0
      %687 = vmatpush2.bf16.msra.mxu0 0
      %688 = vmatprep.subr.bf16.mxu0 0
      %689 = vmatpush2.bf16.msra.mxu0 0
      %690 = vmatprep.subr.bf16.mxu0 0
      %691 = vmatpush2.bf16.msra.mxu0 0
      %692 = vmatprep.subr.bf16.mxu0 0
      %693 = vmatpush2.bf16.msra.mxu0 0
      %694 = vmatprep.subr.bf16.mxu0 0
      %695 = vmatpush2.bf16.msra.mxu0 0
      %696 = vmatprep.subr.bf16.mxu0 0
      %697 = vmatpush2.bf16.msra.mxu0 0
      %698 = vmatprep.subr.bf16.mxu0 0
      %699 = vmatpush2.bf16.msra.mxu0 0
      %700 = vmatprep.subr.bf16.mxu0 0
      %701 = vmatpush2.bf16.msra.mxu0 0
      %702 = vmatprep.mubr.bf16.mxu0 0
      %703 = vmatmul.mubr.bf16.gmra.mxu0 %v567
      %v704 = vpop.f32.mrf.mxu0
      %v705 = vadd.f32 0.0, %v704
      %v706 = vpop.f32.mrf.mxu0
      %v707 = vpop.f32.mrf.mxu0
      %v708 = vpop.f32.mrf.mxu0
      %709 = vdwg.mxu0
      %v710 = vld [vmem:[%s296] sm:$0xff]
      %v711 = vld [vmem:[%s296 + $0x8] sm:$0xff]
      %v712 = vld [vmem:[%s296 + $0x10] sm:$0xf]
      %v713 = vld [vmem:[%s296 + $0x14] sm:$0xff]
      %v714 = vld [vmem:[%s296 + $0x1c] sm:$0xff]
      %v715 = vld [vmem:[%s296 + $0x24] sm:$0xf]
      %v716 = vld [vmem:[%s296 + $0x28] sm:$0xff]
      %v717 = vld [vmem:[%s296 + $0x30] sm:$0xff]
      %v718 = vld [vmem:[%s296 + $0x38] sm:$0xf]
      %v719 = vld [vmem:[%s296 + $0x3c] sm:$0xff]
      %v720 = vld [vmem:[%s296 + $0x44] sm:$0xff]
      %v721 = vld [vmem:[%s296 + $0x4c] sm:$0xf]
      %v722 = vld [vmem:[%s296 + $0x50] sm:$0xff]
      %v723 = vld [vmem:[%s296 + $0x58] sm:$0xff]
      %v724 = vld [vmem:[%s296 + $0x60] sm:$0xf]
      %v725 = vld [vmem:[%s296 + $0x64] sm:$0xff]
      %v726 = vld [vmem:[%s296 + $0x6c] sm:$0xff]
      %v727 = vld [vmem:[%s296 + $0x74] sm:$0xf]
      %v728 = vld [vmem:[%s296 + $0x78] sm:$0xff]
      %v729 = vld [vmem:[%s296 + $0x80] sm:$0xff]
      %v730 = vld [vmem:[%s296 + $0x88] sm:$0xf]
      %v731 = vld [vmem:[%s296 + $0x8c] sm:$0xff]
      %v732 = vld [vmem:[%s296 + $0x94] sm:$0xff]
      %v733 = vld [vmem:[%s296 + $0x9c] sm:$0xf]
      %v734 = vld [vmem:[%s296 + $0xa0] sm:$0xff]
      %v735 = vld [vmem:[%s296 + $0xa8] sm:$0xff]
      %v736 = vld [vmem:[%s296 + $0xb0] sm:$0xf]
      %v737 = vld [vmem:[%s296 + $0xb4] sm:$0xff]
      %v738 = vld [vmem:[%s296 + $0xbc] sm:$0xff]
      %v739 = vld [vmem:[%s296 + $0xc4] sm:$0xf]
      %v740 = vld [vmem:[%s296 + $0xc8] sm:$0xff]
      %v741 = vld [vmem:[%s296 + $0xd0] sm:$0xff]
      %v742 = vld [vmem:[%s296 + $0xd8] sm:$0xf]
      %v743 = vld [vmem:[%s296 + $0xdc] sm:$0xff]
      %v744 = vld [vmem:[%s296 + $0xe4] sm:$0xff]
      %v745 = vld [vmem:[%s296 + $0xec] sm:$0xf]
      %v746 = vld [vmem:[%s296 + $0xf0] sm:$0xff]
      %v747 = vld [vmem:[%s296 + $0xf8] sm:$0xff]
      %v748 = vld [vmem:[%s296 + $0x100] sm:$0xf]
      %v749 = vld [vmem:[%s296 + $0x104] sm:$0xff]
      %v750 = vld [vmem:[%s296 + $0x10c] sm:$0xff]
      %v751 = vld [vmem:[%s296 + $0x114] sm:$0xf]
      %v752 = vld [vmem:[%s296 + $0x118] sm:$0xff]
      %v753 = vld [vmem:[%s296 + $0x120] sm:$0xff]
      %v754 = vld [vmem:[%s296 + $0x128] sm:$0xf]
      %v755 = vld [vmem:[%s296 + $0x12c] sm:$0x77]
      %v756 = vld [vmem:[%s296 + $0x134] sm:$0x77]
      %v757 = vld [vmem:[%s296 + $0x13c] sm:$0x7]
      %v806 = vunpack.c.l.b16 %v710
      %v807 = vunpack.c.h.b16 %v710
      %v808 = vunpack.c.l.b16 %v711
      %v809 = vunpack.c.h.b16 %v711
      %v810 = vunpack.c.l.b16 %v712
      %v811 = vunpack.c.l.b16 %v713
      %v812 = vunpack.c.h.b16 %v713
      %v813 = vunpack.c.l.b16 %v714
      %v814 = vunpack.c.h.b16 %v714
      %v815 = vunpack.c.l.b16 %v715
      %v816 = vunpack.c.l.b16 %v716
      %v817 = vunpack.c.h.b16 %v716
      %v818 = vunpack.c.l.b16 %v717
      %v819 = vunpack.c.h.b16 %v717
      %v820 = vunpack.c.l.b16 %v718
      %v821 = vunpack.c.l.b16 %v719
      %v822 = vunpack.c.h.b16 %v719
      %v823 = vunpack.c.l.b16 %v720
      %v824 = vunpack.c.h.b16 %v720
      %v825 = vunpack.c.l.b16 %v721
      %v826 = vunpack.c.l.b16 %v722
      %v827 = vunpack.c.h.b16 %v722
      %v828 = vunpack.c.l.b16 %v723
      %v829 = vunpack.c.h.b16 %v723
      %v830 = vunpack.c.l.b16 %v724
      %v831 = vunpack.c.l.b16 %v725
      %v832 = vunpack.c.h.b16 %v725
      %v833 = vunpack.c.l.b16 %v726
      %v834 = vunpack.c.h.b16 %v726
      %v835 = vunpack.c.l.b16 %v727
      %v836 = vunpack.c.l.b16 %v728
      %v837 = vunpack.c.h.b16 %v728
      %v838 = vunpack.c.l.b16 %v729
      %v839 = vunpack.c.h.b16 %v729
      %v840 = vunpack.c.l.b16 %v730
      %v841 = vunpack.c.l.b16 %v731
      %v842 = vunpack.c.h.b16 %v731
      %v843 = vunpack.c.l.b16 %v732
      %v844 = vunpack.c.h.b16 %v732
      %v845 = vunpack.c.l.b16 %v733
      %v846 = vunpack.c.l.b16 %v734
      %v847 = vunpack.c.h.b16 %v734
      %v848 = vunpack.c.l.b16 %v735
      %v849 = vunpack.c.h.b16 %v735
      %v850 = vunpack.c.l.b16 %v736
      %v851 = vunpack.c.l.b16 %v737
      %v852 = vunpack.c.h.b16 %v737
      %v853 = vunpack.c.l.b16 %v738
      %v854 = vunpack.c.h.b16 %v738
      %v855 = vunpack.c.l.b16 %v739
      %v856 = vunpack.c.l.b16 %v740
      %v857 = vunpack.c.h.b16 %v740
      %v858 = vunpack.c.l.b16 %v741
      %v859 = vunpack.c.h.b16 %v741
      %v860 = vunpack.c.l.b16 %v742
      %v861 = vunpack.c.l.b16 %v743
      %v862 = vunpack.c.h.b16 %v743
      %v863 = vunpack.c.l.b16 %v744
      %v864 = vunpack.c.h.b16 %v744
      %v865 = vunpack.c.l.b16 %v745
      %v866 = vunpack.c.l.b16 %v746
      %v867 = vunpack.c.h.b16 %v746
      %v868 = vunpack.c.l.b16 %v747
      %v869 = vunpack.c.h.b16 %v747
      %v870 = vunpack.c.l.b16 %v748
      %v871 = vunpack.c.l.b16 %v749
      %v872 = vunpack.c.h.b16 %v749
      %v873 = vunpack.c.l.b16 %v750
      %v874 = vunpack.c.h.b16 %v750
      %v875 = vunpack.c.l.b16 %v751
      %v876 = vunpack.c.l.b16 %v752
      %v877 = vunpack.c.h.b16 %v752
      %v878 = vunpack.c.l.b16 %v753
      %v879 = vunpack.c.h.b16 %v753
      %v880 = vunpack.c.l.b16 %v754
      %v881 = vunpack.c.l.b16 %v755
      %v882 = vunpack.c.h.b16 %v755
      %v883 = vunpack.c.l.b16 %v756
      %v884 = vunpack.c.h.b16 %v756
      %v885 = vunpack.c.l.b16 %v757
      %v886 = vpack.c.b16 %v811, %v806
      %v887 = vpack.c.b16 %v812, %v807
      %v888 = vpack.c.b16 %v813, %v808
      %v889 = vpack.c.b16 %v814, %v809
      %v890 = vpack.c.b16 %v815, %v810
      %v891 = vpack.c.b16 %v821, %v816
      %v892 = vpack.c.b16 %v822, %v817
      %v893 = vpack.c.b16 %v823, %v818
      %v894 = vpack.c.b16 %v824, %v819
      %v895 = vpack.c.b16 %v825, %v820
      %v896 = vpack.c.b16 %v831, %v826
      %v897 = vpack.c.b16 %v832, %v827
      %v898 = vpack.c.b16 %v833, %v828
      %v899 = vpack.c.b16 %v834, %v829
      %v900 = vpack.c.b16 %v835, %v830
      %v901 = vpack.c.b16 %v841, %v836
      %v902 = vpack.c.b16 %v842, %v837
      %v903 = vpack.c.b16 %v843, %v838
      %v904 = vpack.c.b16 %v844, %v839
      %v905 = vpack.c.b16 %v845, %v840
      %v906 = vpack.c.b16 %v851, %v846
      %v907 = vpack.c.b16 %v852, %v847
      %v908 = vpack.c.b16 %v853, %v848
      %v909 = vpack.c.b16 %v854, %v849
      %v910 = vpack.c.b16 %v855, %v850
      %v911 = vpack.c.b16 %v861, %v856
      %v912 = vpack.c.b16 %v862, %v857
      %v913 = vpack.c.b16 %v863, %v858
      %v914 = vpack.c.b16 %v864, %v859
      %v915 = vpack.c.b16 %v865, %v860
      %v916 = vpack.c.b16 %v871, %v866
      %v917 = vpack.c.b16 %v872, %v867
      %v918 = vpack.c.b16 %v873, %v868
      %v919 = vpack.c.b16 %v874, %v869
      %v920 = vpack.c.b16 %v875, %v870
      %v921 = vpack.c.b16 %v881, %v876
      %v922 = vpack.c.b16 %v882, %v877
      %v923 = vpack.c.b16 %v883, %v878
      %v924 = vpack.c.b16 %v884, %v879
      %v925 = vpack.c.b16 %v885, %v880
      %v962 = vand.u32 %v921, %v572
      %v965 = vand.u32 %v922, %v572
      %v968 = vand.u32 %v923, %v572
      %v971 = vand.u32 %v924, %v572
      %v974 = vand.u32 %v925, %v572
      %976 = vmatprep.subr.bf16.mxu0 %v965
      %977 = vmatpush1.bf16.msra.mxu0 %v962
      %978 = vmatprep.subr.bf16.mxu0 %v917
      %979 = vmatpush1.bf16.msra.mxu0 %v916
      %980 = vmatprep.subr.bf16.mxu0 %v912
      %981 = vmatpush1.bf16.msra.mxu0 %v911
      %982 = vmatprep.subr.bf16.mxu0 %v907
      %983 = vmatpush1.bf16.msra.mxu0 %v906
      %984 = vmatprep.subr.bf16.mxu0 %v902
      %985 = vmatpush1.bf16.msra.mxu0 %v901
      %986 = vmatprep.subr.bf16.mxu0 %v897
      %987 = vmatpush1.bf16.msra.mxu0 %v896
      %988 = vmatprep.subr.bf16.mxu0 %v892
      %989 = vmatpush1.bf16.msra.mxu0 %v891
      %990 = vmatprep.subr.bf16.mxu0 %v887
      %991 = vmatpush1.bf16.msra.mxu0 %v886
      %992 = vmatprep.subr.bf16.mxu0 0
      %993 = vmatpush2.bf16.msra.mxu0 0
      %994 = vmatprep.subr.bf16.mxu0 0
      %995 = vmatpush2.bf16.msra.mxu0 0
      %996 = vmatprep.subr.bf16.mxu0 0
      %997 = vmatpush2.bf16.msra.mxu0 0
      %998 = vmatprep.subr.bf16.mxu0 0
      %999 = vmatpush2.bf16.msra.mxu0 0
      %1000 = vmatprep.subr.bf16.mxu0 0
      %1001 = vmatpush2.bf16.msra.mxu0 0
      %1002 = vmatprep.subr.bf16.mxu0 0
      %1003 = vmatpush2.bf16.msra.mxu0 0
      %1004 = vmatprep.subr.bf16.mxu0 0
      %1005 = vmatpush2.bf16.msra.mxu0 0
      %1006 = vmatprep.subr.bf16.mxu0 0
      %1007 = vmatpush2.bf16.msra.mxu0 0
      %1008 = vmatprep.mubr.bf16.mxu0 0
      %1009 = vmatmul.mubr.bf16.gmra.mxu0 %v567
      %v1010 = vpop.f32.mrf.mxu0
      %v1011 = vadd.f32 0.0, %v1010
      %v1012 = vpop.f32.mrf.mxu0
      %v1013 = vadd.f32 0.0, %v1012
      %v1014 = vpop.f32.mrf.mxu0
      %v1015 = vpop.f32.mrf.mxu0
      %1016 = vdwg.mxu0
      %1017 = vmatprep.subr.bf16.mxu0 %v971
      %1018 = vmatpush1.bf16.msra.mxu0 %v968
      %1019 = vmatprep.subr.bf16.mxu0 %v919
      %1020 = vmatpush1.bf16.msra.mxu0 %v918
      %1021 = vmatprep.subr.bf16.mxu0 %v914
      %1022 = vmatpush1.bf16.msra.mxu0 %v913
      %1023 = vmatprep.subr.bf16.mxu0 %v909
      %1024 = vmatpush1.bf16.msra.mxu0 %v908
      %1025 = vmatprep.subr.bf16.mxu0 %v904
      %1026 = vmatpush1.bf16.msra.mxu0 %v903
      %1027 = vmatprep.subr.bf16.mxu0 %v899
      %1028 = vmatpush1.bf16.msra.mxu0 %v898
      %1029 = vmatprep.subr.bf16.mxu0 %v894
      %1030 = vmatpush1.bf16.msra.mxu0 %v893
      %1031 = vmatprep.subr.bf16.mxu0 %v889
      %1032 = vmatpush1.bf16.msra.mxu0 %v888
      %1033 = vmatprep.subr.bf16.mxu0 0
      %1034 = vmatpush2.bf16.msra.mxu0 0
      %1035 = vmatprep.subr.bf16.mxu0 0
      %1036 = vmatpush2.bf16.msra.mxu0 0
      %1037 = vmatprep.subr.bf16.mxu0 0
      %1038 = vmatpush2.bf16.msra.mxu0 0
      %1039 = vmatprep.subr.bf16.mxu0 0
      %1040 = vmatpush2.bf16.msra.mxu0 0
      %1041 = vmatprep.subr.bf16.mxu0 0
      %1042 = vmatpush2.bf16.msra.mxu0 0
      %1043 = vmatprep.subr.bf16.mxu0 0
      %1044 = vmatpush2.bf16.msra.mxu0 0
      %1045 = vmatprep.subr.bf16.mxu0 0
      %1046 = vmatpush2.bf16.msra.mxu0 0
      %1047 = vmatprep.subr.bf16.mxu0 0
      %1048 = vmatpush2.bf16.msra.mxu0 0
      %1049 = vmatprep.mubr.bf16.mxu0 0
      %1050 = vmatmul.mubr.bf16.gmra.mxu0 %v567
      %v1051 = vpop.f32.mrf.mxu0
      %v1052 = vadd.f32 0.0, %v1051
      %v1053 = vpop.f32.mrf.mxu0
      %v1054 = vadd.f32 0.0, %v1053
      %v1055 = vpop.f32.mrf.mxu0
      %v1056 = vpop.f32.mrf.mxu0
      %1057 = vdwg.mxu0
      %1058 = vmatprep.subr.bf16.mxu0 0
      %1059 = vmatpush1.bf16.msra.mxu0 %v974
      %1060 = vmatprep.subr.bf16.mxu0 0
      %1061 = vmatpush1.bf16.msra.mxu0 %v920
      %1062 = vmatprep.subr.bf16.mxu0 0
      %1063 = vmatpush1.bf16.msra.mxu0 %v915
      %1064 = vmatprep.subr.bf16.mxu0 0
      %1065 = vmatpush1.bf16.msra.mxu0 %v910
      %1066 = vmatprep.subr.bf16.mxu0 0
      %1067 = vmatpush1.bf16.msra.mxu0 %v905
      %1068 = vmatprep.subr.bf16.mxu0 0
      %1069 = vmatpush1.bf16.msra.mxu0 %v900
      %1070 = vmatprep.subr.bf16.mxu0 0
      %1071 = vmatpush1.bf16.msra.mxu0 %v895
      %1072 = vmatprep.subr.bf16.mxu0 0
      %1073 = vmatpush1.bf16.msra.mxu0 %v890
      %1074 = vmatprep.subr.bf16.mxu0 0
      %1075 = vmatpush2.bf16.msra.mxu0 0
      %1076 = vmatprep.subr.bf16.mxu0 0
      %1077 = vmatpush2.bf16.msra.mxu0 0
      %1078 = vmatprep.subr.bf16.mxu0 0
      %1079 = vmatpush2.bf16.msra.mxu0 0
      %1080 = vmatprep.subr.bf16.mxu0 0
      %1081 = vmatpush2.bf16.msra.mxu0 0
      %1082 = vmatprep.subr.bf16.mxu0 0
      %1083 = vmatpush2.bf16.msra.mxu0 0
      %1084 = vmatprep.subr.bf16.mxu0 0
      %1085 = vmatpush2.bf16.msra.mxu0 0
      %1086 = vmatprep.subr.bf16.mxu0 0
      %1087 = vmatpush2.bf16.msra.mxu0 0
      %1088 = vmatprep.subr.bf16.mxu0 0
      %1089 = vmatpush2.bf16.msra.mxu0 0
      %1090 = vmatprep.mubr.bf16.mxu0 0
      %1091 = vmatmul.mubr.bf16.gmra.mxu0 %v567
      %v1092 = vpop.f32.mrf.mxu0
      %v1093 = vadd.f32 0.0, %v1092
      %v1094 = vpop.f32.mrf.mxu0
      %v1095 = vpop.f32.mrf.mxu0
      %v1096 = vpop.f32.mrf.mxu0
      %1097 = vdwg.mxu0
      %v1098 = vmax.f32 %v623, %v1011
      %v1099 = vmax.f32 %v625, %v1013
      %v1100 = vmax.f32 %v664, %v1052
      %v1101 = vmax.f32 %v666, %v1054
      %v1102 = vmax.f32 %v705, %v1093
      %v1103 = vld [vmem:[%s301] sm:$0xff]
      %v1104 = vld [vmem:[%s301 + $0x8] sm:$0xff]
      %v1105 = vld [vmem:[%s301 + $0x10] sm:$0xf]
      %v1106 = vld [vmem:[%s301 + $0x14] sm:$0xff]
      %v1107 = vld [vmem:[%s301 + $0x1c] sm:$0xff]
      %v1108 = vld [vmem:[%s301 + $0x24] sm:$0xf]
      %v1109 = vld [vmem:[%s301 + $0x28] sm:$0xff]
      %v1110 = vld [vmem:[%s301 + $0x30] sm:$0xff]
      %v1111 = vld [vmem:[%s301 + $0x38] sm:$0xf]
      %v1112 = vld [vmem:[%s301 + $0x3c] sm:$0xff]
      %v1113 = vld [vmem:[%s301 + $0x44] sm:$0xff]
      %v1114 = vld [vmem:[%s301 + $0x4c] sm:$0xf]
      %v1115 = vld [vmem:[%s301 + $0x50] sm:$0xff]
      %v1116 = vld [vmem:[%s301 + $0x58] sm:$0xff]
      %v1117 = vld [vmem:[%s301 + $0x60] sm:$0xf]
      %v1118 = vld [vmem:[%s301 + $0x64] sm:$0xff]
      %v1119 = vld [vmem:[%s301 + $0x6c] sm:$0xff]
      %v1120 = vld [vmem:[%s301 + $0x74] sm:$0xf]
      %v1121 = vld [vmem:[%s301 + $0x78] sm:$0xff]
      %v1122 = vld [vmem:[%s301 + $0x80] sm:$0xff]
      %v1123 = vld [vmem:[%s301 + $0x88] sm:$0xf]
      %v1124 = vld [vmem:[%s301 + $0x8c] sm:$0xff]
      %v1125 = vld [vmem:[%s301 + $0x94] sm:$0xff]
      %v1126 = vld [vmem:[%s301 + $0x9c] sm:$0xf]
      %v1127 = vld [vmem:[%s301 + $0xa0] sm:$0xff]
      %v1128 = vld [vmem:[%s301 + $0xa8] sm:$0xff]
      %v1129 = vld [vmem:[%s301 + $0xb0] sm:$0xf]
      %v1130 = vld [vmem:[%s301 + $0xb4] sm:$0xff]
      %v1131 = vld [vmem:[%s301 + $0xbc] sm:$0xff]
      %v1132 = vld [vmem:[%s301 + $0xc4] sm:$0xf]
      %v1133 = vld [vmem:[%s301 + $0xc8] sm:$0xff]
      %v1134 = vld [vmem:[%s301 + $0xd0] sm:$0xff]
      %v1135 = vld [vmem:[%s301 + $0xd8] sm:$0xf]
      %v1136 = vld [vmem:[%s301 + $0xdc] sm:$0xff]
      %v1137 = vld [vmem:[%s301 + $0xe4] sm:$0xff]
      %v1138 = vld [vmem:[%s301 + $0xec] sm:$0xf]
      %v1139 = vld [vmem:[%s301 + $0xf0] sm:$0xff]
      %v1140 = vld [vmem:[%s301 + $0xf8] sm:$0xff]
      %v1141 = vld [vmem:[%s301 + $0x100] sm:$0xf]
      %v1142 = vld [vmem:[%s301 + $0x104] sm:$0xff]
      %v1143 = vld [vmem:[%s301 + $0x10c] sm:$0xff]
      %v1144 = vld [vmem:[%s301 + $0x114] sm:$0xf]
      %v1145 = vld [vmem:[%s301 + $0x118] sm:$0xff]
      %v1146 = vld [vmem:[%s301 + $0x120] sm:$0xff]
      %v1147 = vld [vmem:[%s301 + $0x128] sm:$0xf]
      %v1148 = vld [vmem:[%s301 + $0x12c] sm:$0x77]
      %v1149 = vld [vmem:[%s301 + $0x134] sm:$0x77]
      %v1150 = vld [vmem:[%s301 + $0x13c] sm:$0x7]
      %v1199 = vunpack.c.l.b16 %v1103
      %v1200 = vunpack.c.h.b16 %v1103
      %v1201 = vunpack.c.l.b16 %v1104
      %v1202 = vunpack.c.h.b16 %v1104
      %v1203 = vunpack.c.l.b16 %v1105
      %v1204 = vunpack.c.l.b16 %v1106
      %v1205 = vunpack.c.h.b16 %v1106
      %v1206 = vunpack.c.l.b16 %v1107
      %v1207 = vunpack.c.h.b16 %v1107
      %v1208 = vunpack.c.l.b16 %v1108
      %v1209 = vunpack.c.l.b16 %v1109
      %v1210 = vunpack.c.h.b16 %v1109
      %v1211 = vunpack.c.l.b16 %v1110
      %v1212 = vunpack.c.h.b16 %v1110
      %v1213 = vunpack.c.l.b16 %v1111
      %v1214 = vunpack.c.l.b16 %v1112
      %v1215 = vunpack.c.h.b16 %v1112
      %v1216 = vunpack.c.l.b16 %v1113
      %v1217 = vunpack.c.h.b16 %v1113
      %v1218 = vunpack.c.l.b16 %v1114
      %v1219 = vunpack.c.l.b16 %v1115
      %v1220 = vunpack.c.h.b16 %v1115
      %v1221 = vunpack.c.l.b16 %v1116
      %v1222 = vunpack.c.h.b16 %v1116
      %v1223 = vunpack.c.l.b16 %v1117
      %v1224 = vunpack.c.l.b16 %v1118
      %v1225 = vunpack.c.h.b16 %v1118
      %v1226 = vunpack.c.l.b16 %v1119
      %v1227 = vunpack.c.h.b16 %v1119
      %v1228 = vunpack.c.l.b16 %v1120
      %v1229 = vunpack.c.l.b16 %v1121
      %v1230 = vunpack.c.h.b16 %v1121
      %v1231 = vunpack.c.l.b16 %v1122
      %v1232 = vunpack.c.h.b16 %v1122
      %v1233 = vunpack.c.l.b16 %v1123
      %v1234 = vunpack.c.l.b16 %v1124
      %v1235 = vunpack.c.h.b16 %v1124
      %v1236 = vunpack.c.l.b16 %v1125
      %v1237 = vunpack.c.h.b16 %v1125
      %v1238 = vunpack.c.l.b16 %v1126
      %v1239 = vunpack.c.l.b16 %v1127
      %v1240 = vunpack.c.h.b16 %v1127
      %v1241 = vunpack.c.l.b16 %v1128
      %v1242 = vunpack.c.h.b16 %v1128
      %v1243 = vunpack.c.l.b16 %v1129
      %v1244 = vunpack.c.l.b16 %v1130
      %v1245 = vunpack.c.h.b16 %v1130
      %v1246 = vunpack.c.l.b16 %v1131
      %v1247 = vunpack.c.h.b16 %v1131
      %v1248 = vunpack.c.l.b16 %v1132
      %v1249 = vunpack.c.l.b16 %v1133
      %v1250 = vunpack.c.h.b16 %v1133
      %v1251 = vunpack.c.l.b16 %v1134
      %v1252 = vunpack.c.h.b16 %v1134
      %v1253 = vunpack.c.l.b16 %v1135
      %v1254 = vunpack.c.l.b16 %v1136
      %v1255 = vunpack.c.h.b16 %v1136
      %v1256 = vunpack.c.l.b16 %v1137
      %v1257 = vunpack.c.h.b16 %v1137
      %v1258 = vunpack.c.l.b16 %v1138
      %v1259 = vunpack.c.l.b16 %v1139
      %v1260 = vunpack.c.h.b16 %v1139
      %v1261 = vunpack.c.l.b16 %v1140
      %v1262 = vunpack.c.h.b16 %v1140
      %v1263 = vunpack.c.l.b16 %v1141
      %v1264 = vunpack.c.l.b16 %v1142
      %v1265 = vunpack.c.h.b16 %v1142
      %v1266 = vunpack.c.l.b16 %v1143
      %v1267 = vunpack.c.h.b16 %v1143
      %v1268 = vunpack.c.l.b16 %v1144
      %v1269 = vunpack.c.l.b16 %v1145
      %v1270 = vunpack.c.h.b16 %v1145
      %v1271 = vunpack.c.l.b16 %v1146
      %v1272 = vunpack.c.h.b16 %v1146
      %v1273 = vunpack.c.l.b16 %v1147
      %v1274 = vunpack.c.l.b16 %v1148
      %v1275 = vunpack.c.h.b16 %v1148
      %v1276 = vunpack.c.l.b16 %v1149
      %v1277 = vunpack.c.h.b16 %v1149
      %v1278 = vunpack.c.l.b16 %v1150
      %v1279 = vpack.c.b16 %v1204, %v1199
      %v1280 = vpack.c.b16 %v1205, %v1200
      %v1281 = vpack.c.b16 %v1206, %v1201
      %v1282 = vpack.c.b16 %v1207, %v1202
      %v1283 = vpack.c.b16 %v1208, %v1203
      %v1284 = vpack.c.b16 %v1214, %v1209
      %v1285 = vpack.c.b16 %v1215, %v1210
      %v1286 = vpack.c.b16 %v1216, %v1211
      %v1287 = vpack.c.b16 %v1217, %v1212
      %v1288 = vpack.c.b16 %v1218, %v1213
      %v1289 = vpack.c.b16 %v1224, %v1219
      %v1290 = vpack.c.b16 %v1225, %v1220
      %v1291 = vpack.c.b16 %v1226, %v1221
      %v1292 = vpack.c.b16 %v1227, %v1222
      %v1293 = vpack.c.b16 %v1228, %v1223
      %v1294 = vpack.c.b16 %v1234, %v1229
      %v1295 = vpack.c.b16 %v1235, %v1230
      %v1296 = vpack.c.b16 %v1236, %v1231
      %v1297 = vpack.c.b16 %v1237, %v1232
      %v1298 = vpack.c.b16 %v1238, %v1233
      %v1299 = vpack.c.b16 %v1244, %v1239
      %v1300 = vpack.c.b16 %v1245, %v1240
      %v1301 = vpack.c.b16 %v1246, %v1241
      %v1302 = vpack.c.b16 %v1247, %v1242
      %v1303 = vpack.c.b16 %v1248, %v1243
      %v1304 = vpack.c.b16 %v1254, %v1249
      %v1305 = vpack.c.b16 %v1255, %v1250
      %v1306 = vpack.c.b16 %v1256, %v1251
      %v1307 = vpack.c.b16 %v1257, %v1252
      %v1308 = vpack.c.b16 %v1258, %v1253
      %v1309 = vpack.c.b16 %v1264, %v1259
      %v1310 = vpack.c.b16 %v1265, %v1260
      %v1311 = vpack.c.b16 %v1266, %v1261
      %v1312 = vpack.c.b16 %v1267, %v1262
      %v1313 = vpack.c.b16 %v1268, %v1263
      %v1314 = vpack.c.b16 %v1274, %v1269
      %v1315 = vpack.c.b16 %v1275, %v1270
      %v1316 = vpack.c.b16 %v1276, %v1271
      %v1317 = vpack.c.b16 %v1277, %v1272
      %v1318 = vpack.c.b16 %v1278, %v1273
      %v1355 = vand.u32 %v1314, %v572
      %v1358 = vand.u32 %v1315, %v572
      %v1361 = vand.u32 %v1316, %v572
      %v1364 = vand.u32 %v1317, %v572
      %v1367 = vand.u32 %v1318, %v572
      %1369 = vmatprep.subr.bf16.mxu0 %v1358
      %1370 = vmatpush1.bf16.msra.mxu0 %v1355
      %1371 = vmatprep.subr.bf16.mxu0 %v1310
      %1372 = vmatpush1.bf16.msra.mxu0 %v1309
      %1373 = vmatprep.subr.bf16.mxu0 %v1305
      %1374 = vmatpush1.bf16.msra.mxu0 %v1304
      %1375 = vmatprep.subr.bf16.mxu0 %v1300
      %1376 = vmatpush1.bf16.msra.mxu0 %v1299
      %1377 = vmatprep.subr.bf16.mxu0 %v1295
      %1378 = vmatpush1.bf16.msra.mxu0 %v1294
      %1379 = vmatprep.subr.bf16.mxu0 %v1290
      %1380 = vmatpush1.bf16.msra.mxu0 %v1289
      %1381 = vmatprep.subr.bf16.mxu0 %v1285
      %1382 = vmatpush1.bf16.msra.mxu0 %v1284
      %1383 = vmatprep.subr.bf16.mxu0 %v1280
      %1384 = vmatpush1.bf16.msra.mxu0 %v1279
      %1385 = vmatprep.subr.bf16.mxu0 0
      %1386 = vmatpush2.bf16.msra.mxu0 0
      %1387 = vmatprep.subr.bf16.mxu0 0
      %1388 = vmatpush2.bf16.msra.mxu0 0
      %1389 = vmatprep.subr.bf16.mxu0 0
      %1390 = vmatpush2.bf16.msra.mxu0 0
      %1391 = vmatprep.subr.bf16.mxu0 0
      %1392 = vmatpush2.bf16.msra.mxu0 0
      %1393 = vmatprep.subr.bf16.mxu0 0
      %1394 = vmatpush2.bf16.msra.mxu0 0
      %1395 = vmatprep.subr.bf16.mxu0 0
      %1396 = vmatpush2.bf16.msra.mxu0 0
      %1397 = vmatprep.subr.bf16.mxu0 0
      %1398 = vmatpush2.bf16.msra.mxu0 0
      %1399 = vmatprep.subr.bf16.mxu0 0
      %1400 = vmatpush2.bf16.msra.mxu0 0
      %1401 = vmatprep.mubr.bf16.mxu0 0
      %1402 = vmatmul.mubr.bf16.gmra.mxu0 %v567
      %v1403 = vpop.f32.mrf.mxu0
      %v1404 = vadd.f32 0.0, %v1403
      %v1405 = vpop.f32.mrf.mxu0
      %v1406 = vadd.f32 0.0, %v1405
      %v1407 = vpop.f32.mrf.mxu0
      %v1408 = vpop.f32.mrf.mxu0
      %1409 = vdwg.mxu0
      %1410 = vmatprep.subr.bf16.mxu0 %v1364
      %1411 = vmatpush1.bf16.msra.mxu0 %v1361
      %1412 = vmatprep.subr.bf16.mxu0 %v1312
      %1413 = vmatpush1.bf16.msra.mxu0 %v1311
      %1414 = vmatprep.subr.bf16.mxu0 %v1307
      %1415 = vmatpush1.bf16.msra.mxu0 %v1306
      %1416 = vmatprep.subr.bf16.mxu0 %v1302
      %1417 = vmatpush1.bf16.msra.mxu0 %v1301
      %1418 = vmatprep.subr.bf16.mxu0 %v1297
      %1419 = vmatpush1.bf16.msra.mxu0 %v1296
      %1420 = vmatprep.subr.bf16.mxu0 %v1292
      %1421 = vmatpush1.bf16.msra.mxu0 %v1291
      %1422 = vmatprep.subr.bf16.mxu0 %v1287
      %1423 = vmatpush1.bf16.msra.mxu0 %v1286
      %1424 = vmatprep.subr.bf16.mxu0 %v1282
      %1425 = vmatpush1.bf16.msra.mxu0 %v1281
      %1426 = vmatprep.subr.bf16.mxu0 0
      %1427 = vmatpush2.bf16.msra.mxu0 0
      %1428 = vmatprep.subr.bf16.mxu0 0
      %1429 = vmatpush2.bf16.msra.mxu0 0
      %1430 = vmatprep.subr.bf16.mxu0 0
      %1431 = vmatpush2.bf16.msra.mxu0 0
      %1432 = vmatprep.subr.bf16.mxu0 0
      %1433 = vmatpush2.bf16.msra.mxu0 0
      %1434 = vmatprep.subr.bf16.mxu0 0
      %1435 = vmatpush2.bf16.msra.mxu0 0
      %1436 = vmatprep.subr.bf16.mxu0 0
      %1437 = vmatpush2.bf16.msra.mxu0 0
      %1438 = vmatprep.subr.bf16.mxu0 0
      %1439 = vmatpush2.bf16.msra.mxu0 0
      %1440 = vmatprep.subr.bf16.mxu0 0
      %1441 = vmatpush2.bf16.msra.mxu0 0
      %1442 = vmatprep.mubr.bf16.mxu0 0
      %1443 = vmatmul.mubr.bf16.gmra.mxu0 %v567
      %v1444 = vpop.f32.mrf.mxu0
      %v1445 = vadd.f32 0.0, %v1444
      %v1446 = vpop.f32.mrf.mxu0
      %v1447 = vadd.f32 0.0, %v1446
      %v1448 = vpop.f32.mrf.mxu0
      %v1449 = vpop.f32.mrf.mxu0
      %1450 = vdwg.mxu0
      %1451 = vmatprep.subr.bf16.mxu0 0
      %1452 = vmatpush1.bf16.msra.mxu0 %v1367
      %1453 = vmatprep.subr.bf16.mxu0 0
      %1454 = vmatpush1.bf16.msra.mxu0 %v1313
      %1455 = vmatprep.subr.bf16.mxu0 0
      %1456 = vmatpush1.bf16.msra.mxu0 %v1308
      %1457 = vmatprep.subr.bf16.mxu0 0
      %1458 = vmatpush1.bf16.msra.mxu0 %v1303
      %1459 = vmatprep.subr.bf16.mxu0 0
      %1460 = vmatpush1.bf16.msra.mxu0 %v1298
      %1461 = vmatprep.subr.bf16.mxu0 0
      %1462 = vmatpush1.bf16.msra.mxu0 %v1293
      %1463 = vmatprep.subr.bf16.mxu0 0
      %1464 = vmatpush1.bf16.msra.mxu0 %v1288
      %1465 = vmatprep.subr.bf16.mxu0 0
      %1466 = vmatpush1.bf16.msra.mxu0 %v1283
      %1467 = vmatprep.subr.bf16.mxu0 0
      %1468 = vmatpush2.bf16.msra.mxu0 0
      %1469 = vmatprep.subr.bf16.mxu0 0
      %1470 = vmatpush2.bf16.msra.mxu0 0
      %1471 = vmatprep.subr.bf16.mxu0 0
      %1472 = vmatpush2.bf16.msra.mxu0 0
      %1473 = vmatprep.subr.bf16.mxu0 0
      %1474 = vmatpush2.bf16.msra.mxu0 0
      %1475 = vmatprep.subr.bf16.mxu0 0
      %1476 = vmatpush2.bf16.msra.mxu0 0
      %1477 = vmatprep.subr.bf16.mxu0 0
      %1478 = vmatpush2.bf16.msra.mxu0 0
      %1479 = vmatprep.subr.bf16.mxu0 0
      %1480 = vmatpush2.bf16.msra.mxu0 0
      %1481 = vmatprep.subr.bf16.mxu0 0
      %1482 = vmatpush2.bf16.msra.mxu0 0
      %1483 = vmatprep.mubr.bf16.mxu0 0
      %1484 = vmatmul.mubr.bf16.gmra.mxu0 %v567
      %v1485 = vpop.f32.mrf.mxu0
      %v1486 = vadd.f32 0.0, %v1485
      %v1487 = vpop.f32.mrf.mxu0
      %v1488 = vpop.f32.mrf.mxu0
      %v1489 = vpop.f32.mrf.mxu0
      %1490 = vdwg.mxu0
      %v1491 = vld [vmem:[%s306] sm:$0xff]
      %v1492 = vld [vmem:[%s306 + $0x8] sm:$0xff]
      %v1493 = vld [vmem:[%s306 + $0x10] sm:$0xf]
      %v1494 = vld [vmem:[%s306 + $0x14] sm:$0xff]
      %v1495 = vld [vmem:[%s306 + $0x1c] sm:$0xff]
      %v1496 = vld [vmem:[%s306 + $0x24] sm:$0xf]
      %v1497 = vld [vmem:[%s306 + $0x28] sm:$0xff]
      %v1498 = vld [vmem:[%s306 + $0x30] sm:$0xff]
      %v1499 = vld [vmem:[%s306 + $0x38] sm:$0xf]
      %v1500 = vld [vmem:[%s306 + $0x3c] sm:$0xff]
      %v1501 = vld [vmem:[%s306 + $0x44] sm:$0xff]
      %v1502 = vld [vmem:[%s306 + $0x4c] sm:$0xf]
      %v1503 = vld [vmem:[%s306 + $0x50] sm:$0xff]
      %v1504 = vld [vmem:[%s306 + $0x58] sm:$0xff]
      %v1505 = vld [vmem:[%s306 + $0x60] sm:$0xf]
      %v1506 = vld [vmem:[%s306 + $0x64] sm:$0xff]
      %v1507 = vld [vmem:[%s306 + $0x6c] sm:$0xff]
      %v1508 = vld [vmem:[%s306 + $0x74] sm:$0xf]
      %v1509 = vld [vmem:[%s306 + $0x78] sm:$0xff]
      %v1510 = vld [vmem:[%s306 + $0x80] sm:$0xff]
      %v1511 = vld [vmem:[%s306 + $0x88] sm:$0xf]
      %v1512 = vld [vmem:[%s306 + $0x8c] sm:$0xff]
      %v1513 = vld [vmem:[%s306 + $0x94] sm:$0xff]
      %v1514 = vld [vmem:[%s306 + $0x9c] sm:$0xf]
      %v1515 = vld [vmem:[%s306 + $0xa0] sm:$0xff]
      %v1516 = vld [vmem:[%s306 + $0xa8] sm:$0xff]
      %v1517 = vld [vmem:[%s306 + $0xb0] sm:$0xf]
      %v1518 = vld [vmem:[%s306 + $0xb4] sm:$0xff]
      %v1519 = vld [vmem:[%s306 + $0xbc] sm:$0xff]
      %v1520 = vld [vmem:[%s306 + $0xc4] sm:$0xf]
      %v1521 = vld [vmem:[%s306 + $0xc8] sm:$0xff]
      %v1522 = vld [vmem:[%s306 + $0xd0] sm:$0xff]
      %v1523 = vld [vmem:[%s306 + $0xd8] sm:$0xf]
      %v1524 = vld [vmem:[%s306 + $0xdc] sm:$0xff]
      %v1525 = vld [vmem:[%s306 + $0xe4] sm:$0xff]
      %v1526 = vld [vmem:[%s306 + $0xec] sm:$0xf]
      %v1527 = vld [vmem:[%s306 + $0xf0] sm:$0xff]
      %v1528 = vld [vmem:[%s306 + $0xf8] sm:$0xff]
      %v1529 = vld [vmem:[%s306 + $0x100] sm:$0xf]
      %v1530 = vld [vmem:[%s306 + $0x104] sm:$0xff]
      %v1531 = vld [vmem:[%s306 + $0x10c] sm:$0xff]
      %v1532 = vld [vmem:[%s306 + $0x114] sm:$0xf]
      %v1533 = vld [vmem:[%s306 + $0x118] sm:$0xff]
      %v1534 = vld [vmem:[%s306 + $0x120] sm:$0xff]
      %v1535 = vld [vmem:[%s306 + $0x128] sm:$0xf]
      %v1536 = vld [vmem:[%s306 + $0x12c] sm:$0x77]
      %v1537 = vld [vmem:[%s306 + $0x134] sm:$0x77]
      %v1538 = vld [vmem:[%s306 + $0x13c] sm:$0x7]
      %v1587 = vunpack.c.l.b16 %v1491
      %v1588 = vunpack.c.h.b16 %v1491
      %v1589 = vunpack.c.l.b16 %v1492
      %v1590 = vunpack.c.h.b16 %v1492
      %v1591 = vunpack.c.l.b16 %v1493
      %v1592 = vunpack.c.l.b16 %v1494
      %v1593 = vunpack.c.h.b16 %v1494
      %v1594 = vunpack.c.l.b16 %v1495
      %v1595 = vunpack.c.h.b16 %v1495
      %v1596 = vunpack.c.l.b16 %v1496
      %v1597 = vunpack.c.l.b16 %v1497
      %v1598 = vunpack.c.h.b16 %v1497
      %v1599 = vunpack.c.l.b16 %v1498
      %v1600 = vunpack.c.h.b16 %v1498
      %v1601 = vunpack.c.l.b16 %v1499
      %v1602 = vunpack.c.l.b16 %v1500
      %v1603 = vunpack.c.h.b16 %v1500
      %v1604 = vunpack.c.l.b16 %v1501
      %v1605 = vunpack.c.h.b16 %v1501
      %v1606 = vunpack.c.l.b16 %v1502
      %v1607 = vunpack.c.l.b16 %v1503
      %v1608 = vunpack.c.h.b16 %v1503
      %v1609 = vunpack.c.l.b16 %v1504
      %v1610 = vunpack.c.h.b16 %v1504
      %v1611 = vunpack.c.l.b16 %v1505
      %v1612 = vunpack.c.l.b16 %v1506
      %v1613 = vunpack.c.h.b16 %v1506
      %v1614 = vunpack.c.l.b16 %v1507
      %v1615 = vunpack.c.h.b16 %v1507
      %v1616 = vunpack.c.l.b16 %v1508
      %v1617 = vunpack.c.l.b16 %v1509
      %v1618 = vunpack.c.h.b16 %v1509
      %v1619 = vunpack.c.l.b16 %v1510
      %v1620 = vunpack.c.h.b16 %v1510
      %v1621 = vunpack.c.l.b16 %v1511
      %v1622 = vunpack.c.l.b16 %v1512
      %v1623 = vunpack.c.h.b16 %v1512
      %v1624 = vunpack.c.l.b16 %v1513
      %v1625 = vunpack.c.h.b16 %v1513
      %v1626 = vunpack.c.l.b16 %v1514
      %v1627 = vunpack.c.l.b16 %v1515
      %v1628 = vunpack.c.h.b16 %v1515
      %v1629 = vunpack.c.l.b16 %v1516
      %v1630 = vunpack.c.h.b16 %v1516
      %v1631 = vunpack.c.l.b16 %v1517
      %v1632 = vunpack.c.l.b16 %v1518
      %v1633 = vunpack.c.h.b16 %v1518
      %v1634 = vunpack.c.l.b16 %v1519
      %v1635 = vunpack.c.h.b16 %v1519
      %v1636 = vunpack.c.l.b16 %v1520
      %v1637 = vunpack.c.l.b16 %v1521
      %v1638 = vunpack.c.h.b16 %v1521
      %v1639 = vunpack.c.l.b16 %v1522
      %v1640 = vunpack.c.h.b16 %v1522
      %v1641 = vunpack.c.l.b16 %v1523
      %v1642 = vunpack.c.l.b16 %v1524
      %v1643 = vunpack.c.h.b16 %v1524
      %v1644 = vunpack.c.l.b16 %v1525
      %v1645 = vunpack.c.h.b16 %v1525
      %v1646 = vunpack.c.l.b16 %v1526
      %v1647 = vunpack.c.l.b16 %v1527
      %v1648 = vunpack.c.h.b16 %v1527
      %v1649 = vunpack.c.l.b16 %v1528
      %v1650 = vunpack.c.h.b16 %v1528
      %v1651 = vunpack.c.l.b16 %v1529
      %v1652 = vunpack.c.l.b16 %v1530
      %v1653 = vunpack.c.h.b16 %v1530
      %v1654 = vunpack.c.l.b16 %v1531
      %v1655 = vunpack.c.h.b16 %v1531
      %v1656 = vunpack.c.l.b16 %v1532
      %v1657 = vunpack.c.l.b16 %v1533
      %v1658 = vunpack.c.h.b16 %v1533
      %v1659 = vunpack.c.l.b16 %v1534
      %v1660 = vunpack.c.h.b16 %v1534
      %v1661 = vunpack.c.l.b16 %v1535
      %v1662 = vunpack.c.l.b16 %v1536
      %v1663 = vunpack.c.h.b16 %v1536
      %v1664 = vunpack.c.l.b16 %v1537
      %v1665 = vunpack.c.h.b16 %v1537
      %v1666 = vunpack.c.l.b16 %v1538
      %v1667 = vpack.c.b16 %v1592, %v1587
      %v1668 = vpack.c.b16 %v1593, %v1588
      %v1669 = vpack.c.b16 %v1594, %v1589
      %v1670 = vpack.c.b16 %v1595, %v1590
      %v1671 = vpack.c.b16 %v1596, %v1591
      %v1672 = vpack.c.b16 %v1602, %v1597
      %v1673 = vpack.c.b16 %v1603, %v1598
      %v1674 = vpack.c.b16 %v1604, %v1599
      %v1675 = vpack.c.b16 %v1605, %v1600
      %v1676 = vpack.c.b16 %v1606, %v1601
      %v1677 = vpack.c.b16 %v1612, %v1607
      %v1678 = vpack.c.b16 %v1613, %v1608
      %v1679 = vpack.c.b16 %v1614, %v1609
      %v1680 = vpack.c.b16 %v1615, %v1610
      %v1681 = vpack.c.b16 %v1616, %v1611
      %v1682 = vpack.c.b16 %v1622, %v1617
      %v1683 = vpack.c.b16 %v1623, %v1618
      %v1684 = vpack.c.b16 %v1624, %v1619
      %v1685 = vpack.c.b16 %v1625, %v1620
      %v1686 = vpack.c.b16 %v1626, %v1621
      %v1687 = vpack.c.b16 %v1632, %v1627
      %v1688 = vpack.c.b16 %v1633, %v1628
      %v1689 = vpack.c.b16 %v1634, %v1629
      %v1690 = vpack.c.b16 %v1635, %v1630
      %v1691 = vpack.c.b16 %v1636, %v1631
      %v1692 = vpack.c.b16 %v1642, %v1637
      %v1693 = vpack.c.b16 %v1643, %v1638
      %v1694 = vpack.c.b16 %v1644, %v1639
      %v1695 = vpack.c.b16 %v1645, %v1640
      %v1696 = vpack.c.b16 %v1646, %v1641
      %v1697 = vpack.c.b16 %v1652, %v1647
      %v1698 = vpack.c.b16 %v1653, %v1648
      %v1699 = vpack.c.b16 %v1654, %v1649
      %v1700 = vpack.c.b16 %v1655, %v1650
      %v1701 = vpack.c.b16 %v1656, %v1651
      %v1702 = vpack.c.b16 %v1662, %v1657
      %v1703 = vpack.c.b16 %v1663, %v1658
      %v1704 = vpack.c.b16 %v1664, %v1659
      %v1705 = vpack.c.b16 %v1665, %v1660
      %v1706 = vpack.c.b16 %v1666, %v1661
      %v1743 = vand.u32 %v1702, %v572
      %v1746 = vand.u32 %v1703, %v572
      %v1749 = vand.u32 %v1704, %v572
      %v1752 = vand.u32 %v1705, %v572
      %v1755 = vand.u32 %v1706, %v572
      %1757 = vmatprep.subr.bf16.mxu0 %v1746
      %1758 = vmatpush1.bf16.msra.mxu0 %v1743
      %1759 = vmatprep.subr.bf16.mxu0 %v1698
      %1760 = vmatpush1.bf16.msra.mxu0 %v1697
      %1761 = vmatprep.subr.bf16.mxu0 %v1693
      %1762 = vmatpush1.bf16.msra.mxu0 %v1692
      %1763 = vmatprep.subr.bf16.mxu0 %v1688
      %1764 = vmatpush1.bf16.msra.mxu0 %v1687
      %1765 = vmatprep.subr.bf16.mxu0 %v1683
      %1766 = vmatpush1.bf16.msra.mxu0 %v1682
      %1767 = vmatprep.subr.bf16.mxu0 %v1678
      %1768 = vmatpush1.bf16.msra.mxu0 %v1677
      %1769 = vmatprep.subr.bf16.mxu0 %v1673
      %1770 = vmatpush1.bf16.msra.mxu0 %v1672
      %1771 = vmatprep.subr.bf16.mxu0 %v1668
      %1772 = vmatpush1.bf16.msra.mxu0 %v1667
      %1773 = vmatprep.subr.bf16.mxu0 0
      %1774 = vmatpush2.bf16.msra.mxu0 0
      %1775 = vmatprep.subr.bf16.mxu0 0
      %1776 = vmatpush2.bf16.msra.mxu0 0
      %1777 = vmatprep.subr.bf16.mxu0 0
      %1778 = vmatpush2.bf16.msra.mxu0 0
      %1779 = vmatprep.subr.bf16.mxu0 0
      %1780 = vmatpush2.bf16.msra.mxu0 0
      %1781 = vmatprep.subr.bf16.mxu0 0
      %1782 = vmatpush2.bf16.msra.mxu0 0
      %1783 = vmatprep.subr.bf16.mxu0 0
      %1784 = vmatpush2.bf16.msra.mxu0 0
      %1785 = vmatprep.subr.bf16.mxu0 0
      %1786 = vmatpush2.bf16.msra.mxu0 0
      %1787 = vmatprep.subr.bf16.mxu0 0
      %1788 = vmatpush2.bf16.msra.mxu0 0
      %1789 = vmatprep.mubr.bf16.mxu0 0
      %1790 = vmatmul.mubr.bf16.gmra.mxu0 %v567
      %v1791 = vpop.f32.mrf.mxu0
      %v1792 = vadd.f32 0.0, %v1791
      %v1793 = vpop.f32.mrf.mxu0
      %v1794 = vadd.f32 0.0, %v1793
      %v1795 = vpop.f32.mrf.mxu0
      %v1796 = vpop.f32.mrf.mxu0
      %1797 = vdwg.mxu0
      %1798 = vmatprep.subr.bf16.mxu0 %v1752
      %1799 = vmatpush1.bf16.msra.mxu0 %v1749
      %1800 = vmatprep.subr.bf16.mxu0 %v1700
      %1801 = vmatpush1.bf16.msra.mxu0 %v1699
      %1802 = vmatprep.subr.bf16.mxu0 %v1695
      %1803 = vmatpush1.bf16.msra.mxu0 %v1694
      %1804 = vmatprep.subr.bf16.mxu0 %v1690
      %1805 = vmatpush1.bf16.msra.mxu0 %v1689
      %1806 = vmatprep.subr.bf16.mxu0 %v1685
      %1807 = vmatpush1.bf16.msra.mxu0 %v1684
      %1808 = vmatprep.subr.bf16.mxu0 %v1680
      %1809 = vmatpush1.bf16.msra.mxu0 %v1679
      %1810 = vmatprep.subr.bf16.mxu0 %v1675
      %1811 = vmatpush1.bf16.msra.mxu0 %v1674
      %1812 = vmatprep.subr.bf16.mxu0 %v1670
      %1813 = vmatpush1.bf16.msra.mxu0 %v1669
      %1814 = vmatprep.subr.bf16.mxu0 0
      %1815 = vmatpush2.bf16.msra.mxu0 0
      %1816 = vmatprep.subr.bf16.mxu0 0
      %1817 = vmatpush2.bf16.msra.mxu0 0
      %1818 = vmatprep.subr.bf16.mxu0 0
      %1819 = vmatpush2.bf16.msra.mxu0 0
      %1820 = vmatprep.subr.bf16.mxu0 0
      %1821 = vmatpush2.bf16.msra.mxu0 0
      %1822 = vmatprep.subr.bf16.mxu0 0
      %1823 = vmatpush2.bf16.msra.mxu0 0
      %1824 = vmatprep.subr.bf16.mxu0 0
      %1825 = vmatpush2.bf16.msra.mxu0 0
      %1826 = vmatprep.subr.bf16.mxu0 0
      %1827 = vmatpush2.bf16.msra.mxu0 0
      %1828 = vmatprep.subr.bf16.mxu0 0
      %1829 = vmatpush2.bf16.msra.mxu0 0
      %1830 = vmatprep.mubr.bf16.mxu0 0
      %1831 = vmatmul.mubr.bf16.gmra.mxu0 %v567
      %v1832 = vpop.f32.mrf.mxu0
      %v1833 = vadd.f32 0.0, %v1832
      %v1834 = vpop.f32.mrf.mxu0
      %v1835 = vadd.f32 0.0, %v1834
      %v1836 = vpop.f32.mrf.mxu0
      %v1837 = vpop.f32.mrf.mxu0
      %1838 = vdwg.mxu0
      %1839 = vmatprep.subr.bf16.mxu0 0
      %1840 = vmatpush1.bf16.msra.mxu0 %v1755
      %1841 = vmatprep.subr.bf16.mxu0 0
      %1842 = vmatpush1.bf16.msra.mxu0 %v1701
      %1843 = vmatprep.subr.bf16.mxu0 0
      %1844 = vmatpush1.bf16.msra.mxu0 %v1696
      %1845 = vmatprep.subr.bf16.mxu0 0
      %1846 = vmatpush1.bf16.msra.mxu0 %v1691
      %1847 = vmatprep.subr.bf16.mxu0 0
      %1848 = vmatpush1.bf16.msra.mxu0 %v1686
      %1849 = vmatprep.subr.bf16.mxu0 0
      %1850 = vmatpush1.bf16.msra.mxu0 %v1681
      %1851 = vmatprep.subr.bf16.mxu0 0
      %1852 = vmatpush1.bf16.msra.mxu0 %v1676
      %1853 = vmatprep.subr.bf16.mxu0 0
      %1854 = vmatpush1.bf16.msra.mxu0 %v1671
      %1855 = vmatprep.subr.bf16.mxu0 0
      %1856 = vmatpush2.bf16.msra.mxu0 0
      %1857 = vmatprep.subr.bf16.mxu0 0
      %1858 = vmatpush2.bf16.msra.mxu0 0
      %1859 = vmatprep.subr.bf16.mxu0 0
      %1860 = vmatpush2.bf16.msra.mxu0 0
      %1861 = vmatprep.subr.bf16.mxu0 0
      %1862 = vmatpush2.bf16.msra.mxu0 0
      %1863 = vmatprep.subr.bf16.mxu0 0
      %1864 = vmatpush2.bf16.msra.mxu0 0
      %1865 = vmatprep.subr.bf16.mxu0 0
      %1866 = vmatpush2.bf16.msra.mxu0 0
      %1867 = vmatprep.subr.bf16.mxu0 0
      %1868 = vmatpush2.bf16.msra.mxu0 0
      %1869 = vmatprep.subr.bf16.mxu0 0
      %1870 = vmatpush2.bf16.msra.mxu0 0
      %1871 = vmatprep.mubr.bf16.mxu0 0
      %1872 = vmatmul.mubr.bf16.gmra.mxu0 %v567
      %v1873 = vpop.f32.mrf.mxu0
      %v1874 = vadd.f32 0.0, %v1873
      %v1875 = vpop.f32.mrf.mxu0
      %v1876 = vpop.f32.mrf.mxu0
      %v1877 = vpop.f32.mrf.mxu0
      %1878 = vdwg.mxu0
      %v1879 = vmax.f32 %v1404, %v1792
      %v1880 = vmax.f32 %v1406, %v1794
      %v1881 = vmax.f32 %v1445, %v1833
      %v1882 = vmax.f32 %v1447, %v1835
      %v1883 = vmax.f32 %v1486, %v1874
      %v1884 = vmax.f32 %v1098, %v1879
      %v1885 = vmax.f32 %v1099, %v1880
      %v1886 = vmax.f32 %v1100, %v1881
      %v1887 = vmax.f32 %v1101, %v1882
      %v1888 = vmax.f32 %v1102, %v1883
      %v1889 = vld [vmem:[%s5] sm:$0xf]
      %1891 = vset.pattern.permute.xlu0 0
      %1892 = vperm.xlu0 %1891, %v1889
      %v1893 = vpop.permute.xlu0 %1892
      %v1895 = vadd.f32 %v1884, %v1893
      %v1896 = vadd.f32 %v1885, %v1893
      %v1897 = vadd.f32 %v1886, %v1893
      %v1898 = vadd.f32 %v1887, %v1893
      %v1899 = vadd.f32 %v1888, %v1893
      %v1900 = vtanh.pop %v1895
      %v1901 = vtanh.pop %v1896
      %v1902 = vtanh.pop %v1897
      %v1903 = vtanh.pop %v1898
      %v1904 = vtanh.pop %v1899
      %v1905 = vpack.c.bf16 %v1900, %v1900
      %v1906 = vpack.c.bf16 %v1901, %v1901
      %v1907 = vpack.c.bf16 %v1902, %v1902
      %v1908 = vpack.c.bf16 %v1903, %v1903
      %v1909 = vpack.c.bf16 %v1904, %v1904
      %v1915 = vcombine.low %v1905, %v1906
      %v1916 = vcombine.low %v1907, %v1908
      %v1918 = vunpack.c.l.s4 1983009808
      %v1919 = vunpack.c.0.s8 %v1918
      %v1920 = vlaneseq
      %v1921 = vshrl.u32 %v1920, 7
      %v1922 = vsub.s32 %v1919, %v1921
      %v1923 = vrot.slane %v1915, %v1922
      %v1925 = vunpack.c.l.s4 1983009808
      %v1926 = vunpack.c.0.s8 %v1925
      %v1927 = vlaneseq
      %v1928 = vshrl.u32 %v1927, 7
      %v1929 = vsub.s32 %v1926, %v1928
      %v1930 = vrot.slane %v1916, %v1929
      %v1931 = vcombine.low %v1923, %v1930
      %v1933 = vunpack.c.l.s4 1983009808
      %v1934 = vunpack.c.0.s8 %v1933
      %v1935 = vlaneseq
      %v1936 = vshrl.u32 %v1935, 7
      %v1937 = vsub.s32 %v1934, %v1936
      %v1938 = vrot.slane %v1909, %v1937
      %1941 = vst [vmem:[%s311] sm:$0xff] %v1931
      %vm1942 = vcmask 386048
      %1943 = vst.msk [vmem:[%s311 + $0x8] sm:$0x3] %vm1942, %v1938
      %p1944 = scmp.lt.s32.totalorder %s17, 1
      %s1945 = scalar_select %p1944, %s17, 1
      %s1946 = smul.addr %s1945, 5
      %s1947 = smul.addr %s1946, 2
      %s1948 = scalar_lea.vmem %s6, %s1947
      // Predicated region
      $region45: #{full_model_forward.10} parent=43 // pred_check
        %p1949 = pneg %p181
      $region46: #{full_model_forward.10} parent=43 // pred_check_branch
        %1951 = sbr.rel (%p1949) target = $region48
      $region47: #{full_model_forward.10} parent=43 // pred_region
        _
      $region48: #{full_model_forward.10} parent=43 // pred_fallthru
        _
    $region44: #{full_model_forward.10} parent=5 // pred_fallthru
      _
    %p1952 = scmp.le.s32.totalorder 2, %s12
    // Predicated region
    $region49: #{full_model_forward.10} parent=5 // pred_check
      %p1953 = pneg %p1952
    $region50: #{full_model_forward.10} parent=5 // pred_check_branch
      %1955 = sbr.rel (%p1953) target = $region52
    $region51: #{full_model_forward.10} parent=5 // pred_region
      %s1956 = ssub.s32 %s12, 2
      // Predicated region
      $region53: #{full_model_forward.10} parent=51 // pred_check
        %p1957 = pneg %p187
      $region54: #{full_model_forward.10} parent=51 // pred_check_branch
        %1959 = sbr.rel (%p1957) target = $region56
      $region55: #{full_model_forward.10} parent=51 // pred_region
        %p1960 = scmp.lt.s32.totalorder %s18, 1
        %s1961 = scalar_select %p1960, %s18, 1
        %s1962 = smul.addr %s1961, 5
        %s1963 = smul.addr %s1962, 2
        %s1964 = scalar_lea.vmem %s6, %s1963
      $region56: #{full_model_forward.10} parent=51 // pred_fallthru
        _
    $region52: #{full_model_forward.10} parent=5 // pred_fallthru
      _
  $region6: #{full_model_forward.10} parent=0 // loop_footer
    %s16 = sadd.s32 1, %s12
  $region7: #{full_model_forward.10} parent=0 // loop_footer_branch
    %11 = sbr.rel target = $region3
  $region8: #{full_model_forward.10} parent=0 // loop_exit
    _

// kernel: full_model_forward.11
$region0: #{full_model_forward.11}
  #allocation0 [shape = 'u32[]', space=smem, size = 0x4, offset = 0x4, fixed_abs, tag = 'smem constant byte address 0x4 - core index']
  #allocation1 [shape = 'u32[144,128]{1,0:T(1,128)}', space=vmem, size = 0x12000, scoped, tag = 'internal scratch']
  %s0 = inlined_call_operand.vmem [shape: bf16[2,100,192], index: 0, kind: input, shape index: {}]
  %s1 = inlined_call_operand.vmem [shape: bf16[2,100,192], index: 1, kind: input, shape index: {}]
  %s2 = inlined_call_operand.vmem [shape: bf16[2,100,192], index: 2, kind: input, shape index: {}]
  %s3 = inlined_call_operand.vmem [shape: bf16[2,100,192], index: 3, kind: input, shape index: {}]
  %s4 = inlined_call_operand.vmem [shape: bf16[6,100], index: 4, kind: input, shape index: {}]
  %s5 = inlined_call_operand.vmem [shape: f32[6,1], index: 5, kind: input, shape index: {}]
  %s6 = inlined_call_operand.vmem [shape: bf16[2,6,192], index: 6, kind: output, shape index: {}]
  %s7 = sld [smem:[#allocation0]]
  $region57: #{full_model_forward.11} parent=0
    _
  %s9 = ssub.s32 1, %s7
  %s10 = scalar_select 0, %s9, %s7
  loop: start=0, step=1, limit=4
  $region2: #{full_model_forward.11} parent=0 // loop_pre_header
    _
  $region3: #{full_model_forward.11} parent=0 // loop_header
    %s12 = sphi 0, %s16
    %p13 = scmp.ge.s32.totalorder %s12, 4
    %s22 = sphi 0, %s24
    %s25 = sphi 0, %s22
    %s26 = sphi 0, %s25
    %s42 = sphi 0, %s26
    %s48 = sphi 0, %s50
    %s51 = sphi 0, %s48
    %s52 = sphi 0, %s51
    %s68 = sphi 0, %s52
    %s74 = sphi 0, %s76
    %s77 = sphi 0, %s74
    %s78 = sphi 0, %s77
    %s94 = sphi 0, %s78
    %s100 = sphi 0, %s102
    %s103 = sphi 0, %s100
    %s104 = sphi 0, %s103
    %s120 = sphi 0, %s104
    %s124 = sphi 0, %s124
    %s126 = sphi 0, %s124
    %s127 = sphi 0, %s126
    %s141 = sphi 0, %s127
    %s145 = sphi 0, %s145
    %s147 = sphi 0, %s145
    %s148 = sphi 0, %s147
    %s162 = sphi 0, %s148
    %s168 = sphi 0, %s170
    %s171 = sphi 0, %s168
    %s172 = sphi 0, %s171
    %s188 = sphi 0, %s172
  $region4: #{full_model_forward.11} parent=0 // loop_header_branch
    %15 = sbr.rel (%p13) target = $region8
  $region5: #{full_model_forward.11} parent=0 // loop_body
    %s17 = ssub.s32 %s12, 1
    %s18 = ssub.s32 %s12, 2
    %s19 = sadd.s32 %s12, 1
    %s20 = ssub.s32 %s12, %s19
    %p21 = scmp.eq.s32.totalorder %s20, 0
    %s23 = sadd.s32 %s22, 1
    %s24 = scalar_select %p21, %s22, %s23
    %p27 = pneg %p21
    %p28 = scmp.eq.s32.totalorder %s12, 1
    %p29 = por %p27, %p28
    %p30 = scmp.ne.s32.totalorder %s22, %s25
    %p31 = scmp.eq.s32.totalorder %s12, 0
    %p32 = por %p30, %p31
    %p33 = scmp.ne.s32.totalorder %s22, %s25
    %p34 = scmp.eq.s32.totalorder %s17, 1
    %p35 = por %p33, %p34
    %p36 = scmp.ne.s32.totalorder %s25, %s26
    %p37 = scmp.eq.s32.totalorder %s17, 0
    %p38 = por %p36, %p37
    %p39 = scmp.ne.s32.totalorder %s25, %s26
    %p40 = scmp.eq.s32.totalorder %s18, 1
    %p41 = por %p39, %p40
    %p43 = scmp.ne.s32.totalorder %s26, %s42
    %p44 = scmp.eq.s32.totalorder %s18, 0
    %p45 = por %p43, %p44
    %s46 = ssub.s32 %s12, %s19
    %p47 = scmp.eq.s32.totalorder %s46, 0
    %s49 = sadd.s32 %s48, 1
    %s50 = scalar_select %p47, %s48, %s49
    %p53 = pneg %p47
    %p54 = scmp.eq.s32.totalorder %s12, 1
    %p55 = por %p53, %p54
    %p56 = scmp.ne.s32.totalorder %s48, %s51
    %p57 = scmp.eq.s32.totalorder %s12, 0
    %p58 = por %p56, %p57
    %p59 = scmp.ne.s32.totalorder %s48, %s51
    %p60 = scmp.eq.s32.totalorder %s17, 1
    %p61 = por %p59, %p60
    %p62 = scmp.ne.s32.totalorder %s51, %s52
    %p63 = scmp.eq.s32.totalorder %s17, 0
    %p64 = por %p62, %p63
    %p65 = scmp.ne.s32.totalorder %s51, %s52
    %p66 = scmp.eq.s32.totalorder %s18, 1
    %p67 = por %p65, %p66
    %p69 = scmp.ne.s32.totalorder %s52, %s68
    %p70 = scmp.eq.s32.totalorder %s18, 0
    %p71 = por %p69, %p70
    %s72 = ssub.s32 %s12, %s19
    %p73 = scmp.eq.s32.totalorder %s72, 0
    %s75 = sadd.s32 %s74, 1
    %s76 = scalar_select %p73, %s74, %s75
    %p79 = pneg %p73
    %p80 = scmp.eq.s32.totalorder %s12, 1
    %p81 = por %p79, %p80
    %p82 = scmp.ne.s32.totalorder %s74, %s77
    %p83 = scmp.eq.s32.totalorder %s12, 0
    %p84 = por %p82, %p83
    %p85 = scmp.ne.s32.totalorder %s74, %s77
    %p86 = scmp.eq.s32.totalorder %s17, 1
    %p87 = por %p85, %p86
    %p88 = scmp.ne.s32.totalorder %s77, %s78
    %p89 = scmp.eq.s32.totalorder %s17, 0
    %p90 = por %p88, %p89
    %p91 = scmp.ne.s32.totalorder %s77, %s78
    %p92 = scmp.eq.s32.totalorder %s18, 1
    %p93 = por %p91, %p92
    %p95 = scmp.ne.s32.totalorder %s78, %s94
    %p96 = scmp.eq.s32.totalorder %s18, 0
    %p97 = por %p95, %p96
    %s98 = ssub.s32 %s12, %s19
    %p99 = scmp.eq.s32.totalorder %s98, 0
    %s101 = sadd.s32 %s100, 1
    %s102 = scalar_select %p99, %s100, %s101
    %p105 = pneg %p99
    %p106 = scmp.eq.s32.totalorder %s12, 1
    %p107 = por %p105, %p106
    %p108 = scmp.ne.s32.totalorder %s100, %s103
    %p109 = scmp.eq.s32.totalorder %s12, 0
    %p110 = por %p108, %p109
    %p111 = scmp.ne.s32.totalorder %s100, %s103
    %p112 = scmp.eq.s32.totalorder %s17, 1
    %p113 = por %p111, %p112
    %p114 = scmp.ne.s32.totalorder %s103, %s104
    %p115 = scmp.eq.s32.totalorder %s17, 0
    %p116 = por %p114, %p115
    %p117 = scmp.ne.s32.totalorder %s103, %s104
    %p118 = scmp.eq.s32.totalorder %s18, 1
    %p119 = por %p117, %p118
    %p121 = scmp.ne.s32.totalorder %s104, %s120
    %p122 = scmp.eq.s32.totalorder %s18, 0
    %p123 = por %p121, %p122
    %s125 = sadd.s32 %s124, 1
    %p128 = scmp.eq.s32.totalorder %s12, 1
    %p129 = scmp.ne.s32.totalorder %s124, %s126
    %p130 = scmp.eq.s32.totalorder %s12, 0
    %p131 = por %p129, %p130
    %p132 = scmp.ne.s32.totalorder %s124, %s126
    %p133 = scmp.eq.s32.totalorder %s17, 1
    %p134 = por %p132, %p133
    %p135 = scmp.ne.s32.totalorder %s126, %s127
    %p136 = scmp.eq.s32.totalorder %s17, 0
    %p137 = por %p135, %p136
    %p138 = scmp.ne.s32.totalorder %s126, %s127
    %p139 = scmp.eq.s32.totalorder %s18, 1
    %p140 = por %p138, %p139
    %p142 = scmp.ne.s32.totalorder %s127, %s141
    %p143 = scmp.eq.s32.totalorder %s18, 0
    %p144 = por %p142, %p143
    %s146 = sadd.s32 %s145, 1
    %p149 = scmp.eq.s32.totalorder %s12, 1
    %p150 = scmp.ne.s32.totalorder %s145, %s147
    %p151 = scmp.eq.s32.totalorder %s12, 0
    %p152 = por %p150, %p151
    %p153 = scmp.ne.s32.totalorder %s145, %s147
    %p154 = scmp.eq.s32.totalorder %s17, 1
    %p155 = por %p153, %p154
    %p156 = scmp.ne.s32.totalorder %s147, %s148
    %p157 = scmp.eq.s32.totalorder %s17, 0
    %p158 = por %p156, %p157
    %p159 = scmp.ne.s32.totalorder %s147, %s148
    %p160 = scmp.eq.s32.totalorder %s18, 1
    %p161 = por %p159, %p160
    %p163 = scmp.ne.s32.totalorder %s148, %s162
    %p164 = scmp.eq.s32.totalorder %s18, 0
    %p165 = por %p163, %p164
    %s166 = ssub.s32 %s12, %s19
    %p167 = scmp.eq.s32.totalorder %s166, 0
    %s169 = sadd.s32 %s168, 1
    %s170 = scalar_select %p167, %s168, %s169
    %p173 = pneg %p167
    %p174 = scmp.eq.s32.totalorder %s12, 1
    %p175 = por %p173, %p174
    %p176 = scmp.ne.s32.totalorder %s168, %s171
    %p177 = scmp.eq.s32.totalorder %s12, 0
    %p178 = por %p176, %p177
    %p179 = scmp.ne.s32.totalorder %s168, %s171
    %p180 = scmp.eq.s32.totalorder %s17, 1
    %p181 = por %p179, %p180
    %p182 = scmp.ne.s32.totalorder %s171, %s172
    %p183 = scmp.eq.s32.totalorder %s17, 0
    %p184 = por %p182, %p183
    %p185 = scmp.ne.s32.totalorder %s171, %s172
    %p186 = scmp.eq.s32.totalorder %s18, 1
    %p187 = por %p185, %p186
    %p189 = scmp.ne.s32.totalorder %s172, %s188
    %p190 = scmp.eq.s32.totalorder %s18, 0
    %p191 = por %p189, %p190
    %p192 = scmp.le.s32.totalorder 1, %s12
    %p193 = scmp.lt.s32.totalorder %s12, 3
    %p194 = pnand %p192, %p193
    %p195 = pneg %p194
    // Predicated region
    $region9: #{full_model_forward.11} parent=5 // pred_check
      _
    $region10: #{full_model_forward.11} parent=5 // pred_check_branch
      %197 = sbr.rel (%p194) target = $region12
    $region11: #{full_model_forward.11} parent=5 // pred_region
      %s198 = ssub.s32 %s12, 1
      // Predicated region
      $region13: #{full_model_forward.11} parent=11 // pred_check
        %p199 = pneg %p137
      $region14: #{full_model_forward.11} parent=11 // pred_check_branch
        %201 = sbr.rel (%p199) target = $region16
      $region15: #{full_model_forward.11} parent=11 // pred_region
        _
      $region16: #{full_model_forward.11} parent=11 // pred_fallthru
        _
      // Predicated region
      $region17: #{full_model_forward.11} parent=11 // pred_check
        %p202 = pneg %p158
      $region18: #{full_model_forward.11} parent=11 // pred_check_branch
        %204 = sbr.rel (%p202) target = $region20
      $region19: #{full_model_forward.11} parent=11 // pred_region
        _
      $region20: #{full_model_forward.11} parent=11 // pred_fallthru
        _
    $region12: #{full_model_forward.11} parent=5 // pred_fallthru
      _
    %p205 = scmp.lt.s32.totalorder %s12, 2
    // Predicated region
    $region21: #{full_model_forward.11} parent=5 // pred_check
      %p206 = pneg %p205
    $region22: #{full_model_forward.11} parent=5 // pred_check_branch
      %208 = sbr.rel (%p206) target = $region24
    $region23: #{full_model_forward.11} parent=5 // pred_region
      // Predicated region
      $region25: #{full_model_forward.11} parent=23 // pred_check
        %p209 = pneg %p32
      $region26: #{full_model_forward.11} parent=23 // pred_check_branch
        %211 = sbr.rel (%p209) target = $region28
      $region27: #{full_model_forward.11} parent=23 // pred_region
        %p212 = scmp.lt.s32.totalorder %s12, 1
        %s213 = scalar_select %p212, %s12, 1
        %s214 = smul.addr %s213, 26
        %s215 = smul.addr %s214, 4
        %s216 = scalar_lea.vmem %s0, %s215
      $region28: #{full_model_forward.11} parent=23 // pred_fallthru
        _
      // Predicated region
      $region29: #{full_model_forward.11} parent=23 // pred_check
        %p217 = pneg %p58
      $region30: #{full_model_forward.11} parent=23 // pred_check_branch
        %219 = sbr.rel (%p217) target = $region32
      $region31: #{full_model_forward.11} parent=23 // pred_region
        %p220 = scmp.lt.s32.totalorder %s12, 1
        %s221 = scalar_select %p220, %s12, 1
        %s222 = smul.addr %s221, 26
        %s223 = smul.addr %s222, 4
        %s224 = scalar_lea.vmem %s1, %s223
      $region32: #{full_model_forward.11} parent=23 // pred_fallthru
        _
      // Predicated region
      $region33: #{full_model_forward.11} parent=23 // pred_check
        %p225 = pneg %p84
      $region34: #{full_model_forward.11} parent=23 // pred_check_branch
        %227 = sbr.rel (%p225) target = $region36
      $region35: #{full_model_forward.11} parent=23 // pred_region
        %p228 = scmp.lt.s32.totalorder %s12, 1
        %s229 = scalar_select %p228, %s12, 1
        %s230 = smul.addr %s229, 26
        %s231 = smul.addr %s230, 4
        %s232 = scalar_lea.vmem %s2, %s231
      $region36: #{full_model_forward.11} parent=23 // pred_fallthru
        _
      // Predicated region
      $region37: #{full_model_forward.11} parent=23 // pred_check
        %p233 = pneg %p110
      $region38: #{full_model_forward.11} parent=23 // pred_check_branch
        %235 = sbr.rel (%p233) target = $region40
      $region39: #{full_model_forward.11} parent=23 // pred_region
        %p236 = scmp.lt.s32.totalorder %s12, 1
        %s237 = scalar_select %p236, %s12, 1
        %s238 = smul.addr %s237, 26
        %s239 = smul.addr %s238, 4
        %s240 = scalar_lea.vmem %s3, %s239
      $region40: #{full_model_forward.11} parent=23 // pred_fallthru
        _
    $region24: #{full_model_forward.11} parent=5 // pred_fallthru
      _
    %p241 = scmp.le.s32.totalorder 1, %s12
    %p242 = scmp.lt.s32.totalorder %s12, 3
    %p243 = pnand %p241, %p242
    %p244 = pneg %p243
    // Predicated region
    $region41: #{full_model_forward.11} parent=5 // pred_check
      _
    $region42: #{full_model_forward.11} parent=5 // pred_check_branch
      %246 = sbr.rel (%p243) target = $region44
    $region43: #{full_model_forward.11} parent=5 // pred_region
      %s247 = ssub.s32 %s12, 1
      %p248 = scmp.lt.s32.totalorder %s17, 1
      %s249 = scalar_select %p248, %s17, 1
      %s250 = smul.addr %s249, 26
      %s251 = smul.addr %s250, 4
      %s252 = scalar_lea.vmem %s0, %s251
      %p253 = pneg %p38
      %p254 = pneg %p35
      %p255 = scmp.lt.s32.totalorder %s17, 1
      %s256 = scalar_select %p255, %s17, 1
      %s257 = smul.addr %s256, 26
      %s258 = smul.addr %s257, 4
      %s259 = scalar_lea.vmem %s1, %s258
      %p260 = pneg %p64
      %p261 = pneg %p61
      %p262 = scmp.lt.s32.totalorder %s17, 1
      %s263 = scalar_select %p262, %s17, 1
      %s264 = smul.addr %s263, 26
      %s265 = smul.addr %s264, 4
      %s266 = scalar_lea.vmem %s2, %s265
      %p267 = pneg %p90
      %p268 = pneg %p87
      %p269 = scmp.lt.s32.totalorder %s17, 1
      %s270 = scalar_select %p269, %s17, 1
      %s271 = smul.addr %s270, 26
      %s272 = smul.addr %s271, 4
      %s273 = scalar_lea.vmem %s3, %s272
      %p274 = pneg %p116
      %p275 = pneg %p113
      %p276 = pneg %p137
      %p277 = pneg %p134
      %p278 = pneg %p158
      %p279 = pneg %p155
      %p280 = pneg %p184
      %p281 = pneg %p181
      %p282 = scmp.lt.s32.totalorder %s17, 1
      %s283 = scalar_select %p282, %s17, 1
      %s284 = smul.addr %s283, 2
      %s285 = smul.addr %s284, 4
      %s286 = scalar_lea.vmem %s6, %s285
      %p287 = scmp.lt.s32.totalorder %s17, 1
      %s288 = scalar_select %p287, %s17, 1
      %s289 = smul.addr %s288, 26
      %s290 = smul.addr %s289, 4
      %s291 = scalar_lea.vmem %s0, %s290
      %p292 = scmp.lt.s32.totalorder %s17, 1
      %s293 = scalar_select %p292, %s17, 1
      %s294 = smul.addr %s293, 26
      %s295 = smul.addr %s294, 4
      %s296 = scalar_lea.vmem %s1, %s295
      %p297 = scmp.lt.s32.totalorder %s17, 1
      %s298 = scalar_select %p297, %s17, 1
      %s299 = smul.addr %s298, 26
      %s300 = smul.addr %s299, 4
      %s301 = scalar_lea.vmem %s2, %s300
      %p302 = scmp.lt.s32.totalorder %s17, 1
      %s303 = scalar_select %p302, %s17, 1
      %s304 = smul.addr %s303, 26
      %s305 = smul.addr %s304, 4
      %s306 = scalar_lea.vmem %s3, %s305
      %p307 = scmp.lt.s32.totalorder %s17, 1
      %s308 = scalar_select %p307, %s17, 1
      %s309 = smul.addr %s308, 2
      %s310 = smul.addr %s309, 4
      %s311 = scalar_lea.vmem %s6, %s310
      %v313 = vld [vmem:[%s4] sm:$0x7]
      %v314 = vld [vmem:[%s291] sm:$0xff]
      %v315 = vld [vmem:[%s291 + $0x8] sm:$0xff]
      %v316 = vld [vmem:[%s291 + $0x10] sm:$0xff]
      %v317 = vld [vmem:[%s291 + $0x18] sm:$0xff]
      %v318 = vld [vmem:[%s291 + $0x20] sm:$0xff]
      %v319 = vld [vmem:[%s291 + $0x28] sm:$0xff]
      %v320 = vld [vmem:[%s291 + $0x30] sm:$0xff]
      %v321 = vld [vmem:[%s291 + $0x38] sm:$0xff]
      %v322 = vld [vmem:[%s291 + $0x40] sm:$0xff]
      %v323 = vld [vmem:[%s291 + $0x48] sm:$0xff]
      %v324 = vld [vmem:[%s291 + $0x50] sm:$0xff]
      %v325 = vld [vmem:[%s291 + $0x58] sm:$0xff]
      %v326 = vld [vmem:[%s291 + $0x60] sm:$0x33]
      %v340 = vunpack.c.l.b16 %v314
      %v341 = vunpack.c.h.b16 %v314
      %v342 = vunpack.c.l.b16 %v315
      %v343 = vunpack.c.h.b16 %v315
      %v344 = vunpack.c.l.b16 %v316
      %v345 = vunpack.c.h.b16 %v316
      %v346 = vunpack.c.l.b16 %v317
      %v347 = vunpack.c.h.b16 %v317
      %v348 = vunpack.c.l.b16 %v318
      %v349 = vunpack.c.h.b16 %v318
      %v350 = vunpack.c.l.b16 %v319
      %v351 = vunpack.c.h.b16 %v319
      %v352 = vunpack.c.l.b16 %v320
      %v353 = vunpack.c.h.b16 %v320
      %v354 = vunpack.c.l.b16 %v321
      %v355 = vunpack.c.h.b16 %v321
      %v356 = vunpack.c.l.b16 %v322
      %v357 = vunpack.c.h.b16 %v322
      %v358 = vunpack.c.l.b16 %v323
      %v359 = vunpack.c.h.b16 %v323
      %v360 = vunpack.c.l.b16 %v324
      %v361 = vunpack.c.h.b16 %v324
      %v362 = vunpack.c.l.b16 %v325
      %v363 = vunpack.c.h.b16 %v325
      %v364 = vunpack.c.l.b16 %v326
      %v365 = vunpack.c.h.b16 %v326
      %v366 = vpack.c.b16 %v342, %v340
      %v367 = vpack.c.b16 %v343, %v341
      %v368 = vpack.c.b16 %v346, %v344
      %v369 = vpack.c.b16 %v347, %v345
      %v370 = vpack.c.b16 %v350, %v348
      %v371 = vpack.c.b16 %v351, %v349
      %v372 = vpack.c.b16 %v354, %v352
      %v373 = vpack.c.b16 %v355, %v353
      %v374 = vpack.c.b16 %v358, %v356
      %v375 = vpack.c.b16 %v359, %v357
      %v376 = vpack.c.b16 %v362, %v360
      %v377 = vpack.c.b16 %v363, %v361
      %v378 = vpack.c.b16 %v364, %v364
      %v379 = vpack.c.b16 %v365, %v365
      %vm392 = vcmask 818176
      %v394 = vsel %vm392, %v313, 0
      %vm396 = vcmask 1041408
      %v398 = vsel %vm396, %v378, 0
      %v401 = vsel %vm396, %v379, 0
      %403 = vmatprep.subr.bf16.mxu0 0
      %404 = vmatpush1.bf16.msra.mxu0 0
      %405 = vmatprep.subr.bf16.mxu0 %v401
      %406 = vmatpush1.bf16.msra.mxu0 %v398
      %407 = vmatprep.subr.bf16.mxu0 %v377
      %408 = vmatpush1.bf16.msra.mxu0 %v376
      %409 = vmatprep.subr.bf16.mxu0 %v375
      %410 = vmatpush1.bf16.msra.mxu0 %v374
      %411 = vmatprep.subr.bf16.mxu0 %v373
      %412 = vmatpush1.bf16.msra.mxu0 %v372
      %413 = vmatprep.subr.bf16.mxu0 %v371
      %414 = vmatpush1.bf16.msra.mxu0 %v370
      %415 = vmatprep.subr.bf16.mxu0 %v369
      %416 = vmatpush1.bf16.msra.mxu0 %v368
      %417 = vmatprep.subr.bf16.mxu0 %v367
      %418 = vmatpush1.bf16.msra.mxu0 %v366
      %419 = vmatprep.subr.bf16.mxu0 0
      %420 = vmatpush2.bf16.msra.mxu0 0
      %421 = vmatprep.subr.bf16.mxu0 0
      %422 = vmatpush2.bf16.msra.mxu0 0
      %423 = vmatprep.subr.bf16.mxu0 0
      %424 = vmatpush2.bf16.msra.mxu0 0
      %425 = vmatprep.subr.bf16.mxu0 0
      %426 = vmatpush2.bf16.msra.mxu0 0
      %427 = vmatprep.subr.bf16.mxu0 0
      %428 = vmatpush2.bf16.msra.mxu0 0
      %429 = vmatprep.subr.bf16.mxu0 0
      %430 = vmatpush2.bf16.msra.mxu0 0
      %431 = vmatprep.subr.bf16.mxu0 0
      %432 = vmatpush2.bf16.msra.mxu0 0
      %433 = vmatprep.subr.bf16.mxu0 0
      %434 = vmatpush2.bf16.msra.mxu0 0
      %435 = vmatprep.mubr.bf16.mxu0 0
      %436 = vmatmul.mubr.bf16.gmra.mxu0 %v394
      %v437 = vpop.f32.mrf.mxu0
      %v438 = vadd.f32 0.0, %v437
      %v439 = vpop.f32.mrf.mxu0
      %v440 = vadd.f32 0.0, %v439
      %v441 = vpop.f32.mrf.mxu0
      %v442 = vpop.f32.mrf.mxu0
      %443 = vdwg.mxu0
      %v444 = vld [vmem:[%s296] sm:$0xff]
      %v445 = vld [vmem:[%s296 + $0x8] sm:$0xff]
      %v446 = vld [vmem:[%s296 + $0x10] sm:$0xff]
      %v447 = vld [vmem:[%s296 + $0x18] sm:$0xff]
      %v448 = vld [vmem:[%s296 + $0x20] sm:$0xff]
      %v449 = vld [vmem:[%s296 + $0x28] sm:$0xff]
      %v450 = vld [vmem:[%s296 + $0x30] sm:$0xff]
      %v451 = vld [vmem:[%s296 + $0x38] sm:$0xff]
      %v452 = vld [vmem:[%s296 + $0x40] sm:$0xff]
      %v453 = vld [vmem:[%s296 + $0x48] sm:$0xff]
      %v454 = vld [vmem:[%s296 + $0x50] sm:$0xff]
      %v455 = vld [vmem:[%s296 + $0x58] sm:$0xff]
      %v456 = vld [vmem:[%s296 + $0x60] sm:$0x33]
      %v470 = vunpack.c.l.b16 %v444
      %v471 = vunpack.c.h.b16 %v444
      %v472 = vunpack.c.l.b16 %v445
      %v473 = vunpack.c.h.b16 %v445
      %v474 = vunpack.c.l.b16 %v446
      %v475 = vunpack.c.h.b16 %v446
      %v476 = vunpack.c.l.b16 %v447
      %v477 = vunpack.c.h.b16 %v447
      %v478 = vunpack.c.l.b16 %v448
      %v479 = vunpack.c.h.b16 %v448
      %v480 = vunpack.c.l.b16 %v449
      %v481 = vunpack.c.h.b16 %v449
      %v482 = vunpack.c.l.b16 %v450
      %v483 = vunpack.c.h.b16 %v450
      %v484 = vunpack.c.l.b16 %v451
      %v485 = vunpack.c.h.b16 %v451
      %v486 = vunpack.c.l.b16 %v452
      %v487 = vunpack.c.h.b16 %v452
      %v488 = vunpack.c.l.b16 %v453
      %v489 = vunpack.c.h.b16 %v453
      %v490 = vunpack.c.l.b16 %v454
      %v491 = vunpack.c.h.b16 %v454
      %v492 = vunpack.c.l.b16 %v455
      %v493 = vunpack.c.h.b16 %v455
      %v494 = vunpack.c.l.b16 %v456
      %v495 = vunpack.c.h.b16 %v456
      %v496 = vpack.c.b16 %v472, %v470
      %v497 = vpack.c.b16 %v473, %v471
      %v498 = vpack.c.b16 %v476, %v474
      %v499 = vpack.c.b16 %v477, %v475
      %v500 = vpack.c.b16 %v480, %v478
      %v501 = vpack.c.b16 %v481, %v479
      %v502 = vpack.c.b16 %v484, %v482
      %v503 = vpack.c.b16 %v485, %v483
      %v504 = vpack.c.b16 %v488, %v486
      %v505 = vpack.c.b16 %v489, %v487
      %v506 = vpack.c.b16 %v492, %v490
      %v507 = vpack.c.b16 %v493, %v491
      %v508 = vpack.c.b16 %v494, %v494
      %v509 = vpack.c.b16 %v495, %v495
      %v523 = vsel %vm396, %v508, 0
      %v526 = vsel %vm396, %v509, 0
      %528 = vmatprep.subr.bf16.mxu0 0
      %529 = vmatpush1.bf16.msra.mxu0 0
      %530 = vmatprep.subr.bf16.mxu0 %v526
      %531 = vmatpush1.bf16.msra.mxu0 %v523
      %532 = vmatprep.subr.bf16.mxu0 %v507
      %533 = vmatpush1.bf16.msra.mxu0 %v506
      %534 = vmatprep.subr.bf16.mxu0 %v505
      %535 = vmatpush1.bf16.msra.mxu0 %v504
      %536 = vmatprep.subr.bf16.mxu0 %v503
      %537 = vmatpush1.bf16.msra.mxu0 %v502
      %538 = vmatprep.subr.bf16.mxu0 %v501
      %539 = vmatpush1.bf16.msra.mxu0 %v500
      %540 = vmatprep.subr.bf16.mxu0 %v499
      %541 = vmatpush1.bf16.msra.mxu0 %v498
      %542 = vmatprep.subr.bf16.mxu0 %v497
      %543 = vmatpush1.bf16.msra.mxu0 %v496
      %544 = vmatprep.subr.bf16.mxu0 0
      %545 = vmatpush2.bf16.msra.mxu0 0
      %546 = vmatprep.subr.bf16.mxu0 0
      %547 = vmatpush2.bf16.msra.mxu0 0
      %548 = vmatprep.subr.bf16.mxu0 0
      %549 = vmatpush2.bf16.msra.mxu0 0
      %550 = vmatprep.subr.bf16.mxu0 0
      %551 = vmatpush2.bf16.msra.mxu0 0
      %552 = vmatprep.subr.bf16.mxu0 0
      %553 = vmatpush2.bf16.msra.mxu0 0
      %554 = vmatprep.subr.bf16.mxu0 0
      %555 = vmatpush2.bf16.msra.mxu0 0
      %556 = vmatprep.subr.bf16.mxu0 0
      %557 = vmatpush2.bf16.msra.mxu0 0
      %558 = vmatprep.subr.bf16.mxu0 0
      %559 = vmatpush2.bf16.msra.mxu0 0
      %560 = vmatprep.mubr.bf16.mxu0 0
      %561 = vmatmul.mubr.bf16.gmra.mxu0 %v394
      %v562 = vpop.f32.mrf.mxu0
      %v563 = vadd.f32 0.0, %v562
      %v564 = vpop.f32.mrf.mxu0
      %v565 = vadd.f32 0.0, %v564
      %v566 = vpop.f32.mrf.mxu0
      %v567 = vpop.f32.mrf.mxu0
      %568 = vdwg.mxu0
      %v569 = vmax.f32 %v438, %v563
      %v570 = vmax.f32 %v440, %v565
      %v571 = vld [vmem:[%s301] sm:$0xff]
      %v572 = vld [vmem:[%s301 + $0x8] sm:$0xff]
      %v573 = vld [vmem:[%s301 + $0x10] sm:$0xff]
      %v574 = vld [vmem:[%s301 + $0x18] sm:$0xff]
      %v575 = vld [vmem:[%s301 + $0x20] sm:$0xff]
      %v576 = vld [vmem:[%s301 + $0x28] sm:$0xff]
      %v577 = vld [vmem:[%s301 + $0x30] sm:$0xff]
      %v578 = vld [vmem:[%s301 + $0x38] sm:$0xff]
      %v579 = vld [vmem:[%s301 + $0x40] sm:$0xff]
      %v580 = vld [vmem:[%s301 + $0x48] sm:$0xff]
      %v581 = vld [vmem:[%s301 + $0x50] sm:$0xff]
      %v582 = vld [vmem:[%s301 + $0x58] sm:$0xff]
      %v583 = vld [vmem:[%s301 + $0x60] sm:$0x33]
      %v597 = vunpack.c.l.b16 %v571
      %v598 = vunpack.c.h.b16 %v571
      %v599 = vunpack.c.l.b16 %v572
      %v600 = vunpack.c.h.b16 %v572
      %v601 = vunpack.c.l.b16 %v573
      %v602 = vunpack.c.h.b16 %v573
      %v603 = vunpack.c.l.b16 %v574
      %v604 = vunpack.c.h.b16 %v574
      %v605 = vunpack.c.l.b16 %v575
      %v606 = vunpack.c.h.b16 %v575
      %v607 = vunpack.c.l.b16 %v576
      %v608 = vunpack.c.h.b16 %v576
      %v609 = vunpack.c.l.b16 %v577
      %v610 = vunpack.c.h.b16 %v577
      %v611 = vunpack.c.l.b16 %v578
      %v612 = vunpack.c.h.b16 %v578
      %v613 = vunpack.c.l.b16 %v579
      %v614 = vunpack.c.h.b16 %v579
      %v615 = vunpack.c.l.b16 %v580
      %v616 = vunpack.c.h.b16 %v580
      %v617 = vunpack.c.l.b16 %v581
      %v618 = vunpack.c.h.b16 %v581
      %v619 = vunpack.c.l.b16 %v582
      %v620 = vunpack.c.h.b16 %v582
      %v621 = vunpack.c.l.b16 %v583
      %v622 = vunpack.c.h.b16 %v583
      %v623 = vpack.c.b16 %v599, %v597
      %v624 = vpack.c.b16 %v600, %v598
      %v625 = vpack.c.b16 %v603, %v601
      %v626 = vpack.c.b16 %v604, %v602
      %v627 = vpack.c.b16 %v607, %v605
      %v628 = vpack.c.b16 %v608, %v606
      %v629 = vpack.c.b16 %v611, %v609
      %v630 = vpack.c.b16 %v612, %v610
      %v631 = vpack.c.b16 %v615, %v613
      %v632 = vpack.c.b16 %v616, %v614
      %v633 = vpack.c.b16 %v619, %v617
      %v634 = vpack.c.b16 %v620, %v618
      %v635 = vpack.c.b16 %v621, %v621
      %v636 = vpack.c.b16 %v622, %v622
      %v650 = vsel %vm396, %v635, 0
      %v653 = vsel %vm396, %v636, 0
      %655 = vmatprep.subr.bf16.mxu0 0
      %656 = vmatpush1.bf16.msra.mxu0 0
      %657 = vmatprep.subr.bf16.mxu0 %v653
      %658 = vmatpush1.bf16.msra.mxu0 %v650
      %659 = vmatprep.subr.bf16.mxu0 %v634
      %660 = vmatpush1.bf16.msra.mxu0 %v633
      %661 = vmatprep.subr.bf16.mxu0 %v632
      %662 = vmatpush1.bf16.msra.mxu0 %v631
      %663 = vmatprep.subr.bf16.mxu0 %v630
      %664 = vmatpush1.bf16.msra.mxu0 %v629
      %665 = vmatprep.subr.bf16.mxu0 %v628
      %666 = vmatpush1.bf16.msra.mxu0 %v627
      %667 = vmatprep.subr.bf16.mxu0 %v626
      %668 = vmatpush1.bf16.msra.mxu0 %v625
      %669 = vmatprep.subr.bf16.mxu0 %v624
      %670 = vmatpush1.bf16.msra.mxu0 %v623
      %671 = vmatprep.subr.bf16.mxu0 0
      %672 = vmatpush2.bf16.msra.mxu0 0
      %673 = vmatprep.subr.bf16.mxu0 0
      %674 = vmatpush2.bf16.msra.mxu0 0
      %675 = vmatprep.subr.bf16.mxu0 0
      %676 = vmatpush2.bf16.msra.mxu0 0
      %677 = vmatprep.subr.bf16.mxu0 0
      %678 = vmatpush2.bf16.msra.mxu0 0
      %679 = vmatprep.subr.bf16.mxu0 0
      %680 = vmatpush2.bf16.msra.mxu0 0
      %681 = vmatprep.subr.bf16.mxu0 0
      %682 = vmatpush2.bf16.msra.mxu0 0
      %683 = vmatprep.subr.bf16.mxu0 0
      %684 = vmatpush2.bf16.msra.mxu0 0
      %685 = vmatprep.subr.bf16.mxu0 0
      %686 = vmatpush2.bf16.msra.mxu0 0
      %687 = vmatprep.mubr.bf16.mxu0 0
      %688 = vmatmul.mubr.bf16.gmra.mxu0 %v394
      %v689 = vpop.f32.mrf.mxu0
      %v690 = vadd.f32 0.0, %v689
      %v691 = vpop.f32.mrf.mxu0
      %v692 = vadd.f32 0.0, %v691
      %v693 = vpop.f32.mrf.mxu0
      %v694 = vpop.f32.mrf.mxu0
      %695 = vdwg.mxu0
      %v696 = vld [vmem:[%s306] sm:$0xff]
      %v697 = vld [vmem:[%s306 + $0x8] sm:$0xff]
      %v698 = vld [vmem:[%s306 + $0x10] sm:$0xff]
      %v699 = vld [vmem:[%s306 + $0x18] sm:$0xff]
      %v700 = vld [vmem:[%s306 + $0x20] sm:$0xff]
      %v701 = vld [vmem:[%s306 + $0x28] sm:$0xff]
      %v702 = vld [vmem:[%s306 + $0x30] sm:$0xff]
      %v703 = vld [vmem:[%s306 + $0x38] sm:$0xff]
      %v704 = vld [vmem:[%s306 + $0x40] sm:$0xff]
      %v705 = vld [vmem:[%s306 + $0x48] sm:$0xff]
      %v706 = vld [vmem:[%s306 + $0x50] sm:$0xff]
      %v707 = vld [vmem:[%s306 + $0x58] sm:$0xff]
      %v708 = vld [vmem:[%s306 + $0x60] sm:$0x33]
      %v722 = vunpack.c.l.b16 %v696
      %v723 = vunpack.c.h.b16 %v696
      %v724 = vunpack.c.l.b16 %v697
      %v725 = vunpack.c.h.b16 %v697
      %v726 = vunpack.c.l.b16 %v698
      %v727 = vunpack.c.h.b16 %v698
      %v728 = vunpack.c.l.b16 %v699
      %v729 = vunpack.c.h.b16 %v699
      %v730 = vunpack.c.l.b16 %v700
      %v731 = vunpack.c.h.b16 %v700
      %v732 = vunpack.c.l.b16 %v701
      %v733 = vunpack.c.h.b16 %v701
      %v734 = vunpack.c.l.b16 %v702
      %v735 = vunpack.c.h.b16 %v702
      %v736 = vunpack.c.l.b16 %v703
      %v737 = vunpack.c.h.b16 %v703
      %v738 = vunpack.c.l.b16 %v704
      %v739 = vunpack.c.h.b16 %v704
      %v740 = vunpack.c.l.b16 %v705
      %v741 = vunpack.c.h.b16 %v705
      %v742 = vunpack.c.l.b16 %v706
      %v743 = vunpack.c.h.b16 %v706
      %v744 = vunpack.c.l.b16 %v707
      %v745 = vunpack.c.h.b16 %v707
      %v746 = vunpack.c.l.b16 %v708
      %v747 = vunpack.c.h.b16 %v708
      %v748 = vpack.c.b16 %v724, %v722
      %v749 = vpack.c.b16 %v725, %v723
      %v750 = vpack.c.b16 %v728, %v726
      %v751 = vpack.c.b16 %v729, %v727
      %v752 = vpack.c.b16 %v732, %v730
      %v753 = vpack.c.b16 %v733, %v731
      %v754 = vpack.c.b16 %v736, %v734
      %v755 = vpack.c.b16 %v737, %v735
      %v756 = vpack.c.b16 %v740, %v738
      %v757 = vpack.c.b16 %v741, %v739
      %v758 = vpack.c.b16 %v744, %v742
      %v759 = vpack.c.b16 %v745, %v743
      %v760 = vpack.c.b16 %v746, %v746
      %v761 = vpack.c.b16 %v747, %v747
      %v775 = vsel %vm396, %v760, 0
      %v778 = vsel %vm396, %v761, 0
      %780 = vmatprep.subr.bf16.mxu0 0
      %781 = vmatpush1.bf16.msra.mxu0 0
      %782 = vmatprep.subr.bf16.mxu0 %v778
      %783 = vmatpush1.bf16.msra.mxu0 %v775
      %784 = vmatprep.subr.bf16.mxu0 %v759
      %785 = vmatpush1.bf16.msra.mxu0 %v758
      %786 = vmatprep.subr.bf16.mxu0 %v757
      %787 = vmatpush1.bf16.msra.mxu0 %v756
      %788 = vmatprep.subr.bf16.mxu0 %v755
      %789 = vmatpush1.bf16.msra.mxu0 %v754
      %790 = vmatprep.subr.bf16.mxu0 %v753
      %791 = vmatpush1.bf16.msra.mxu0 %v752
      %792 = vmatprep.subr.bf16.mxu0 %v751
      %793 = vmatpush1.bf16.msra.mxu0 %v750
      %794 = vmatprep.subr.bf16.mxu0 %v749
      %795 = vmatpush1.bf16.msra.mxu0 %v748
      %796 = vmatprep.subr.bf16.mxu0 0
      %797 = vmatpush2.bf16.msra.mxu0 0
      %798 = vmatprep.subr.bf16.mxu0 0
      %799 = vmatpush2.bf16.msra.mxu0 0
      %800 = vmatprep.subr.bf16.mxu0 0
      %801 = vmatpush2.bf16.msra.mxu0 0
      %802 = vmatprep.subr.bf16.mxu0 0
      %803 = vmatpush2.bf16.msra.mxu0 0
      %804 = vmatprep.subr.bf16.mxu0 0
      %805 = vmatpush2.bf16.msra.mxu0 0
      %806 = vmatprep.subr.bf16.mxu0 0
      %807 = vmatpush2.bf16.msra.mxu0 0
      %808 = vmatprep.subr.bf16.mxu0 0
      %809 = vmatpush2.bf16.msra.mxu0 0
      %810 = vmatprep.subr.bf16.mxu0 0
      %811 = vmatpush2.bf16.msra.mxu0 0
      %812 = vmatprep.mubr.bf16.mxu0 0
      %813 = vmatmul.mubr.bf16.gmra.mxu0 %v394
      %v814 = vpop.f32.mrf.mxu0
      %v815 = vadd.f32 0.0, %v814
      %v816 = vpop.f32.mrf.mxu0
      %v817 = vadd.f32 0.0, %v816
      %v818 = vpop.f32.mrf.mxu0
      %v819 = vpop.f32.mrf.mxu0
      %820 = vdwg.mxu0
      %v821 = vmax.f32 %v690, %v815
      %v822 = vmax.f32 %v692, %v817
      %v823 = vmax.f32 %v569, %v821
      %v824 = vmax.f32 %v570, %v822
      %v825 = vld [vmem:[%s5] sm:$0x3f]
      %827 = vset.pattern.permute.xlu0 0
      %828 = vperm.xlu0 %827, %v825
      %v829 = vpop.permute.xlu0 %828
      %v831 = vadd.f32 %v823, %v829
      %v832 = vadd.f32 %v824, %v829
      %v833 = vtanh.pop %v831
      %v834 = vtanh.pop %v832
      %v835 = vpack.c.bf16 %v833, %v833
      %v836 = vpack.c.bf16 %v834, %v834
      %v839 = vunpack.c.l.b16 %v835
      %v840 = vunpack.c.l.b16 %v836
      %v841 = vpack.c.b16 %v840, %v839
      %vm843 = vcmask 1042432
      %vm844 = vcmask 522244
      %vm845 = vmor %vm844, %vm843
      %846 = vst.msk [vmem:[%s311] sm:$0x77] %vm845, %v841
      %p847 = scmp.lt.s32.totalorder %s17, 1
      %s848 = scalar_select %p847, %s17, 1
      %s849 = smul.addr %s848, 2
      %s850 = smul.addr %s849, 4
      %s851 = scalar_lea.vmem %s6, %s850
      // Predicated region
      $region45: #{full_model_forward.11} parent=43 // pred_check
        %p852 = pneg %p181
      $region46: #{full_model_forward.11} parent=43 // pred_check_branch
        %854 = sbr.rel (%p852) target = $region48
      $region47: #{full_model_forward.11} parent=43 // pred_region
        _
      $region48: #{full_model_forward.11} parent=43 // pred_fallthru
        _
    $region44: #{full_model_forward.11} parent=5 // pred_fallthru
      _
    %p855 = scmp.le.s32.totalorder 2, %s12
    // Predicated region
    $region49: #{full_model_forward.11} parent=5 // pred_check
      %p856 = pneg %p855
    $region50: #{full_model_forward.11} parent=5 // pred_check_branch
      %858 = sbr.rel (%p856) target = $region52
    $region51: #{full_model_forward.11} parent=5 // pred_region
      %s859 = ssub.s32 %s12, 2
      // Predicated region
      $region53: #{full_model_forward.11} parent=51 // pred_check
        %p860 = pneg %p187
      $region54: #{full_model_forward.11} parent=51 // pred_check_branch
        %862 = sbr.rel (%p860) target = $region56
      $region55: #{full_model_forward.11} parent=51 // pred_region
        %p863 = scmp.lt.s32.totalorder %s18, 1
        %s864 = scalar_select %p863, %s18, 1
        %s865 = smul.addr %s864, 2
        %s866 = smul.addr %s865, 4
        %s867 = scalar_lea.vmem %s6, %s866
      $region56: #{full_model_forward.11} parent=51 // pred_fallthru
        _
    $region52: #{full_model_forward.11} parent=5 // pred_fallthru
      _
  $region6: #{full_model_forward.11} parent=0 // loop_footer
    %s16 = sadd.s32 1, %s12
  $region7: #{full_model_forward.11} parent=0 // loop_footer_branch
    %11 = sbr.rel target = $region3
  $region8: #{full_model_forward.11} parent=0 // loop_exit
    _

// kernel: full_model_forward.12
$region0: #{full_model_forward.12}
  #allocation0 [shape = 'u32[]', space=smem, size = 0x4, offset = 0x4, fixed_abs, tag = 'smem constant byte address 0x4 - core index']
  #allocation1 [shape = 'u32[144,128]{1,0:T(1,128)}', space=vmem, size = 0x12000, scoped, tag = 'internal scratch']
  %s0 = inlined_call_operand.vmem [shape: bf16[2,150,80], index: 0, kind: input, shape index: {}]
  %s1 = inlined_call_operand.vmem [shape: bf16[2,150,80], index: 1, kind: input, shape index: {}]
  %s2 = inlined_call_operand.vmem [shape: bf16[2,150,80], index: 2, kind: input, shape index: {}]
  %s3 = inlined_call_operand.vmem [shape: bf16[2,150,80], index: 3, kind: input, shape index: {}]
  %s4 = inlined_call_operand.vmem [shape: bf16[8,150], index: 4, kind: input, shape index: {}]
  %s5 = inlined_call_operand.vmem [shape: f32[8,1], index: 5, kind: input, shape index: {}]
  %s6 = inlined_call_operand.vmem [shape: bf16[2,8,80], index: 6, kind: output, shape index: {}]
  %s7 = sld [smem:[#allocation0]]
  $region57: #{full_model_forward.12} parent=0
    _
  %s9 = ssub.s32 1, %s7
  %s10 = scalar_select 0, %s9, %s7
  loop: start=0, step=1, limit=4
  $region2: #{full_model_forward.12} parent=0 // loop_pre_header
    _
  $region3: #{full_model_forward.12} parent=0 // loop_header
    %s12 = sphi 0, %s16
    %p13 = scmp.ge.s32.totalorder %s12, 4
    %s22 = sphi 0, %s24
    %s25 = sphi 0, %s22
    %s26 = sphi 0, %s25
    %s42 = sphi 0, %s26
    %s48 = sphi 0, %s50
    %s51 = sphi 0, %s48
    %s52 = sphi 0, %s51
    %s68 = sphi 0, %s52
    %s74 = sphi 0, %s76
    %s77 = sphi 0, %s74
    %s78 = sphi 0, %s77
    %s94 = sphi 0, %s78
    %s100 = sphi 0, %s102
    %s103 = sphi 0, %s100
    %s104 = sphi 0, %s103
    %s120 = sphi 0, %s104
    %s124 = sphi 0, %s124
    %s126 = sphi 0, %s124
    %s127 = sphi 0, %s126
    %s141 = sphi 0, %s127
    %s145 = sphi 0, %s145
    %s147 = sphi 0, %s145
    %s148 = sphi 0, %s147
    %s162 = sphi 0, %s148
    %s168 = sphi 0, %s170
    %s171 = sphi 0, %s168
    %s172 = sphi 0, %s171
    %s188 = sphi 0, %s172
  $region4: #{full_model_forward.12} parent=0 // loop_header_branch
    %15 = sbr.rel (%p13) target = $region8
  $region5: #{full_model_forward.12} parent=0 // loop_body
    %s17 = ssub.s32 %s12, 1
    %s18 = ssub.s32 %s12, 2
    %s19 = sadd.s32 %s12, 1
    %s20 = ssub.s32 %s12, %s19
    %p21 = scmp.eq.s32.totalorder %s20, 0
    %s23 = sadd.s32 %s22, 1
    %s24 = scalar_select %p21, %s22, %s23
    %p27 = pneg %p21
    %p28 = scmp.eq.s32.totalorder %s12, 1
    %p29 = por %p27, %p28
    %p30 = scmp.ne.s32.totalorder %s22, %s25
    %p31 = scmp.eq.s32.totalorder %s12, 0
    %p32 = por %p30, %p31
    %p33 = scmp.ne.s32.totalorder %s22, %s25
    %p34 = scmp.eq.s32.totalorder %s17, 1
    %p35 = por %p33, %p34
    %p36 = scmp.ne.s32.totalorder %s25, %s26
    %p37 = scmp.eq.s32.totalorder %s17, 0
    %p38 = por %p36, %p37
    %p39 = scmp.ne.s32.totalorder %s25, %s26
    %p40 = scmp.eq.s32.totalorder %s18, 1
    %p41 = por %p39, %p40
    %p43 = scmp.ne.s32.totalorder %s26, %s42
    %p44 = scmp.eq.s32.totalorder %s18, 0
    %p45 = por %p43, %p44
    %s46 = ssub.s32 %s12, %s19
    %p47 = scmp.eq.s32.totalorder %s46, 0
    %s49 = sadd.s32 %s48, 1
    %s50 = scalar_select %p47, %s48, %s49
    %p53 = pneg %p47
    %p54 = scmp.eq.s32.totalorder %s12, 1
    %p55 = por %p53, %p54
    %p56 = scmp.ne.s32.totalorder %s48, %s51
    %p57 = scmp.eq.s32.totalorder %s12, 0
    %p58 = por %p56, %p57
    %p59 = scmp.ne.s32.totalorder %s48, %s51
    %p60 = scmp.eq.s32.totalorder %s17, 1
    %p61 = por %p59, %p60
    %p62 = scmp.ne.s32.totalorder %s51, %s52
    %p63 = scmp.eq.s32.totalorder %s17, 0
    %p64 = por %p62, %p63
    %p65 = scmp.ne.s32.totalorder %s51, %s52
    %p66 = scmp.eq.s32.totalorder %s18, 1
    %p67 = por %p65, %p66
    %p69 = scmp.ne.s32.totalorder %s52, %s68
    %p70 = scmp.eq.s32.totalorder %s18, 0
    %p71 = por %p69, %p70
    %s72 = ssub.s32 %s12, %s19
    %p73 = scmp.eq.s32.totalorder %s72, 0
    %s75 = sadd.s32 %s74, 1
    %s76 = scalar_select %p73, %s74, %s75
    %p79 = pneg %p73
    %p80 = scmp.eq.s32.totalorder %s12, 1
    %p81 = por %p79, %p80
    %p82 = scmp.ne.s32.totalorder %s74, %s77
    %p83 = scmp.eq.s32.totalorder %s12, 0
    %p84 = por %p82, %p83
    %p85 = scmp.ne.s32.totalorder %s74, %s77
    %p86 = scmp.eq.s32.totalorder %s17, 1
    %p87 = por %p85, %p86
    %p88 = scmp.ne.s32.totalorder %s77, %s78
    %p89 = scmp.eq.s32.totalorder %s17, 0
    %p90 = por %p88, %p89
    %p91 = scmp.ne.s32.totalorder %s77, %s78
    %p92 = scmp.eq.s32.totalorder %s18, 1
    %p93 = por %p91, %p92
    %p95 = scmp.ne.s32.totalorder %s78, %s94
    %p96 = scmp.eq.s32.totalorder %s18, 0
    %p97 = por %p95, %p96
    %s98 = ssub.s32 %s12, %s19
    %p99 = scmp.eq.s32.totalorder %s98, 0
    %s101 = sadd.s32 %s100, 1
    %s102 = scalar_select %p99, %s100, %s101
    %p105 = pneg %p99
    %p106 = scmp.eq.s32.totalorder %s12, 1
    %p107 = por %p105, %p106
    %p108 = scmp.ne.s32.totalorder %s100, %s103
    %p109 = scmp.eq.s32.totalorder %s12, 0
    %p110 = por %p108, %p109
    %p111 = scmp.ne.s32.totalorder %s100, %s103
    %p112 = scmp.eq.s32.totalorder %s17, 1
    %p113 = por %p111, %p112
    %p114 = scmp.ne.s32.totalorder %s103, %s104
    %p115 = scmp.eq.s32.totalorder %s17, 0
    %p116 = por %p114, %p115
    %p117 = scmp.ne.s32.totalorder %s103, %s104
    %p118 = scmp.eq.s32.totalorder %s18, 1
    %p119 = por %p117, %p118
    %p121 = scmp.ne.s32.totalorder %s104, %s120
    %p122 = scmp.eq.s32.totalorder %s18, 0
    %p123 = por %p121, %p122
    %s125 = sadd.s32 %s124, 1
    %p128 = scmp.eq.s32.totalorder %s12, 1
    %p129 = scmp.ne.s32.totalorder %s124, %s126
    %p130 = scmp.eq.s32.totalorder %s12, 0
    %p131 = por %p129, %p130
    %p132 = scmp.ne.s32.totalorder %s124, %s126
    %p133 = scmp.eq.s32.totalorder %s17, 1
    %p134 = por %p132, %p133
    %p135 = scmp.ne.s32.totalorder %s126, %s127
    %p136 = scmp.eq.s32.totalorder %s17, 0
    %p137 = por %p135, %p136
    %p138 = scmp.ne.s32.totalorder %s126, %s127
    %p139 = scmp.eq.s32.totalorder %s18, 1
    %p140 = por %p138, %p139
    %p142 = scmp.ne.s32.totalorder %s127, %s141
    %p143 = scmp.eq.s32.totalorder %s18, 0
    %p144 = por %p142, %p143
    %s146 = sadd.s32 %s145, 1
    %p149 = scmp.eq.s32.totalorder %s12, 1
    %p150 = scmp.ne.s32.totalorder %s145, %s147
    %p151 = scmp.eq.s32.totalorder %s12, 0
    %p152 = por %p150, %p151
    %p153 = scmp.ne.s32.totalorder %s145, %s147
    %p154 = scmp.eq.s32.totalorder %s17, 1
    %p155 = por %p153, %p154
    %p156 = scmp.ne.s32.totalorder %s147, %s148
    %p157 = scmp.eq.s32.totalorder %s17, 0
    %p158 = por %p156, %p157
    %p159 = scmp.ne.s32.totalorder %s147, %s148
    %p160 = scmp.eq.s32.totalorder %s18, 1
    %p161 = por %p159, %p160
    %p163 = scmp.ne.s32.totalorder %s148, %s162
    %p164 = scmp.eq.s32.totalorder %s18, 0
    %p165 = por %p163, %p164
    %s166 = ssub.s32 %s12, %s19
    %p167 = scmp.eq.s32.totalorder %s166, 0
    %s169 = sadd.s32 %s168, 1
    %s170 = scalar_select %p167, %s168, %s169
    %p173 = pneg %p167
    %p174 = scmp.eq.s32.totalorder %s12, 1
    %p175 = por %p173, %p174
    %p176 = scmp.ne.s32.totalorder %s168, %s171
    %p177 = scmp.eq.s32.totalorder %s12, 0
    %p178 = por %p176, %p177
    %p179 = scmp.ne.s32.totalorder %s168, %s171
    %p180 = scmp.eq.s32.totalorder %s17, 1
    %p181 = por %p179, %p180
    %p182 = scmp.ne.s32.totalorder %s171, %s172
    %p183 = scmp.eq.s32.totalorder %s17, 0
    %p184 = por %p182, %p183
    %p185 = scmp.ne.s32.totalorder %s171, %s172
    %p186 = scmp.eq.s32.totalorder %s18, 1
    %p187 = por %p185, %p186
    %p189 = scmp.ne.s32.totalorder %s172, %s188
    %p190 = scmp.eq.s32.totalorder %s18, 0
    %p191 = por %p189, %p190
    %p192 = scmp.le.s32.totalorder 1, %s12
    %p193 = scmp.lt.s32.totalorder %s12, 3
    %p194 = pnand %p192, %p193
    %p195 = pneg %p194
    // Predicated region
    $region9: #{full_model_forward.12} parent=5 // pred_check
      _
    $region10: #{full_model_forward.12} parent=5 // pred_check_branch
      %197 = sbr.rel (%p194) target = $region12
    $region11: #{full_model_forward.12} parent=5 // pred_region
      %s198 = ssub.s32 %s12, 1
      // Predicated region
      $region13: #{full_model_forward.12} parent=11 // pred_check
        %p199 = pneg %p137
      $region14: #{full_model_forward.12} parent=11 // pred_check_branch
        %201 = sbr.rel (%p199) target = $region16
      $region15: #{full_model_forward.12} parent=11 // pred_region
        _
      $region16: #{full_model_forward.12} parent=11 // pred_fallthru
        _
      // Predicated region
      $region17: #{full_model_forward.12} parent=11 // pred_check
        %p202 = pneg %p158
      $region18: #{full_model_forward.12} parent=11 // pred_check_branch
        %204 = sbr.rel (%p202) target = $region20
      $region19: #{full_model_forward.12} parent=11 // pred_region
        _
      $region20: #{full_model_forward.12} parent=11 // pred_fallthru
        _
    $region12: #{full_model_forward.12} parent=5 // pred_fallthru
      _
    %p205 = scmp.lt.s32.totalorder %s12, 2
    // Predicated region
    $region21: #{full_model_forward.12} parent=5 // pred_check
      %p206 = pneg %p205
    $region22: #{full_model_forward.12} parent=5 // pred_check_branch
      %208 = sbr.rel (%p206) target = $region24
    $region23: #{full_model_forward.12} parent=5 // pred_region
      // Predicated region
      $region25: #{full_model_forward.12} parent=23 // pred_check
        %p209 = pneg %p32
      $region26: #{full_model_forward.12} parent=23 // pred_check_branch
        %211 = sbr.rel (%p209) target = $region28
      $region27: #{full_model_forward.12} parent=23 // pred_region
        %p212 = scmp.lt.s32.totalorder %s12, 1
        %s213 = scalar_select %p212, %s12, 1
        %s214 = smul.addr %s213, 19
        %s215 = smul.addr %s214, 4
        %s216 = scalar_lea.vmem %s0, %s215
      $region28: #{full_model_forward.12} parent=23 // pred_fallthru
        _
      // Predicated region
      $region29: #{full_model_forward.12} parent=23 // pred_check
        %p217 = pneg %p58
      $region30: #{full_model_forward.12} parent=23 // pred_check_branch
        %219 = sbr.rel (%p217) target = $region32
      $region31: #{full_model_forward.12} parent=23 // pred_region
        %p220 = scmp.lt.s32.totalorder %s12, 1
        %s221 = scalar_select %p220, %s12, 1
        %s222 = smul.addr %s221, 19
        %s223 = smul.addr %s222, 4
        %s224 = scalar_lea.vmem %s1, %s223
      $region32: #{full_model_forward.12} parent=23 // pred_fallthru
        _
      // Predicated region
      $region33: #{full_model_forward.12} parent=23 // pred_check
        %p225 = pneg %p84
      $region34: #{full_model_forward.12} parent=23 // pred_check_branch
        %227 = sbr.rel (%p225) target = $region36
      $region35: #{full_model_forward.12} parent=23 // pred_region
        %p228 = scmp.lt.s32.totalorder %s12, 1
        %s229 = scalar_select %p228, %s12, 1
        %s230 = smul.addr %s229, 19
        %s231 = smul.addr %s230, 4
        %s232 = scalar_lea.vmem %s2, %s231
      $region36: #{full_model_forward.12} parent=23 // pred_fallthru
        _
      // Predicated region
      $region37: #{full_model_forward.12} parent=23 // pred_check
        %p233 = pneg %p110
      $region38: #{full_model_forward.12} parent=23 // pred_check_branch
        %235 = sbr.rel (%p233) target = $region40
      $region39: #{full_model_forward.12} parent=23 // pred_region
        %p236 = scmp.lt.s32.totalorder %s12, 1
        %s237 = scalar_select %p236, %s12, 1
        %s238 = smul.addr %s237, 19
        %s239 = smul.addr %s238, 4
        %s240 = scalar_lea.vmem %s3, %s239
      $region40: #{full_model_forward.12} parent=23 // pred_fallthru
        _
    $region24: #{full_model_forward.12} parent=5 // pred_fallthru
      _
    %p241 = scmp.le.s32.totalorder 1, %s12
    %p242 = scmp.lt.s32.totalorder %s12, 3
    %p243 = pnand %p241, %p242
    %p244 = pneg %p243
    // Predicated region
    $region41: #{full_model_forward.12} parent=5 // pred_check
      _
    $region42: #{full_model_forward.12} parent=5 // pred_check_branch
      %246 = sbr.rel (%p243) target = $region44
    $region43: #{full_model_forward.12} parent=5 // pred_region
      %s247 = ssub.s32 %s12, 1
      %p248 = scmp.lt.s32.totalorder %s17, 1
      %s249 = scalar_select %p248, %s17, 1
      %s250 = smul.addr %s249, 19
      %s251 = smul.addr %s250, 4
      %s252 = scalar_lea.vmem %s0, %s251
      %p253 = pneg %p38
      %p254 = pneg %p35
      %p255 = scmp.lt.s32.totalorder %s17, 1
      %s256 = scalar_select %p255, %s17, 1
      %s257 = smul.addr %s256, 19
      %s258 = smul.addr %s257, 4
      %s259 = scalar_lea.vmem %s1, %s258
      %p260 = pneg %p64
      %p261 = pneg %p61
      %p262 = scmp.lt.s32.totalorder %s17, 1
      %s263 = scalar_select %p262, %s17, 1
      %s264 = smul.addr %s263, 19
      %s265 = smul.addr %s264, 4
      %s266 = scalar_lea.vmem %s2, %s265
      %p267 = pneg %p90
      %p268 = pneg %p87
      %p269 = scmp.lt.s32.totalorder %s17, 1
      %s270 = scalar_select %p269, %s17, 1
      %s271 = smul.addr %s270, 19
      %s272 = smul.addr %s271, 4
      %s273 = scalar_lea.vmem %s3, %s272
      %p274 = pneg %p116
      %p275 = pneg %p113
      %p276 = pneg %p137
      %p277 = pneg %p134
      %p278 = pneg %p158
      %p279 = pneg %p155
      %p280 = pneg %p184
      %p281 = pneg %p181
      %p282 = scmp.lt.s32.totalorder %s17, 1
      %s283 = scalar_select %p282, %s17, 1
      %s284 = smul.addr %s283, 4
      %s285 = scalar_lea.vmem %s6, %s284
      %p286 = scmp.lt.s32.totalorder %s17, 1
      %s287 = scalar_select %p286, %s17, 1
      %s288 = smul.addr %s287, 19
      %s289 = smul.addr %s288, 4
      %s290 = scalar_lea.vmem %s0, %s289
      %p291 = scmp.lt.s32.totalorder %s17, 1
      %s292 = scalar_select %p291, %s17, 1
      %s293 = smul.addr %s292, 19
      %s294 = smul.addr %s293, 4
      %s295 = scalar_lea.vmem %s1, %s294
      %p296 = scmp.lt.s32.totalorder %s17, 1
      %s297 = scalar_select %p296, %s17, 1
      %s298 = smul.addr %s297, 19
      %s299 = smul.addr %s298, 4
      %s300 = scalar_lea.vmem %s2, %s299
      %p301 = scmp.lt.s32.totalorder %s17, 1
      %s302 = scalar_select %p301, %s17, 1
      %s303 = smul.addr %s302, 19
      %s304 = smul.addr %s303, 4
      %s305 = scalar_lea.vmem %s3, %s304
      %p306 = scmp.lt.s32.totalorder %s17, 1
      %s307 = scalar_select %p306, %s17, 1
      %s308 = smul.addr %s307, 4
      %s309 = scalar_lea.vmem %s6, %s308
      %v311 = vld [vmem:[%s4] sm:$0xff]
      %v312 = vld [vmem:[%s290] sm:$0xf]
      %v313 = vld [vmem:[%s290 + $0x4] sm:$0xf]
      %v314 = vld [vmem:[%s290 + $0x8] sm:$0xf]
      %v315 = vld [vmem:[%s290 + $0xc] sm:$0xf]
      %v316 = vld [vmem:[%s290 + $0x10] sm:$0xf]
      %v317 = vld [vmem:[%s290 + $0x14] sm:$0xf]
      %v318 = vld [vmem:[%s290 + $0x18] sm:$0xf]
      %v319 = vld [vmem:[%s290 + $0x1c] sm:$0xf]
      %v320 = vld [vmem:[%s290 + $0x20] sm:$0xf]
      %v321 = vld [vmem:[%s290 + $0x24] sm:$0xf]
      %v322 = vld [vmem:[%s290 + $0x28] sm:$0xf]
      %v323 = vld [vmem:[%s290 + $0x2c] sm:$0xf]
      %v324 = vld [vmem:[%s290 + $0x30] sm:$0xf]
      %v325 = vld [vmem:[%s290 + $0x34] sm:$0xf]
      %v326 = vld [vmem:[%s290 + $0x38] sm:$0xf]
      %v327 = vld [vmem:[%s290 + $0x3c] sm:$0xf]
      %v328 = vld [vmem:[%s290 + $0x40] sm:$0xf]
      %v329 = vld [vmem:[%s290 + $0x44] sm:$0xf]
      %v330 = vld [vmem:[%s290 + $0x48] sm:$0x7]
      %v332 = vunpack.c.l.b16 %v311
      %v333 = vunpack.c.h.b16 %v311
      %v334 = vpack.c.b16 %v332, %v332
      %v335 = vpack.c.b16 %v333, %v333
      %v356 = vunpack.c.l.b16 %v312
      %v357 = vunpack.c.l.b16 %v313
      %v358 = vunpack.c.l.b16 %v314
      %v359 = vunpack.c.l.b16 %v315
      %v360 = vunpack.c.l.b16 %v316
      %v361 = vunpack.c.l.b16 %v317
      %v362 = vunpack.c.l.b16 %v318
      %v363 = vunpack.c.l.b16 %v319
      %v364 = vunpack.c.l.b16 %v320
      %v365 = vunpack.c.l.b16 %v321
      %v366 = vunpack.c.l.b16 %v322
      %v367 = vunpack.c.l.b16 %v323
      %v368 = vunpack.c.l.b16 %v324
      %v369 = vunpack.c.l.b16 %v325
      %v370 = vunpack.c.l.b16 %v326
      %v371 = vunpack.c.l.b16 %v327
      %v372 = vunpack.c.l.b16 %v328
      %v373 = vunpack.c.l.b16 %v329
      %v374 = vunpack.c.l.b16 %v330
      %v375 = vpack.c.b16 %v357, %v356
      %v376 = vpack.c.b16 %v359, %v358
      %v377 = vpack.c.b16 %v361, %v360
      %v378 = vpack.c.b16 %v363, %v362
      %v379 = vpack.c.b16 %v365, %v364
      %v380 = vpack.c.b16 %v367, %v366
      %v381 = vpack.c.b16 %v369, %v368
      %v382 = vpack.c.b16 %v371, %v370
      %v383 = vpack.c.b16 %v373, %v372
      %v384 = vpack.c.b16 %v374, %v374
      %vm394 = vcmask 179200
      %v396 = vsel %vm394, %v335, 0
      %vm398 = vcmask 1042432
      %v400 = vsel %vm398, %v384, 0
      %402 = vmatprep.subr.bf16.mxu0 0
      %403 = vmatpush1.bf16.msra.mxu0 %v382
      %404 = vmatprep.subr.bf16.mxu0 0
      %405 = vmatpush1.bf16.msra.mxu0 %v381
      %406 = vmatprep.subr.bf16.mxu0 0
      %407 = vmatpush1.bf16.msra.mxu0 %v380
      %408 = vmatprep.subr.bf16.mxu0 0
      %409 = vmatpush1.bf16.msra.mxu0 %v379
      %410 = vmatprep.subr.bf16.mxu0 0
      %411 = vmatpush1.bf16.msra.mxu0 %v378
      %412 = vmatprep.subr.bf16.mxu0 0
      %413 = vmatpush1.bf16.msra.mxu0 %v377
      %414 = vmatprep.subr.bf16.mxu0 0
      %415 = vmatpush1.bf16.msra.mxu0 %v376
      %416 = vmatprep.subr.bf16.mxu0 0
      %417 = vmatpush1.bf16.msra.mxu0 %v375
      %418 = vmatprep.subr.bf16.mxu0 0
      %419 = vmatpush2.bf16.msra.mxu0 0
      %420 = vmatprep.subr.bf16.mxu0 0
      %421 = vmatpush2.bf16.msra.mxu0 0
      %422 = vmatprep.subr.bf16.mxu0 0
      %423 = vmatpush2.bf16.msra.mxu0 0
      %424 = vmatprep.subr.bf16.mxu0 0
      %425 = vmatpush2.bf16.msra.mxu0 0
      %426 = vmatprep.subr.bf16.mxu0 0
      %427 = vmatpush2.bf16.msra.mxu0 0
      %428 = vmatprep.subr.bf16.mxu0 0
      %429 = vmatpush2.bf16.msra.mxu0 0
      %430 = vmatprep.subr.bf16.mxu0 0
      %431 = vmatpush2.bf16.msra.mxu0 %v400
      %432 = vmatprep.subr.bf16.mxu0 0
      %433 = vmatpush2.bf16.msra.mxu0 %v383
      %434 = vmatprep.mubr.bf16.mxu0 %v396
      %435 = vmatmul.mubr.bf16.gmra.mxu0 %v334
      %v436 = vpop.f32.mrf.mxu0
      %v437 = vadd.f32 0.0, %v436
      %v438 = vpop.f32.mrf.mxu0
      %v439 = vpop.f32.mrf.mxu0
      %v440 = vpop.f32.mrf.mxu0
      %441 = vdwg.mxu0
      %v442 = vld [vmem:[%s295] sm:$0xf]
      %v443 = vld [vmem:[%s295 + $0x4] sm:$0xf]
      %v444 = vld [vmem:[%s295 + $0x8] sm:$0xf]
      %v445 = vld [vmem:[%s295 + $0xc] sm:$0xf]
      %v446 = vld [vmem:[%s295 + $0x10] sm:$0xf]
      %v447 = vld [vmem:[%s295 + $0x14] sm:$0xf]
      %v448 = vld [vmem:[%s295 + $0x18] sm:$0xf]
      %v449 = vld [vmem:[%s295 + $0x1c] sm:$0xf]
      %v450 = vld [vmem:[%s295 + $0x20] sm:$0xf]
      %v451 = vld [vmem:[%s295 + $0x24] sm:$0xf]
      %v452 = vld [vmem:[%s295 + $0x28] sm:$0xf]
      %v453 = vld [vmem:[%s295 + $0x2c] sm:$0xf]
      %v454 = vld [vmem:[%s295 + $0x30] sm:$0xf]
      %v455 = vld [vmem:[%s295 + $0x34] sm:$0xf]
      %v456 = vld [vmem:[%s295 + $0x38] sm:$0xf]
      %v457 = vld [vmem:[%s295 + $0x3c] sm:$0xf]
      %v458 = vld [vmem:[%s295 + $0x40] sm:$0xf]
      %v459 = vld [vmem:[%s295 + $0x44] sm:$0xf]
      %v460 = vld [vmem:[%s295 + $0x48] sm:$0x7]
      %v480 = vunpack.c.l.b16 %v442
      %v481 = vunpack.c.l.b16 %v443
      %v482 = vunpack.c.l.b16 %v444
      %v483 = vunpack.c.l.b16 %v445
      %v484 = vunpack.c.l.b16 %v446
      %v485 = vunpack.c.l.b16 %v447
      %v486 = vunpack.c.l.b16 %v448
      %v487 = vunpack.c.l.b16 %v449
      %v488 = vunpack.c.l.b16 %v450
      %v489 = vunpack.c.l.b16 %v451
      %v490 = vunpack.c.l.b16 %v452
      %v491 = vunpack.c.l.b16 %v453
      %v492 = vunpack.c.l.b16 %v454
      %v493 = vunpack.c.l.b16 %v455
      %v494 = vunpack.c.l.b16 %v456
      %v495 = vunpack.c.l.b16 %v457
      %v496 = vunpack.c.l.b16 %v458
      %v497 = vunpack.c.l.b16 %v459
      %v498 = vunpack.c.l.b16 %v460
      %v499 = vpack.c.b16 %v481, %v480
      %v500 = vpack.c.b16 %v483, %v482
      %v501 = vpack.c.b16 %v485, %v484
      %v502 = vpack.c.b16 %v487, %v486
      %v503 = vpack.c.b16 %v489, %v488
      %v504 = vpack.c.b16 %v491, %v490
      %v505 = vpack.c.b16 %v493, %v492
      %v506 = vpack.c.b16 %v495, %v494
      %v507 = vpack.c.b16 %v497, %v496
      %v508 = vpack.c.b16 %v498, %v498
      %v519 = vsel %vm398, %v508, 0
      %521 = vmatprep.subr.bf16.mxu0 0
      %522 = vmatpush1.bf16.msra.mxu0 %v506
      %523 = vmatprep.subr.bf16.mxu0 0
      %524 = vmatpush1.bf16.msra.mxu0 %v505
      %525 = vmatprep.subr.bf16.mxu0 0
      %526 = vmatpush1.bf16.msra.mxu0 %v504
      %527 = vmatprep.subr.bf16.mxu0 0
      %528 = vmatpush1.bf16.msra.mxu0 %v503
      %529 = vmatprep.subr.bf16.mxu0 0
      %530 = vmatpush1.bf16.msra.mxu0 %v502
      %531 = vmatprep.subr.bf16.mxu0 0
      %532 = vmatpush1.bf16.msra.mxu0 %v501
      %533 = vmatprep.subr.bf16.mxu0 0
      %534 = vmatpush1.bf16.msra.mxu0 %v500
      %535 = vmatprep.subr.bf16.mxu0 0
      %536 = vmatpush1.bf16.msra.mxu0 %v499
      %537 = vmatprep.subr.bf16.mxu0 0
      %538 = vmatpush2.bf16.msra.mxu0 0
      %539 = vmatprep.subr.bf16.mxu0 0
      %540 = vmatpush2.bf16.msra.mxu0 0
      %541 = vmatprep.subr.bf16.mxu0 0
      %542 = vmatpush2.bf16.msra.mxu0 0
      %543 = vmatprep.subr.bf16.mxu0 0
      %544 = vmatpush2.bf16.msra.mxu0 0
      %545 = vmatprep.subr.bf16.mxu0 0
      %546 = vmatpush2.bf16.msra.mxu0 0
      %547 = vmatprep.subr.bf16.mxu0 0
      %548 = vmatpush2.bf16.msra.mxu0 0
      %549 = vmatprep.subr.bf16.mxu0 0
      %550 = vmatpush2.bf16.msra.mxu0 %v519
      %551 = vmatprep.subr.bf16.mxu0 0
      %552 = vmatpush2.bf16.msra.mxu0 %v507
      %553 = vmatprep.mubr.bf16.mxu0 %v396
      %554 = vmatmul.mubr.bf16.gmra.mxu0 %v334
      %v555 = vpop.f32.mrf.mxu0
      %v556 = vadd.f32 0.0, %v555
      %v557 = vpop.f32.mrf.mxu0
      %v558 = vpop.f32.mrf.mxu0
      %v559 = vpop.f32.mrf.mxu0
      %560 = vdwg.mxu0
      %v561 = vmax.f32 %v437, %v556
      %v562 = vld [vmem:[%s300] sm:$0xf]
      %v563 = vld [vmem:[%s300 + $0x4] sm:$0xf]
      %v564 = vld [vmem:[%s300 + $0x8] sm:$0xf]
      %v565 = vld [vmem:[%s300 + $0xc] sm:$0xf]
      %v566 = vld [vmem:[%s300 + $0x10] sm:$0xf]
      %v567 = vld [vmem:[%s300 + $0x14] sm:$0xf]
      %v568 = vld [vmem:[%s300 + $0x18] sm:$0xf]
      %v569 = vld [vmem:[%s300 + $0x1c] sm:$0xf]
      %v570 = vld [vmem:[%s300 + $0x20] sm:$0xf]
      %v571 = vld [vmem:[%s300 + $0x24] sm:$0xf]
      %v572 = vld [vmem:[%s300 + $0x28] sm:$0xf]
      %v573 = vld [vmem:[%s300 + $0x2c] sm:$0xf]
      %v574 = vld [vmem:[%s300 + $0x30] sm:$0xf]
      %v575 = vld [vmem:[%s300 + $0x34] sm:$0xf]
      %v576 = vld [vmem:[%s300 + $0x38] sm:$0xf]
      %v577 = vld [vmem:[%s300 + $0x3c] sm:$0xf]
      %v578 = vld [vmem:[%s300 + $0x40] sm:$0xf]
      %v579 = vld [vmem:[%s300 + $0x44] sm:$0xf]
      %v580 = vld [vmem:[%s300 + $0x48] sm:$0x7]
      %v600 = vunpack.c.l.b16 %v562
      %v601 = vunpack.c.l.b16 %v563
      %v602 = vunpack.c.l.b16 %v564
      %v603 = vunpack.c.l.b16 %v565
      %v604 = vunpack.c.l.b16 %v566
      %v605 = vunpack.c.l.b16 %v567
      %v606 = vunpack.c.l.b16 %v568
      %v607 = vunpack.c.l.b16 %v569
      %v608 = vunpack.c.l.b16 %v570
      %v609 = vunpack.c.l.b16 %v571
      %v610 = vunpack.c.l.b16 %v572
      %v611 = vunpack.c.l.b16 %v573
      %v612 = vunpack.c.l.b16 %v574
      %v613 = vunpack.c.l.b16 %v575
      %v614 = vunpack.c.l.b16 %v576
      %v615 = vunpack.c.l.b16 %v577
      %v616 = vunpack.c.l.b16 %v578
      %v617 = vunpack.c.l.b16 %v579
      %v618 = vunpack.c.l.b16 %v580
      %v619 = vpack.c.b16 %v601, %v600
      %v620 = vpack.c.b16 %v603, %v602
      %v621 = vpack.c.b16 %v605, %v604
      %v622 = vpack.c.b16 %v607, %v606
      %v623 = vpack.c.b16 %v609, %v608
      %v624 = vpack.c.b16 %v611, %v610
      %v625 = vpack.c.b16 %v613, %v612
      %v626 = vpack.c.b16 %v615, %v614
      %v627 = vpack.c.b16 %v617, %v616
      %v628 = vpack.c.b16 %v618, %v618
      %v639 = vsel %vm398, %v628, 0
      %641 = vmatprep.subr.bf16.mxu0 0
      %642 = vmatpush1.bf16.msra.mxu0 %v626
      %643 = vmatprep.subr.bf16.mxu0 0
      %644 = vmatpush1.bf16.msra.mxu0 %v625
      %645 = vmatprep.subr.bf16.mxu0 0
      %646 = vmatpush1.bf16.msra.mxu0 %v624
      %647 = vmatprep.subr.bf16.mxu0 0
      %648 = vmatpush1.bf16.msra.mxu0 %v623
      %649 = vmatprep.subr.bf16.mxu0 0
      %650 = vmatpush1.bf16.msra.mxu0 %v622
      %651 = vmatprep.subr.bf16.mxu0 0
      %652 = vmatpush1.bf16.msra.mxu0 %v621
      %653 = vmatprep.subr.bf16.mxu0 0
      %654 = vmatpush1.bf16.msra.mxu0 %v620
      %655 = vmatprep.subr.bf16.mxu0 0
      %656 = vmatpush1.bf16.msra.mxu0 %v619
      %657 = vmatprep.subr.bf16.mxu0 0
      %658 = vmatpush2.bf16.msra.mxu0 0
      %659 = vmatprep.subr.bf16.mxu0 0
      %660 = vmatpush2.bf16.msra.mxu0 0
      %661 = vmatprep.subr.bf16.mxu0 0
      %662 = vmatpush2.bf16.msra.mxu0 0
      %663 = vmatprep.subr.bf16.mxu0 0
      %664 = vmatpush2.bf16.msra.mxu0 0
      %665 = vmatprep.subr.bf16.mxu0 0
      %666 = vmatpush2.bf16.msra.mxu0 0
      %667 = vmatprep.subr.bf16.mxu0 0
      %668 = vmatpush2.bf16.msra.mxu0 0
      %669 = vmatprep.subr.bf16.mxu0 0
      %670 = vmatpush2.bf16.msra.mxu0 %v639
      %671 = vmatprep.subr.bf16.mxu0 0
      %672 = vmatpush2.bf16.msra.mxu0 %v627
      %673 = vmatprep.mubr.bf16.mxu0 %v396
      %674 = vmatmul.mubr.bf16.gmra.mxu0 %v334
      %v675 = vpop.f32.mrf.mxu0
      %v676 = vadd.f32 0.0, %v675
      %v677 = vpop.f32.mrf.mxu0
      %v678 = vpop.f32.mrf.mxu0
      %v679 = vpop.f32.mrf.mxu0
      %680 = vdwg.mxu0
      %v681 = vld [vmem:[%s305] sm:$0xf]
      %v682 = vld [vmem:[%s305 + $0x4] sm:$0xf]
      %v683 = vld [vmem:[%s305 + $0x8] sm:$0xf]
      %v684 = vld [vmem:[%s305 + $0xc] sm:$0xf]
      %v685 = vld [vmem:[%s305 + $0x10] sm:$0xf]
      %v686 = vld [vmem:[%s305 + $0x14] sm:$0xf]
      %v687 = vld [vmem:[%s305 + $0x18] sm:$0xf]
      %v688 = vld [vmem:[%s305 + $0x1c] sm:$0xf]
      %v689 = vld [vmem:[%s305 + $0x20] sm:$0xf]
      %v690 = vld [vmem:[%s305 + $0x24] sm:$0xf]
      %v691 = vld [vmem:[%s305 + $0x28] sm:$0xf]
      %v692 = vld [vmem:[%s305 + $0x2c] sm:$0xf]
      %v693 = vld [vmem:[%s305 + $0x30] sm:$0xf]
      %v694 = vld [vmem:[%s305 + $0x34] sm:$0xf]
      %v695 = vld [vmem:[%s305 + $0x38] sm:$0xf]
      %v696 = vld [vmem:[%s305 + $0x3c] sm:$0xf]
      %v697 = vld [vmem:[%s305 + $0x40] sm:$0xf]
      %v698 = vld [vmem:[%s305 + $0x44] sm:$0xf]
      %v699 = vld [vmem:[%s305 + $0x48] sm:$0x7]
      %v719 = vunpack.c.l.b16 %v681
      %v720 = vunpack.c.l.b16 %v682
      %v721 = vunpack.c.l.b16 %v683
      %v722 = vunpack.c.l.b16 %v684
      %v723 = vunpack.c.l.b16 %v685
      %v724 = vunpack.c.l.b16 %v686
      %v725 = vunpack.c.l.b16 %v687
      %v726 = vunpack.c.l.b16 %v688
      %v727 = vunpack.c.l.b16 %v689
      %v728 = vunpack.c.l.b16 %v690
      %v729 = vunpack.c.l.b16 %v691
      %v730 = vunpack.c.l.b16 %v692
      %v731 = vunpack.c.l.b16 %v693
      %v732 = vunpack.c.l.b16 %v694
      %v733 = vunpack.c.l.b16 %v695
      %v734 = vunpack.c.l.b16 %v696
      %v735 = vunpack.c.l.b16 %v697
      %v736 = vunpack.c.l.b16 %v698
      %v737 = vunpack.c.l.b16 %v699
      %v738 = vpack.c.b16 %v720, %v719
      %v739 = vpack.c.b16 %v722, %v721
      %v740 = vpack.c.b16 %v724, %v723
      %v741 = vpack.c.b16 %v726, %v725
      %v742 = vpack.c.b16 %v728, %v727
      %v743 = vpack.c.b16 %v730, %v729
      %v744 = vpack.c.b16 %v732, %v731
      %v745 = vpack.c.b16 %v734, %v733
      %v746 = vpack.c.b16 %v736, %v735
      %v747 = vpack.c.b16 %v737, %v737
      %v758 = vsel %vm398, %v747, 0
      %760 = vmatprep.subr.bf16.mxu0 0
      %761 = vmatpush1.bf16.msra.mxu0 %v745
      %762 = vmatprep.subr.bf16.mxu0 0
      %763 = vmatpush1.bf16.msra.mxu0 %v744
      %764 = vmatprep.subr.bf16.mxu0 0
      %765 = vmatpush1.bf16.msra.mxu0 %v743
      %766 = vmatprep.subr.bf16.mxu0 0
      %767 = vmatpush1.bf16.msra.mxu0 %v742
      %768 = vmatprep.subr.bf16.mxu0 0
      %769 = vmatpush1.bf16.msra.mxu0 %v741
      %770 = vmatprep.subr.bf16.mxu0 0
      %771 = vmatpush1.bf16.msra.mxu0 %v740
      %772 = vmatprep.subr.bf16.mxu0 0
      %773 = vmatpush1.bf16.msra.mxu0 %v739
      %774 = vmatprep.subr.bf16.mxu0 0
      %775 = vmatpush1.bf16.msra.mxu0 %v738
      %776 = vmatprep.subr.bf16.mxu0 0
      %777 = vmatpush2.bf16.msra.mxu0 0
      %778 = vmatprep.subr.bf16.mxu0 0
      %779 = vmatpush2.bf16.msra.mxu0 0
      %780 = vmatprep.subr.bf16.mxu0 0
      %781 = vmatpush2.bf16.msra.mxu0 0
      %782 = vmatprep.subr.bf16.mxu0 0
      %783 = vmatpush2.bf16.msra.mxu0 0
      %784 = vmatprep.subr.bf16.mxu0 0
      %785 = vmatpush2.bf16.msra.mxu0 0
      %786 = vmatprep.subr.bf16.mxu0 0
      %787 = vmatpush2.bf16.msra.mxu0 0
      %788 = vmatprep.subr.bf16.mxu0 0
      %789 = vmatpush2.bf16.msra.mxu0 %v758
      %790 = vmatprep.subr.bf16.mxu0 0
      %791 = vmatpush2.bf16.msra.mxu0 %v746
      %792 = vmatprep.mubr.bf16.mxu0 %v396
      %793 = vmatmul.mubr.bf16.gmra.mxu0 %v334
      %v794 = vpop.f32.mrf.mxu0
      %v795 = vadd.f32 0.0, %v794
      %v796 = vpop.f32.mrf.mxu0
      %v797 = vpop.f32.mrf.mxu0
      %v798 = vpop.f32.mrf.mxu0
      %799 = vdwg.mxu0
      %v800 = vmax.f32 %v676, %v795
      %v801 = vmax.f32 %v561, %v800
      %v802 = vld [vmem:[%s5] sm:$0xff]
      %804 = vset.pattern.permute.xlu0 0
      %805 = vperm.xlu0 %804, %v802
      %v806 = vpop.permute.xlu0 %805
      %v808 = vadd.f32 %v801, %v806
      %v809 = vtanh.pop %v808
      %v810 = vpack.c.bf16 %v809, %v809
      %vm811 = vcmask 650240
      %812 = vst.msk [vmem:[%s309] sm:$0xf] %vm811, %v810
      %p813 = scmp.lt.s32.totalorder %s17, 1
      %s814 = scalar_select %p813, %s17, 1
      %s815 = smul.addr %s814, 4
      %s816 = scalar_lea.vmem %s6, %s815
      // Predicated region
      $region45: #{full_model_forward.12} parent=43 // pred_check
        %p817 = pneg %p181
      $region46: #{full_model_forward.12} parent=43 // pred_check_branch
        %819 = sbr.rel (%p817) target = $region48
      $region47: #{full_model_forward.12} parent=43 // pred_region
        _
      $region48: #{full_model_forward.12} parent=43 // pred_fallthru
        _
    $region44: #{full_model_forward.12} parent=5 // pred_fallthru
      _
    %p820 = scmp.le.s32.totalorder 2, %s12
    // Predicated region
    $region49: #{full_model_forward.12} parent=5 // pred_check
      %p821 = pneg %p820
    $region50: #{full_model_forward.12} parent=5 // pred_check_branch
      %823 = sbr.rel (%p821) target = $region52
    $region51: #{full_model_forward.12} parent=5 // pred_region
      %s824 = ssub.s32 %s12, 2
      // Predicated region
      $region53: #{full_model_forward.12} parent=51 // pred_check
        %p825 = pneg %p187
      $region54: #{full_model_forward.12} parent=51 // pred_check_branch
        %827 = sbr.rel (%p825) target = $region56
      $region55: #{full_model_forward.12} parent=51 // pred_region
        %p828 = scmp.lt.s32.totalorder %s18, 1
        %s829 = scalar_select %p828, %s18, 1
        %s830 = smul.addr %s829, 4
        %s831 = scalar_lea.vmem %s6, %s830
      $region56: #{full_model_forward.12} parent=51 // pred_fallthru
        _
    $region52: #{full_model_forward.12} parent=5 // pred_fallthru
      _
  $region6: #{full_model_forward.12} parent=0 // loop_footer
    %s16 = sadd.s32 1, %s12
  $region7: #{full_model_forward.12} parent=0 // loop_footer_branch
    %11 = sbr.rel target = $region3
  $region8: #{full_model_forward.12} parent=0 // loop_exit
    _

// kernel: full_model_forward.13
$region0: #{full_model_forward.13}
  #allocation0 [shape = 'u32[]', space=smem, size = 0x4, offset = 0x4, fixed_abs, tag = 'smem constant byte address 0x4 - core index']
  #allocation1 [shape = 'u32[144,128]{1,0:T(1,128)}', space=vmem, size = 0x12000, scoped, tag = 'internal scratch']
  %s0 = inlined_call_operand.vmem [shape: bf16[2,640], index: 0, kind: input, shape index: {}]
  %s1 = inlined_call_operand.vmem [shape: bf16[2,640], index: 1, kind: input, shape index: {}]
  %s2 = inlined_call_operand.vmem [shape: bf16[640,32], index: 2, kind: input, shape index: {}]
  %s3 = inlined_call_operand.vmem [shape: f32[1,32], index: 3, kind: input, shape index: {}]
  %s4 = inlined_call_operand.vmem [shape: bf16[32,32], index: 4, kind: input, shape index: {}]
  %s5 = inlined_call_operand.vmem [shape: bf16[32,32], index: 5, kind: input, shape index: {}]
  %s6 = inlined_call_operand.vmem [shape: f32[1,32], index: 6, kind: input, shape index: {}]
  %s7 = inlined_call_operand.vmem [shape: f32[1,32], index: 7, kind: input, shape index: {}]
  %s8 = inlined_call_operand.vmem [shape: bf16[32,10], index: 8, kind: input, shape index: {}]
  %s9 = inlined_call_operand.vmem [shape: f32[1,10], index: 9, kind: input, shape index: {}]
  %s10 = inlined_call_operand.hbm [shape: f32[1,32], index: 10, kind: output, shape index: {0}]
  %s11 = inlined_call_operand.hbm [shape: f32[1,32], index: 11, kind: output, shape index: {1}]
  %s12 = inlined_call_operand.hbm [shape: f32[1,10], index: 12, kind: output, shape index: {2}]
  %s13 = inlined_call_operand.hbm [shape: f32[1,10], index: 13, kind: output, shape index: {3}]
  %s14 = inlined_call_operand.hbm [shape: f32[1,1], index: 14, kind: output, shape index: {4}]
  %15 = xla_tuple %s10, %s11, %s12, %s13, %s14
  %s16 = sld [smem:[#allocation0]]
  $region82: #{full_model_forward.13} parent=0
    _
  %s18 = ssub.s32 1, %s16
  %s19 = scalar_select 0, %s18, %s16
  $region1: #{full_model_forward.13} parent=0
    #allocation2 [shape = 'u8[512]{0}', space=vmem, size = 0x400, scoped, tag = 'output window, operand 0, single buffered']
    #allocation3 [shape = 's32[1]{0}', space=sflag, size = 0x4, scoped, tag = 'scoped memory for full_model_forward.13']
    #allocation4 [shape = 'u8[512]{0}', space=vmem, size = 0x400, scoped, tag = 'output window, operand 1, single buffered']
    #allocation5 [shape = 's32[1]{0}', space=sflag, size = 0x4, scoped, tag = 'scoped memory for full_model_forward.13']
    #allocation6 [shape = 'u8[512]{0}', space=vmem, size = 0x400, scoped, tag = 'output window, operand 2, single buffered']
    #allocation7 [shape = 'u8[512]{0}', space=vmem, size = 0x400, scoped, tag = 'output window, operand 3, single buffered']
    #allocation8 [shape = 's32[1]{0}', space=sflag, size = 0x4, scoped, tag = 'scoped memory for full_model_forward.13']
    #allocation9 [shape = 'u8[512]{0}', space=vmem, size = 0x400, scoped, tag = 'output window, operand 4, single buffered']
    %20 = vsyncpa [#allocation3], 0
    %21 = vsyncpa [#allocation5], 0
    %22 = vsyncpa [#allocation8], 0
    // Predicated region
    $region2: #{full_model_forward.13} parent=1 // pred_check
      _
    $region3: #{full_model_forward.13} parent=1 // pred_check_branch
      %24 = sbr.rel (0) target = $region5
    $region4: #{full_model_forward.13} parent=1 // pred_region
      _
    $region5: #{full_model_forward.13} parent=1 // pred_fallthru
      _
    // Predicated region
    $region6: #{full_model_forward.13} parent=1 // pred_check
      _
    $region7: #{full_model_forward.13} parent=1 // pred_check_branch
      %26 = sbr.rel (0) target = $region9
    $region8: #{full_model_forward.13} parent=1 // pred_region
      _
    $region9: #{full_model_forward.13} parent=1 // pred_fallthru
      _
    // Predicated region
    $region10: #{full_model_forward.13} parent=1 // pred_check
      _
    $region11: #{full_model_forward.13} parent=1 // pred_check_branch
      %28 = sbr.rel (0) target = $region13
    $region12: #{full_model_forward.13} parent=1 // pred_region
      _
    $region13: #{full_model_forward.13} parent=1 // pred_fallthru
      _
    // Predicated region
    $region14: #{full_model_forward.13} parent=1 // pred_check
      _
    $region15: #{full_model_forward.13} parent=1 // pred_check_branch
      %30 = sbr.rel (0) target = $region17
    $region16: #{full_model_forward.13} parent=1 // pred_region
      _
    $region17: #{full_model_forward.13} parent=1 // pred_fallthru
      _
    // Predicated region
    $region18: #{full_model_forward.13} parent=1 // pred_check
      _
    $region19: #{full_model_forward.13} parent=1 // pred_check_branch
      %32 = sbr.rel (0) target = $region21
    $region20: #{full_model_forward.13} parent=1 // pred_region
      _
    $region21: #{full_model_forward.13} parent=1 // pred_fallthru
      _
    // Predicated region
    $region22: #{full_model_forward.13} parent=1 // pred_check
      _
    $region23: #{full_model_forward.13} parent=1 // pred_check_branch
      %34 = sbr.rel (0) target = $region25
    $region24: #{full_model_forward.13} parent=1 // pred_region
      _
    $region25: #{full_model_forward.13} parent=1 // pred_fallthru
      _
    // Predicated region
    $region26: #{full_model_forward.13} parent=1 // pred_check
      _
    $region27: #{full_model_forward.13} parent=1 // pred_check_branch
      %36 = sbr.rel (0) target = $region29
    $region28: #{full_model_forward.13} parent=1 // pred_region
      _
    $region29: #{full_model_forward.13} parent=1 // pred_fallthru
      _
    // Predicated region
    $region30: #{full_model_forward.13} parent=1 // pred_check
      _
    $region31: #{full_model_forward.13} parent=1 // pred_check_branch
      %38 = sbr.rel (0) target = $region33
    $region32: #{full_model_forward.13} parent=1 // pred_region
      _
    $region33: #{full_model_forward.13} parent=1 // pred_fallthru
      _
    // Predicated region
    $region34: #{full_model_forward.13} parent=1 // pred_check
      _
    $region35: #{full_model_forward.13} parent=1 // pred_check_branch
      %40 = sbr.rel (0) target = $region37
    $region36: #{full_model_forward.13} parent=1 // pred_region
      _
    $region37: #{full_model_forward.13} parent=1 // pred_fallthru
      _
    // Predicated region
    $region38: #{full_model_forward.13} parent=1 // pred_check
      _
    $region39: #{full_model_forward.13} parent=1 // pred_check_branch
      %42 = sbr.rel (0) target = $region41
    $region40: #{full_model_forward.13} parent=1 // pred_region
      _
    $region41: #{full_model_forward.13} parent=1 // pred_fallthru
      _
    %v44 = vld [vmem:[%s2] sm:$0xf]
    %v45 = vld [vmem:[%s2 + $0x4] sm:$0xf]
    %v46 = vld [vmem:[%s2 + $0x8] sm:$0xf]
    %v47 = vld [vmem:[%s2 + $0xc] sm:$0xf]
    %v48 = vld [vmem:[%s2 + $0x10] sm:$0xf]
    %v49 = vld [vmem:[%s2 + $0x14] sm:$0xf]
    %v50 = vld [vmem:[%s2 + $0x18] sm:$0xf]
    %v51 = vld [vmem:[%s2 + $0x1c] sm:$0xf]
    %v52 = vld [vmem:[%s2 + $0x20] sm:$0xf]
    %v53 = vld [vmem:[%s2 + $0x24] sm:$0xf]
    %v54 = vld [vmem:[%s2 + $0x28] sm:$0xf]
    %v55 = vld [vmem:[%s2 + $0x2c] sm:$0xf]
    %v56 = vld [vmem:[%s2 + $0x30] sm:$0xf]
    %v57 = vld [vmem:[%s2 + $0x34] sm:$0xf]
    %v58 = vld [vmem:[%s2 + $0x38] sm:$0xf]
    %v59 = vld [vmem:[%s2 + $0x3c] sm:$0xf]
    %v60 = vld [vmem:[%s2 + $0x40] sm:$0xf]
    %v61 = vld [vmem:[%s2 + $0x44] sm:$0xf]
    %v62 = vld [vmem:[%s2 + $0x48] sm:$0xf]
    %v63 = vld [vmem:[%s2 + $0x4c] sm:$0xf]
    %v64 = vld [vmem:[%s2 + $0x50] sm:$0xf]
    %v65 = vld [vmem:[%s2 + $0x54] sm:$0xf]
    %v66 = vld [vmem:[%s2 + $0x58] sm:$0xf]
    %v67 = vld [vmem:[%s2 + $0x5c] sm:$0xf]
    %v68 = vld [vmem:[%s2 + $0x60] sm:$0xf]
    %v69 = vld [vmem:[%s2 + $0x64] sm:$0xf]
    %v70 = vld [vmem:[%s2 + $0x68] sm:$0xf]
    %v71 = vld [vmem:[%s2 + $0x6c] sm:$0xf]
    %v72 = vld [vmem:[%s2 + $0x70] sm:$0xf]
    %v73 = vld [vmem:[%s2 + $0x74] sm:$0xf]
    %v74 = vld [vmem:[%s2 + $0x78] sm:$0xf]
    %v75 = vld [vmem:[%s2 + $0x7c] sm:$0xf]
    %v76 = vld [vmem:[%s2 + $0x80] sm:$0xf]
    %v77 = vld [vmem:[%s2 + $0x84] sm:$0xf]
    %v78 = vld [vmem:[%s2 + $0x88] sm:$0xf]
    %v79 = vld [vmem:[%s2 + $0x8c] sm:$0xf]
    %v80 = vld [vmem:[%s2 + $0x90] sm:$0xf]
    %v81 = vld [vmem:[%s2 + $0x94] sm:$0xf]
    %v82 = vld [vmem:[%s2 + $0x98] sm:$0xf]
    %v83 = vld [vmem:[%s2 + $0x9c] sm:$0xf]
    %v84 = vld [vmem:[%s2 + $0xa0] sm:$0xf]
    %v85 = vld [vmem:[%s2 + $0xa4] sm:$0xf]
    %v86 = vld [vmem:[%s2 + $0xa8] sm:$0xf]
    %v87 = vld [vmem:[%s2 + $0xac] sm:$0xf]
    %v88 = vld [vmem:[%s2 + $0xb0] sm:$0xf]
    %v89 = vld [vmem:[%s2 + $0xb4] sm:$0xf]
    %v90 = vld [vmem:[%s2 + $0xb8] sm:$0xf]
    %v91 = vld [vmem:[%s2 + $0xbc] sm:$0xf]
    %v92 = vld [vmem:[%s2 + $0xc0] sm:$0xf]
    %v93 = vld [vmem:[%s2 + $0xc4] sm:$0xf]
    %v94 = vld [vmem:[%s2 + $0xc8] sm:$0xf]
    %v95 = vld [vmem:[%s2 + $0xcc] sm:$0xf]
    %v96 = vld [vmem:[%s2 + $0xd0] sm:$0xf]
    %v97 = vld [vmem:[%s2 + $0xd4] sm:$0xf]
    %v98 = vld [vmem:[%s2 + $0xd8] sm:$0xf]
    %v99 = vld [vmem:[%s2 + $0xdc] sm:$0xf]
    %v100 = vld [vmem:[%s2 + $0xe0] sm:$0xf]
    %v101 = vld [vmem:[%s2 + $0xe4] sm:$0xf]
    %v102 = vld [vmem:[%s2 + $0xe8] sm:$0xf]
    %v103 = vld [vmem:[%s2 + $0xec] sm:$0xf]
    %v104 = vld [vmem:[%s2 + $0xf0] sm:$0xf]
    %v105 = vld [vmem:[%s2 + $0xf4] sm:$0xf]
    %v106 = vld [vmem:[%s2 + $0xf8] sm:$0xf]
    %v107 = vld [vmem:[%s2 + $0xfc] sm:$0xf]
    %v108 = vld [vmem:[%s2 + $0x100] sm:$0xf]
    %v109 = vld [vmem:[%s2 + $0x104] sm:$0xf]
    %v110 = vld [vmem:[%s2 + $0x108] sm:$0xf]
    %v111 = vld [vmem:[%s2 + $0x10c] sm:$0xf]
    %v112 = vld [vmem:[%s2 + $0x110] sm:$0xf]
    %v113 = vld [vmem:[%s2 + $0x114] sm:$0xf]
    %v114 = vld [vmem:[%s2 + $0x118] sm:$0xf]
    %v115 = vld [vmem:[%s2 + $0x11c] sm:$0xf]
    %v116 = vld [vmem:[%s2 + $0x120] sm:$0xf]
    %v117 = vld [vmem:[%s2 + $0x124] sm:$0xf]
    %v118 = vld [vmem:[%s2 + $0x128] sm:$0xf]
    %v119 = vld [vmem:[%s2 + $0x12c] sm:$0xf]
    %v120 = vld [vmem:[%s2 + $0x130] sm:$0xf]
    %v121 = vld [vmem:[%s2 + $0x134] sm:$0xf]
    %v122 = vld [vmem:[%s2 + $0x138] sm:$0xf]
    %v123 = vld [vmem:[%s2 + $0x13c] sm:$0xf]
    %v124 = vld [vmem:[%s4] sm:$0xf]
    %v125 = vld [vmem:[%s4 + $0x4] sm:$0xf]
    %v126 = vld [vmem:[%s4 + $0x8] sm:$0xf]
    %v127 = vld [vmem:[%s4 + $0xc] sm:$0xf]
    %v128 = vld [vmem:[%s5] sm:$0xf]
    %v129 = vld [vmem:[%s5 + $0x4] sm:$0xf]
    %v130 = vld [vmem:[%s5 + $0x8] sm:$0xf]
    %v131 = vld [vmem:[%s5 + $0xc] sm:$0xf]
    %v132 = vld [vmem:[%s3] sm:$0x1]
    %v133 = vld [vmem:[%s6] sm:$0x1]
    %v134 = vld [vmem:[%s7] sm:$0x1]
    %v135 = vadd.f32 %v133, %v134
    %v136 = vld [vmem:[%s0] sm:$0x1f]
    %v138 = vlaneseq
    %v139 = vshrl.u32 %v138, 7
    %v140 = vsub.s32 0, %v139
    %v141 = vrot.slane %v132, %v140
    %v144 = vcombine.high %v136, %v136
    %v146 = vunpack.c.l.s4 1966171168
    %v147 = vunpack.c.0.s8 %v146
    %v148 = vlaneseq
    %v149 = vshrl.u32 %v148, 7
    %v150 = vsub.s32 %v147, %v149
    %v151 = vrot.slane %v136, %v150
    %v153 = vunpack.c.l.s4 1966171168
    %v154 = vunpack.c.0.s8 %v153
    %v155 = vlaneseq
    %v156 = vshrl.u32 %v155, 7
    %v157 = vsub.s32 %v154, %v156
    %v158 = vrot.slane %v144, %v157
    %v159 = vcombine.high %v151, %v151
    %v161 = vunpack.c.l.s4 1966171168
    %v162 = vunpack.c.0.s8 %v161
    %v163 = vlaneseq
    %v164 = vshrl.u32 %v163, 7
    %v165 = vsub.s32 %v162, %v164
    %v166 = vrot.slane %v151, %v165
    %v168 = vunpack.c.l.s4 1966171168
    %v169 = vunpack.c.0.s8 %v168
    %v170 = vlaneseq
    %v171 = vshrl.u32 %v170, 7
    %v172 = vsub.s32 %v169, %v171
    %v173 = vrot.slane %v158, %v172
    %v175 = vunpack.c.l.s4 1966171168
    %v176 = vunpack.c.0.s8 %v175
    %v177 = vlaneseq
    %v178 = vshrl.u32 %v177, 7
    %v179 = vsub.s32 %v176, %v178
    %v180 = vrot.slane %v159, %v179
    %v181 = vcombine.high %v166, %v166
    %v182 = vcombine.high %v180, %v180
    %v268 = vunpack.c.l.b16 %v44
    %v269 = vunpack.c.l.b16 %v45
    %v270 = vunpack.c.l.b16 %v46
    %v271 = vunpack.c.l.b16 %v47
    %v272 = vunpack.c.l.b16 %v48
    %v273 = vunpack.c.l.b16 %v49
    %v274 = vunpack.c.l.b16 %v50
    %v275 = vunpack.c.l.b16 %v51
    %v276 = vunpack.c.l.b16 %v52
    %v277 = vunpack.c.l.b16 %v53
    %v278 = vunpack.c.l.b16 %v54
    %v279 = vunpack.c.l.b16 %v55
    %v280 = vunpack.c.l.b16 %v56
    %v281 = vunpack.c.l.b16 %v57
    %v282 = vunpack.c.l.b16 %v58
    %v283 = vunpack.c.l.b16 %v59
    %v284 = vunpack.c.l.b16 %v60
    %v285 = vunpack.c.l.b16 %v61
    %v286 = vunpack.c.l.b16 %v62
    %v287 = vunpack.c.l.b16 %v63
    %v288 = vunpack.c.l.b16 %v64
    %v289 = vunpack.c.l.b16 %v65
    %v290 = vunpack.c.l.b16 %v66
    %v291 = vunpack.c.l.b16 %v67
    %v292 = vunpack.c.l.b16 %v68
    %v293 = vunpack.c.l.b16 %v69
    %v294 = vunpack.c.l.b16 %v70
    %v295 = vunpack.c.l.b16 %v71
    %v296 = vunpack.c.l.b16 %v72
    %v297 = vunpack.c.l.b16 %v73
    %v298 = vunpack.c.l.b16 %v74
    %v299 = vunpack.c.l.b16 %v75
    %v300 = vunpack.c.l.b16 %v76
    %v301 = vunpack.c.l.b16 %v77
    %v302 = vunpack.c.l.b16 %v78
    %v303 = vunpack.c.l.b16 %v79
    %v304 = vunpack.c.l.b16 %v80
    %v305 = vunpack.c.l.b16 %v81
    %v306 = vunpack.c.l.b16 %v82
    %v307 = vunpack.c.l.b16 %v83
    %v308 = vunpack.c.l.b16 %v84
    %v309 = vunpack.c.l.b16 %v85
    %v310 = vunpack.c.l.b16 %v86
    %v311 = vunpack.c.l.b16 %v87
    %v312 = vunpack.c.l.b16 %v88
    %v313 = vunpack.c.l.b16 %v89
    %v314 = vunpack.c.l.b16 %v90
    %v315 = vunpack.c.l.b16 %v91
    %v316 = vunpack.c.l.b16 %v92
    %v317 = vunpack.c.l.b16 %v93
    %v318 = vunpack.c.l.b16 %v94
    %v319 = vunpack.c.l.b16 %v95
    %v320 = vunpack.c.l.b16 %v96
    %v321 = vunpack.c.l.b16 %v97
    %v322 = vunpack.c.l.b16 %v98
    %v323 = vunpack.c.l.b16 %v99
    %v324 = vunpack.c.l.b16 %v100
    %v325 = vunpack.c.l.b16 %v101
    %v326 = vunpack.c.l.b16 %v102
    %v327 = vunpack.c.l.b16 %v103
    %v328 = vunpack.c.l.b16 %v104
    %v329 = vunpack.c.l.b16 %v105
    %v330 = vunpack.c.l.b16 %v106
    %v331 = vunpack.c.l.b16 %v107
    %v332 = vunpack.c.l.b16 %v108
    %v333 = vunpack.c.l.b16 %v109
    %v334 = vunpack.c.l.b16 %v110
    %v335 = vunpack.c.l.b16 %v111
    %v336 = vunpack.c.l.b16 %v112
    %v337 = vunpack.c.l.b16 %v113
    %v338 = vunpack.c.l.b16 %v114
    %v339 = vunpack.c.l.b16 %v115
    %v340 = vunpack.c.l.b16 %v116
    %v341 = vunpack.c.l.b16 %v117
    %v342 = vunpack.c.l.b16 %v118
    %v343 = vunpack.c.l.b16 %v119
    %v344 = vunpack.c.l.b16 %v120
    %v345 = vunpack.c.l.b16 %v121
    %v346 = vunpack.c.l.b16 %v122
    %v347 = vunpack.c.l.b16 %v123
    %v348 = vpack.c.b16 %v269, %v268
    %v349 = vpack.c.b16 %v271, %v270
    %v350 = vpack.c.b16 %v273, %v272
    %v351 = vpack.c.b16 %v275, %v274
    %v352 = vpack.c.b16 %v277, %v276
    %v353 = vpack.c.b16 %v279, %v278
    %v354 = vpack.c.b16 %v281, %v280
    %v355 = vpack.c.b16 %v283, %v282
    %v356 = vpack.c.b16 %v285, %v284
    %v357 = vpack.c.b16 %v287, %v286
    %v358 = vpack.c.b16 %v289, %v288
    %v359 = vpack.c.b16 %v291, %v290
    %v360 = vpack.c.b16 %v293, %v292
    %v361 = vpack.c.b16 %v295, %v294
    %v362 = vpack.c.b16 %v297, %v296
    %v363 = vpack.c.b16 %v299, %v298
    %v364 = vpack.c.b16 %v301, %v300
    %v365 = vpack.c.b16 %v303, %v302
    %v366 = vpack.c.b16 %v305, %v304
    %v367 = vpack.c.b16 %v307, %v306
    %v368 = vpack.c.b16 %v309, %v308
    %v369 = vpack.c.b16 %v311, %v310
    %v370 = vpack.c.b16 %v313, %v312
    %v371 = vpack.c.b16 %v315, %v314
    %v372 = vpack.c.b16 %v317, %v316
    %v373 = vpack.c.b16 %v319, %v318
    %v374 = vpack.c.b16 %v321, %v320
    %v375 = vpack.c.b16 %v323, %v322
    %v376 = vpack.c.b16 %v325, %v324
    %v377 = vpack.c.b16 %v327, %v326
    %v378 = vpack.c.b16 %v329, %v328
    %v379 = vpack.c.b16 %v331, %v330
    %v380 = vpack.c.b16 %v333, %v332
    %v381 = vpack.c.b16 %v335, %v334
    %v382 = vpack.c.b16 %v337, %v336
    %v383 = vpack.c.b16 %v339, %v338
    %v384 = vpack.c.b16 %v341, %v340
    %v385 = vpack.c.b16 %v343, %v342
    %v386 = vpack.c.b16 %v345, %v344
    %v387 = vpack.c.b16 %v347, %v346
    %428 = vmatprep.subr.bf16.mxu0 0
    %429 = vmatpush1.bf16.msra.mxu0 %v355
    %430 = vmatprep.subr.bf16.mxu0 0
    %431 = vmatpush1.bf16.msra.mxu0 %v354
    %432 = vmatprep.subr.bf16.mxu0 0
    %433 = vmatpush1.bf16.msra.mxu0 %v353
    %434 = vmatprep.subr.bf16.mxu0 0
    %435 = vmatpush1.bf16.msra.mxu0 %v352
    %436 = vmatprep.subr.bf16.mxu0 0
    %437 = vmatpush1.bf16.msra.mxu0 %v351
    %438 = vmatprep.subr.bf16.mxu0 0
    %439 = vmatpush1.bf16.msra.mxu0 %v350
    %440 = vmatprep.subr.bf16.mxu0 0
    %441 = vmatpush1.bf16.msra.mxu0 %v349
    %442 = vmatprep.subr.bf16.mxu0 0
    %443 = vmatpush1.bf16.msra.mxu0 %v348
    %444 = vmatprep.subr.bf16.mxu0 0
    %445 = vmatpush2.bf16.msra.mxu0 %v363
    %446 = vmatprep.subr.bf16.mxu0 0
    %447 = vmatpush2.bf16.msra.mxu0 %v362
    %448 = vmatprep.subr.bf16.mxu0 0
    %449 = vmatpush2.bf16.msra.mxu0 %v361
    %450 = vmatprep.subr.bf16.mxu0 0
    %451 = vmatpush2.bf16.msra.mxu0 %v360
    %452 = vmatprep.subr.bf16.mxu0 0
    %453 = vmatpush2.bf16.msra.mxu0 %v359
    %454 = vmatprep.subr.bf16.mxu0 0
    %455 = vmatpush2.bf16.msra.mxu0 %v358
    %456 = vmatprep.subr.bf16.mxu0 0
    %457 = vmatpush2.bf16.msra.mxu0 %v357
    %458 = vmatprep.subr.bf16.mxu0 0
    %459 = vmatpush2.bf16.msra.mxu0 %v356
    %460 = vmatprep.mubr.bf16.mxu0 %v180
    %461 = vmatmul.mubr.bf16.gmra.mxu0 %v166
    %v462 = vpop.f32.mrf.mxu0
    %v463 = vadd.f32 %v141, %v462
    %v464 = vpop.f32.mrf.mxu0
    %v465 = vpop.f32.mrf.mxu0
    %v466 = vpop.f32.mrf.mxu0
    %467 = vdwg.mxu0
    %468 = vmatprep.subr.bf16.mxu0 0
    %469 = vmatpush1.bf16.msra.mxu0 %v371
    %470 = vmatprep.subr.bf16.mxu0 0
    %471 = vmatpush1.bf16.msra.mxu0 %v370
    %472 = vmatprep.subr.bf16.mxu0 0
    %473 = vmatpush1.bf16.msra.mxu0 %v369
    %474 = vmatprep.subr.bf16.mxu0 0
    %475 = vmatpush1.bf16.msra.mxu0 %v368
    %476 = vmatprep.subr.bf16.mxu0 0
    %477 = vmatpush1.bf16.msra.mxu0 %v367
    %478 = vmatprep.subr.bf16.mxu0 0
    %479 = vmatpush1.bf16.msra.mxu0 %v366
    %480 = vmatprep.subr.bf16.mxu0 0
    %481 = vmatpush1.bf16.msra.mxu0 %v365
    %482 = vmatprep.subr.bf16.mxu0 0
    %483 = vmatpush1.bf16.msra.mxu0 %v364
    %484 = vmatprep.subr.bf16.mxu0 0
    %485 = vmatpush2.bf16.msra.mxu0 %v379
    %486 = vmatprep.subr.bf16.mxu0 0
    %487 = vmatpush2.bf16.msra.mxu0 %v378
    %488 = vmatprep.subr.bf16.mxu0 0
    %489 = vmatpush2.bf16.msra.mxu0 %v377
    %490 = vmatprep.subr.bf16.mxu0 0
    %491 = vmatpush2.bf16.msra.mxu0 %v376
    %492 = vmatprep.subr.bf16.mxu0 0
    %493 = vmatpush2.bf16.msra.mxu0 %v375
    %494 = vmatprep.subr.bf16.mxu0 0
    %495 = vmatpush2.bf16.msra.mxu0 %v374
    %496 = vmatprep.subr.bf16.mxu0 0
    %497 = vmatpush2.bf16.msra.mxu0 %v373
    %498 = vmatprep.subr.bf16.mxu0 0
    %499 = vmatpush2.bf16.msra.mxu0 %v372
    %500 = vmatprep.mubr.bf16.mxu0 %v182
    %501 = vmatmul.mubr.bf16.gmra.mxu0 %v181
    %v502 = vpop.f32.mrf.mxu0
    %v503 = vadd.f32 %v463, %v502
    %v504 = vpop.f32.mrf.mxu0
    %v505 = vpop.f32.mrf.mxu0
    %v506 = vpop.f32.mrf.mxu0
    %507 = vdwg.mxu0
    %508 = vmatprep.subr.bf16.mxu0 0
    %509 = vmatpush1.bf16.msra.mxu0 %v387
    %510 = vmatprep.subr.bf16.mxu0 0
    %511 = vmatpush1.bf16.msra.mxu0 %v386
    %512 = vmatprep.subr.bf16.mxu0 0
    %513 = vmatpush1.bf16.msra.mxu0 %v385
    %514 = vmatprep.subr.bf16.mxu0 0
    %515 = vmatpush1.bf16.msra.mxu0 %v384
    %516 = vmatprep.subr.bf16.mxu0 0
    %517 = vmatpush1.bf16.msra.mxu0 %v383
    %518 = vmatprep.subr.bf16.mxu0 0
    %519 = vmatpush1.bf16.msra.mxu0 %v382
    %520 = vmatprep.subr.bf16.mxu0 0
    %521 = vmatpush1.bf16.msra.mxu0 %v381
    %522 = vmatprep.subr.bf16.mxu0 0
    %523 = vmatpush1.bf16.msra.mxu0 %v380
    %524 = vmatprep.subr.bf16.mxu0 0
    %525 = vmatpush2.bf16.msra.mxu0 0
    %526 = vmatprep.subr.bf16.mxu0 0
    %527 = vmatpush2.bf16.msra.mxu0 0
    %528 = vmatprep.subr.bf16.mxu0 0
    %529 = vmatpush2.bf16.msra.mxu0 0
    %530 = vmatprep.subr.bf16.mxu0 0
    %531 = vmatpush2.bf16.msra.mxu0 0
    %532 = vmatprep.subr.bf16.mxu0 0
    %533 = vmatpush2.bf16.msra.mxu0 0
    %534 = vmatprep.subr.bf16.mxu0 0
    %535 = vmatpush2.bf16.msra.mxu0 0
    %536 = vmatprep.subr.bf16.mxu0 0
    %537 = vmatpush2.bf16.msra.mxu0 0
    %538 = vmatprep.subr.bf16.mxu0 0
    %539 = vmatpush2.bf16.msra.mxu0 0
    %540 = vmatprep.mubr.bf16.mxu0 0
    %541 = vmatmul.mubr.bf16.gmra.mxu0 %v173
    %v542 = vpop.f32.mrf.mxu0
    %v543 = vadd.f32 %v503, %v542
    %v544 = vpop.f32.mrf.mxu0
    %v545 = vpop.f32.mrf.mxu0
    %v546 = vpop.f32.mrf.mxu0
    %547 = vdwg.mxu0
    %v548 = vpack.c.bf16 %v543, %v543
    %v550 = vlaneseq
    %v551 = vshrl.u32 %v550, 7
    %v552 = vsub.s32 0, %v551
    %v553 = vrot.slane %v135, %v552
    %v559 = vunpack.c.l.b16 %v124
    %v560 = vunpack.c.l.b16 %v125
    %v561 = vunpack.c.l.b16 %v126
    %v562 = vunpack.c.l.b16 %v127
    %v563 = vpack.c.b16 %v560, %v559
    %v564 = vpack.c.b16 %v562, %v561
    %vm567 = vcmask 261120
    %v569 = vsel %vm567, %v548, 0
    %571 = vmatprep.subr.bf16.mxu0 0
    %572 = vmatpush1.bf16.msra.mxu0 0
    %573 = vmatprep.subr.bf16.mxu0 0
    %574 = vmatpush1.bf16.msra.mxu0 0
    %575 = vmatprep.subr.bf16.mxu0 0
    %576 = vmatpush1.bf16.msra.mxu0 0
    %577 = vmatprep.subr.bf16.mxu0 0
    %578 = vmatpush1.bf16.msra.mxu0 0
    %579 = vmatprep.subr.bf16.mxu0 0
    %580 = vmatpush1.bf16.msra.mxu0 0
    %581 = vmatprep.subr.bf16.mxu0 0
    %582 = vmatpush1.bf16.msra.mxu0 0
    %583 = vmatprep.subr.bf16.mxu0 0
    %584 = vmatpush1.bf16.msra.mxu0 %v564
    %585 = vmatprep.subr.bf16.mxu0 0
    %586 = vmatpush1.bf16.msra.mxu0 %v563
    %587 = vmatprep.subr.bf16.mxu0 0
    %588 = vmatpush2.bf16.msra.mxu0 0
    %589 = vmatprep.subr.bf16.mxu0 0
    %590 = vmatpush2.bf16.msra.mxu0 0
    %591 = vmatprep.subr.bf16.mxu0 0
    %592 = vmatpush2.bf16.msra.mxu0 0
    %593 = vmatprep.subr.bf16.mxu0 0
    %594 = vmatpush2.bf16.msra.mxu0 0
    %595 = vmatprep.subr.bf16.mxu0 0
    %596 = vmatpush2.bf16.msra.mxu0 0
    %597 = vmatprep.subr.bf16.mxu0 0
    %598 = vmatpush2.bf16.msra.mxu0 0
    %599 = vmatprep.subr.bf16.mxu0 0
    %600 = vmatpush2.bf16.msra.mxu0 0
    %601 = vmatprep.subr.bf16.mxu0 0
    %602 = vmatpush2.bf16.msra.mxu0 0
    %603 = vmatprep.mubr.bf16.mxu0 0
    %604 = vmatmul.mubr.bf16.gmra.mxu0 %v569
    %v605 = vpop.f32.mrf.mxu0
    %v606 = vadd.f32 %v553, %v605
    %v607 = vpop.f32.mrf.mxu0
    %v608 = vpop.f32.mrf.mxu0
    %v609 = vpop.f32.mrf.mxu0
    %610 = vdwg.mxu0
    %v615 = vunpack.c.l.b16 %v128
    %v616 = vunpack.c.l.b16 %v129
    %v617 = vunpack.c.l.b16 %v130
    %v618 = vunpack.c.l.b16 %v131
    %v619 = vpack.c.b16 %v616, %v615
    %v620 = vpack.c.b16 %v618, %v617
    %v624 = vsel %vm567, 0, 0
    %626 = vmatprep.subr.bf16.mxu0 0
    %627 = vmatpush1.bf16.msra.mxu0 0
    %628 = vmatprep.subr.bf16.mxu0 0
    %629 = vmatpush1.bf16.msra.mxu0 0
    %630 = vmatprep.subr.bf16.mxu0 0
    %631 = vmatpush1.bf16.msra.mxu0 0
    %632 = vmatprep.subr.bf16.mxu0 0
    %633 = vmatpush1.bf16.msra.mxu0 0
    %634 = vmatprep.subr.bf16.mxu0 0
    %635 = vmatpush1.bf16.msra.mxu0 0
    %636 = vmatprep.subr.bf16.mxu0 0
    %637 = vmatpush1.bf16.msra.mxu0 0
    %638 = vmatprep.subr.bf16.mxu0 0
    %639 = vmatpush1.bf16.msra.mxu0 %v620
    %640 = vmatprep.subr.bf16.mxu0 0
    %641 = vmatpush1.bf16.msra.mxu0 %v619
    %642 = vmatprep.subr.bf16.mxu0 0
    %643 = vmatpush2.bf16.msra.mxu0 0
    %644 = vmatprep.subr.bf16.mxu0 0
    %645 = vmatpush2.bf16.msra.mxu0 0
    %646 = vmatprep.subr.bf16.mxu0 0
    %647 = vmatpush2.bf16.msra.mxu0 0
    %648 = vmatprep.subr.bf16.mxu0 0
    %649 = vmatpush2.bf16.msra.mxu0 0
    %650 = vmatprep.subr.bf16.mxu0 0
    %651 = vmatpush2.bf16.msra.mxu0 0
    %652 = vmatprep.subr.bf16.mxu0 0
    %653 = vmatpush2.bf16.msra.mxu0 0
    %654 = vmatprep.subr.bf16.mxu0 0
    %655 = vmatpush2.bf16.msra.mxu0 0
    %656 = vmatprep.subr.bf16.mxu0 0
    %657 = vmatpush2.bf16.msra.mxu0 0
    %658 = vmatprep.mubr.bf16.mxu0 0
    %659 = vmatmul.mubr.bf16.gmra.mxu0 %v624
    %v660 = vpop.f32.mrf.mxu0
    %v661 = vadd.f32 0.0, %v660
    %v662 = vpop.f32.mrf.mxu0
    %v663 = vpop.f32.mrf.mxu0
    %v664 = vpop.f32.mrf.mxu0
    %665 = vdwg.mxu0
    %v666 = vadd.f32 %v606, %v661
    %v667 = vtanh.pop %v666
    %v668 = vadd.f32 %v667, 0.0
    %v669 = vpack.c.bf16 %v667, %v667
    %v671 = vsel %vm567, %v669, 0
    %673 = vmatprep.subr.bf16.mxu0 0
    %674 = vmatpush1.bf16.msra.mxu0 0
    %675 = vmatprep.subr.bf16.mxu0 0
    %676 = vmatpush1.bf16.msra.mxu0 0
    %677 = vmatprep.subr.bf16.mxu0 0
    %678 = vmatpush1.bf16.msra.mxu0 0
    %679 = vmatprep.subr.bf16.mxu0 0
    %680 = vmatpush1.bf16.msra.mxu0 0
    %681 = vmatprep.subr.bf16.mxu0 0
    %682 = vmatpush1.bf16.msra.mxu0 0
    %683 = vmatprep.subr.bf16.mxu0 0
    %684 = vmatpush1.bf16.msra.mxu0 0
    %685 = vmatprep.subr.bf16.mxu0 0
    %686 = vmatpush1.bf16.msra.mxu0 %v620
    %687 = vmatprep.subr.bf16.mxu0 0
    %688 = vmatpush1.bf16.msra.mxu0 %v619
    %689 = vmatprep.subr.bf16.mxu0 0
    %690 = vmatpush2.bf16.msra.mxu0 0
    %691 = vmatprep.subr.bf16.mxu0 0
    %692 = vmatpush2.bf16.msra.mxu0 0
    %693 = vmatprep.subr.bf16.mxu0 0
    %694 = vmatpush2.bf16.msra.mxu0 0
    %695 = vmatprep.subr.bf16.mxu0 0
    %696 = vmatpush2.bf16.msra.mxu0 0
    %697 = vmatprep.subr.bf16.mxu0 0
    %698 = vmatpush2.bf16.msra.mxu0 0
    %699 = vmatprep.subr.bf16.mxu0 0
    %700 = vmatpush2.bf16.msra.mxu0 0
    %701 = vmatprep.subr.bf16.mxu0 0
    %702 = vmatpush2.bf16.msra.mxu0 0
    %703 = vmatprep.subr.bf16.mxu0 0
    %704 = vmatpush2.bf16.msra.mxu0 0
    %705 = vmatprep.mubr.bf16.mxu0 0
    %706 = vmatmul.mubr.bf16.gmra.mxu0 %v671
    %v707 = vpop.f32.mrf.mxu0
    %v708 = vadd.f32 0.0, %v707
    %v709 = vpop.f32.mrf.mxu0
    %v710 = vpop.f32.mrf.mxu0
    %v711 = vpop.f32.mrf.mxu0
    %712 = vdwg.mxu0
    %v714 = vrot.slane %v708, 7
    %v716 = vadd.f32 %v606, %v714
    %v717 = vtanh.pop %v716
    %v719 = vrot.slane %v717, 1
    %v721 = vadd.f32 %v668, %v719
    %v722 = vmul.f32 %v721, 0.5
    %v723 = vld [vmem:[%s1] sm:$0x1f]
    %v725 = vcombine.high %v723, %v723
    %v727 = vunpack.c.l.s4 1966171168
    %v728 = vunpack.c.0.s8 %v727
    %v729 = vlaneseq
    %v730 = vshrl.u32 %v729, 7
    %v731 = vsub.s32 %v728, %v730
    %v732 = vrot.slane %v723, %v731
    %v734 = vunpack.c.l.s4 1966171168
    %v735 = vunpack.c.0.s8 %v734
    %v736 = vlaneseq
    %v737 = vshrl.u32 %v736, 7
    %v738 = vsub.s32 %v735, %v737
    %v739 = vrot.slane %v725, %v738
    %v740 = vcombine.high %v732, %v732
    %v742 = vunpack.c.l.s4 1966171168
    %v743 = vunpack.c.0.s8 %v742
    %v744 = vlaneseq
    %v745 = vshrl.u32 %v744, 7
    %v746 = vsub.s32 %v743, %v745
    %v747 = vrot.slane %v732, %v746
    %v749 = vunpack.c.l.s4 1966171168
    %v750 = vunpack.c.0.s8 %v749
    %v751 = vlaneseq
    %v752 = vshrl.u32 %v751, 7
    %v753 = vsub.s32 %v750, %v752
    %v754 = vrot.slane %v739, %v753
    %v756 = vunpack.c.l.s4 1966171168
    %v757 = vunpack.c.0.s8 %v756
    %v758 = vlaneseq
    %v759 = vshrl.u32 %v758, 7
    %v760 = vsub.s32 %v757, %v759
    %v761 = vrot.slane %v740, %v760
    %v762 = vcombine.high %v747, %v747
    %v763 = vcombine.high %v761, %v761
    %769 = vmatprep.subr.bf16.mxu0 0
    %770 = vmatpush1.bf16.msra.mxu0 %v355
    %771 = vmatprep.subr.bf16.mxu0 0
    %772 = vmatpush1.bf16.msra.mxu0 %v354
    %773 = vmatprep.subr.bf16.mxu0 0
    %774 = vmatpush1.bf16.msra.mxu0 %v353
    %775 = vmatprep.subr.bf16.mxu0 0
    %776 = vmatpush1.bf16.msra.mxu0 %v352
    %777 = vmatprep.subr.bf16.mxu0 0
    %778 = vmatpush1.bf16.msra.mxu0 %v351
    %779 = vmatprep.subr.bf16.mxu0 0
    %780 = vmatpush1.bf16.msra.mxu0 %v350
    %781 = vmatprep.subr.bf16.mxu0 0
    %782 = vmatpush1.bf16.msra.mxu0 %v349
    %783 = vmatprep.subr.bf16.mxu0 0
    %784 = vmatpush1.bf16.msra.mxu0 %v348
    %785 = vmatprep.subr.bf16.mxu0 0
    %786 = vmatpush2.bf16.msra.mxu0 %v363
    %787 = vmatprep.subr.bf16.mxu0 0
    %788 = vmatpush2.bf16.msra.mxu0 %v362
    %789 = vmatprep.subr.bf16.mxu0 0
    %790 = vmatpush2.bf16.msra.mxu0 %v361
    %791 = vmatprep.subr.bf16.mxu0 0
    %792 = vmatpush2.bf16.msra.mxu0 %v360
    %793 = vmatprep.subr.bf16.mxu0 0
    %794 = vmatpush2.bf16.msra.mxu0 %v359
    %795 = vmatprep.subr.bf16.mxu0 0
    %796 = vmatpush2.bf16.msra.mxu0 %v358
    %797 = vmatprep.subr.bf16.mxu0 0
    %798 = vmatpush2.bf16.msra.mxu0 %v357
    %799 = vmatprep.subr.bf16.mxu0 0
    %800 = vmatpush2.bf16.msra.mxu0 %v356
    %801 = vmatprep.mubr.bf16.mxu0 %v761
    %802 = vmatmul.mubr.bf16.gmra.mxu0 %v747
    %v803 = vpop.f32.mrf.mxu0
    %v804 = vadd.f32 %v141, %v803
    %v805 = vpop.f32.mrf.mxu0
    %v806 = vpop.f32.mrf.mxu0
    %v807 = vpop.f32.mrf.mxu0
    %808 = vdwg.mxu0
    %809 = vmatprep.subr.bf16.mxu0 0
    %810 = vmatpush1.bf16.msra.mxu0 %v371
    %811 = vmatprep.subr.bf16.mxu0 0
    %812 = vmatpush1.bf16.msra.mxu0 %v370
    %813 = vmatprep.subr.bf16.mxu0 0
    %814 = vmatpush1.bf16.msra.mxu0 %v369
    %815 = vmatprep.subr.bf16.mxu0 0
    %816 = vmatpush1.bf16.msra.mxu0 %v368
    %817 = vmatprep.subr.bf16.mxu0 0
    %818 = vmatpush1.bf16.msra.mxu0 %v367
    %819 = vmatprep.subr.bf16.mxu0 0
    %820 = vmatpush1.bf16.msra.mxu0 %v366
    %821 = vmatprep.subr.bf16.mxu0 0
    %822 = vmatpush1.bf16.msra.mxu0 %v365
    %823 = vmatprep.subr.bf16.mxu0 0
    %824 = vmatpush1.bf16.msra.mxu0 %v364
    %825 = vmatprep.subr.bf16.mxu0 0
    %826 = vmatpush2.bf16.msra.mxu0 %v379
    %827 = vmatprep.subr.bf16.mxu0 0
    %828 = vmatpush2.bf16.msra.mxu0 %v378
    %829 = vmatprep.subr.bf16.mxu0 0
    %830 = vmatpush2.bf16.msra.mxu0 %v377
    %831 = vmatprep.subr.bf16.mxu0 0
    %832 = vmatpush2.bf16.msra.mxu0 %v376
    %833 = vmatprep.subr.bf16.mxu0 0
    %834 = vmatpush2.bf16.msra.mxu0 %v375
    %835 = vmatprep.subr.bf16.mxu0 0
    %836 = vmatpush2.bf16.msra.mxu0 %v374
    %837 = vmatprep.subr.bf16.mxu0 0
    %838 = vmatpush2.bf16.msra.mxu0 %v373
    %839 = vmatprep.subr.bf16.mxu0 0
    %840 = vmatpush2.bf16.msra.mxu0 %v372
    %841 = vmatprep.mubr.bf16.mxu0 %v763
    %842 = vmatmul.mubr.bf16.gmra.mxu0 %v762
    %v843 = vpop.f32.mrf.mxu0
    %v844 = vadd.f32 %v804, %v843
    %v845 = vpop.f32.mrf.mxu0
    %v846 = vpop.f32.mrf.mxu0
    %v847 = vpop.f32.mrf.mxu0
    %848 = vdwg.mxu0
    %849 = vmatprep.subr.bf16.mxu0 0
    %850 = vmatpush1.bf16.msra.mxu0 %v387
    %851 = vmatprep.subr.bf16.mxu0 0
    %852 = vmatpush1.bf16.msra.mxu0 %v386
    %853 = vmatprep.subr.bf16.mxu0 0
    %854 = vmatpush1.bf16.msra.mxu0 %v385
    %855 = vmatprep.subr.bf16.mxu0 0
    %856 = vmatpush1.bf16.msra.mxu0 %v384
    %857 = vmatprep.subr.bf16.mxu0 0
    %858 = vmatpush1.bf16.msra.mxu0 %v383
    %859 = vmatprep.subr.bf16.mxu0 0
    %860 = vmatpush1.bf16.msra.mxu0 %v382
    %861 = vmatprep.subr.bf16.mxu0 0
    %862 = vmatpush1.bf16.msra.mxu0 %v381
    %863 = vmatprep.subr.bf16.mxu0 0
    %864 = vmatpush1.bf16.msra.mxu0 %v380
    %865 = vmatprep.subr.bf16.mxu0 0
    %866 = vmatpush2.bf16.msra.mxu0 0
    %867 = vmatprep.subr.bf16.mxu0 0
    %868 = vmatpush2.bf16.msra.mxu0 0
    %869 = vmatprep.subr.bf16.mxu0 0
    %870 = vmatpush2.bf16.msra.mxu0 0
    %871 = vmatprep.subr.bf16.mxu0 0
    %872 = vmatpush2.bf16.msra.mxu0 0
    %873 = vmatprep.subr.bf16.mxu0 0
    %874 = vmatpush2.bf16.msra.mxu0 0
    %875 = vmatprep.subr.bf16.mxu0 0
    %876 = vmatpush2.bf16.msra.mxu0 0
    %877 = vmatprep.subr.bf16.mxu0 0
    %878 = vmatpush2.bf16.msra.mxu0 0
    %879 = vmatprep.subr.bf16.mxu0 0
    %880 = vmatpush2.bf16.msra.mxu0 0
    %881 = vmatprep.mubr.bf16.mxu0 0
    %882 = vmatmul.mubr.bf16.gmra.mxu0 %v754
    %v883 = vpop.f32.mrf.mxu0
    %v884 = vadd.f32 %v844, %v883
    %v885 = vpop.f32.mrf.mxu0
    %v886 = vpop.f32.mrf.mxu0
    %v887 = vpop.f32.mrf.mxu0
    %888 = vdwg.mxu0
    %v889 = vpack.c.bf16 %v884, %v884
    %v891 = vsel %vm567, %v889, 0
    %893 = vmatprep.subr.bf16.mxu0 0
    %894 = vmatpush1.bf16.msra.mxu0 0
    %895 = vmatprep.subr.bf16.mxu0 0
    %896 = vmatpush1.bf16.msra.mxu0 0
    %897 = vmatprep.subr.bf16.mxu0 0
    %898 = vmatpush1.bf16.msra.mxu0 0
    %899 = vmatprep.subr.bf16.mxu0 0
    %900 = vmatpush1.bf16.msra.mxu0 0
    %901 = vmatprep.subr.bf16.mxu0 0
    %902 = vmatpush1.bf16.msra.mxu0 0
    %903 = vmatprep.subr.bf16.mxu0 0
    %904 = vmatpush1.bf16.msra.mxu0 0
    %905 = vmatprep.subr.bf16.mxu0 0
    %906 = vmatpush1.bf16.msra.mxu0 %v564
    %907 = vmatprep.subr.bf16.mxu0 0
    %908 = vmatpush1.bf16.msra.mxu0 %v563
    %909 = vmatprep.subr.bf16.mxu0 0
    %910 = vmatpush2.bf16.msra.mxu0 0
    %911 = vmatprep.subr.bf16.mxu0 0
    %912 = vmatpush2.bf16.msra.mxu0 0
    %913 = vmatprep.subr.bf16.mxu0 0
    %914 = vmatpush2.bf16.msra.mxu0 0
    %915 = vmatprep.subr.bf16.mxu0 0
    %916 = vmatpush2.bf16.msra.mxu0 0
    %917 = vmatprep.subr.bf16.mxu0 0
    %918 = vmatpush2.bf16.msra.mxu0 0
    %919 = vmatprep.subr.bf16.mxu0 0
    %920 = vmatpush2.bf16.msra.mxu0 0
    %921 = vmatprep.subr.bf16.mxu0 0
    %922 = vmatpush2.bf16.msra.mxu0 0
    %923 = vmatprep.subr.bf16.mxu0 0
    %924 = vmatpush2.bf16.msra.mxu0 0
    %925 = vmatprep.mubr.bf16.mxu0 0
    %926 = vmatmul.mubr.bf16.gmra.mxu0 %v891
    %v927 = vpop.f32.mrf.mxu0
    %v928 = vadd.f32 %v553, %v927
    %v929 = vpop.f32.mrf.mxu0
    %v930 = vpop.f32.mrf.mxu0
    %v931 = vpop.f32.mrf.mxu0
    %932 = vdwg.mxu0
    %v933 = vadd.f32 %v928, %v661
    %v934 = vtanh.pop %v933
    %v935 = vadd.f32 %v934, 0.0
    %v936 = vpack.c.bf16 %v934, %v934
    %v938 = vsel %vm567, %v936, 0
    %940 = vmatprep.subr.bf16.mxu0 0
    %941 = vmatpush1.bf16.msra.mxu0 0
    %942 = vmatprep.subr.bf16.mxu0 0
    %943 = vmatpush1.bf16.msra.mxu0 0
    %944 = vmatprep.subr.bf16.mxu0 0
    %945 = vmatpush1.bf16.msra.mxu0 0
    %946 = vmatprep.subr.bf16.mxu0 0
    %947 = vmatpush1.bf16.msra.mxu0 0
    %948 = vmatprep.subr.bf16.mxu0 0
    %949 = vmatpush1.bf16.msra.mxu0 0
    %950 = vmatprep.subr.bf16.mxu0 0
    %951 = vmatpush1.bf16.msra.mxu0 0
    %952 = vmatprep.subr.bf16.mxu0 0
    %953 = vmatpush1.bf16.msra.mxu0 %v620
    %954 = vmatprep.subr.bf16.mxu0 0
    %955 = vmatpush1.bf16.msra.mxu0 %v619
    %956 = vmatprep.subr.bf16.mxu0 0
    %957 = vmatpush2.bf16.msra.mxu0 0
    %958 = vmatprep.subr.bf16.mxu0 0
    %959 = vmatpush2.bf16.msra.mxu0 0
    %960 = vmatprep.subr.bf16.mxu0 0
    %961 = vmatpush2.bf16.msra.mxu0 0
    %962 = vmatprep.subr.bf16.mxu0 0
    %963 = vmatpush2.bf16.msra.mxu0 0
    %964 = vmatprep.subr.bf16.mxu0 0
    %965 = vmatpush2.bf16.msra.mxu0 0
    %966 = vmatprep.subr.bf16.mxu0 0
    %967 = vmatpush2.bf16.msra.mxu0 0
    %968 = vmatprep.subr.bf16.mxu0 0
    %969 = vmatpush2.bf16.msra.mxu0 0
    %970 = vmatprep.subr.bf16.mxu0 0
    %971 = vmatpush2.bf16.msra.mxu0 0
    %972 = vmatprep.mubr.bf16.mxu0 0
    %973 = vmatmul.mubr.bf16.gmra.mxu0 %v938
    %v974 = vpop.f32.mrf.mxu0
    %v975 = vadd.f32 0.0, %v974
    %v976 = vpop.f32.mrf.mxu0
    %v977 = vpop.f32.mrf.mxu0
    %v978 = vpop.f32.mrf.mxu0
    %979 = vdwg.mxu0
    %v981 = vrot.slane %v975, 7
    %v983 = vadd.f32 %v928, %v981
    %v984 = vtanh.pop %v983
    %v986 = vrot.slane %v984, 1
    %v988 = vadd.f32 %v935, %v986
    %v989 = vmul.f32 %v988, 0.5
    %vm990 = vcmask 253952
    %991 = vst.msk [vmem:[#allocation2] sm:$0x1] %vm990, %v722
    %992 = vst.msk [vmem:[#allocation4] sm:$0x1] %vm990, %v989
    %v993 = vld [vmem:[%s8] sm:$0xf]
    %v994 = vld [vmem:[%s8 + $0x4] sm:$0xf]
    %v995 = vld [vmem:[%s8 + $0x8] sm:$0xf]
    %v996 = vld [vmem:[%s8 + $0xc] sm:$0xf]
    %v997 = vld [vmem:[%s9] sm:$0x1]
    %v998 = vpack.c.bf16 %v722, %v722
    %v1003 = vunpack.c.l.b16 %v993
    %v1004 = vunpack.c.l.b16 %v994
    %v1005 = vunpack.c.l.b16 %v995
    %v1006 = vunpack.c.l.b16 %v996
    %v1007 = vpack.c.b16 %v1004, %v1003
    %v1008 = vpack.c.b16 %v1006, %v1005
    %v1012 = vsel %vm567, %v998, 0
    %1014 = vmatprep.subr.bf16.mxu0 0
    %1015 = vmatpush1.bf16.msra.mxu0 0
    %1016 = vmatprep.subr.bf16.mxu0 0
    %1017 = vmatpush1.bf16.msra.mxu0 0
    %1018 = vmatprep.subr.bf16.mxu0 0
    %1019 = vmatpush1.bf16.msra.mxu0 0
    %1020 = vmatprep.subr.bf16.mxu0 0
    %1021 = vmatpush1.bf16.msra.mxu0 0
    %1022 = vmatprep.subr.bf16.mxu0 0
    %1023 = vmatpush1.bf16.msra.mxu0 0
    %1024 = vmatprep.subr.bf16.mxu0 0
    %1025 = vmatpush1.bf16.msra.mxu0 0
    %1026 = vmatprep.subr.bf16.mxu0 0
    %1027 = vmatpush1.bf16.msra.mxu0 %v1008
    %1028 = vmatprep.subr.bf16.mxu0 0
    %1029 = vmatpush1.bf16.msra.mxu0 %v1007
    %1030 = vmatprep.subr.bf16.mxu0 0
    %1031 = vmatpush2.bf16.msra.mxu0 0
    %1032 = vmatprep.subr.bf16.mxu0 0
    %1033 = vmatpush2.bf16.msra.mxu0 0
    %1034 = vmatprep.subr.bf16.mxu0 0
    %1035 = vmatpush2.bf16.msra.mxu0 0
    %1036 = vmatprep.subr.bf16.mxu0 0
    %1037 = vmatpush2.bf16.msra.mxu0 0
    %1038 = vmatprep.subr.bf16.mxu0 0
    %1039 = vmatpush2.bf16.msra.mxu0 0
    %1040 = vmatprep.subr.bf16.mxu0 0
    %1041 = vmatpush2.bf16.msra.mxu0 0
    %1042 = vmatprep.subr.bf16.mxu0 0
    %1043 = vmatpush2.bf16.msra.mxu0 0
    %1044 = vmatprep.subr.bf16.mxu0 0
    %1045 = vmatpush2.bf16.msra.mxu0 0
    %1046 = vmatprep.mubr.bf16.mxu0 0
    %1047 = vmatmul.mubr.bf16.gmra.mxu0 %v1012
    %v1048 = vpop.f32.mrf.mxu0
    %v1049 = vadd.f32 %v997, %v1048
    %v1050 = vpop.f32.mrf.mxu0
    %v1051 = vpop.f32.mrf.mxu0
    %v1052 = vpop.f32.mrf.mxu0
    %1053 = vdwg.mxu0
    %vm1054 = vcmask 73728
    %1055 = vst.msk [vmem:[#allocation6] sm:$0x1] %vm1054, %v1049
    %v1056 = vpack.c.bf16 %v989, %v989
    %v1058 = vsel %vm567, %v1056, 0
    %1060 = vmatprep.subr.bf16.mxu0 0
    %1061 = vmatpush1.bf16.msra.mxu0 0
    %1062 = vmatprep.subr.bf16.mxu0 0
    %1063 = vmatpush1.bf16.msra.mxu0 0
    %1064 = vmatprep.subr.bf16.mxu0 0
    %1065 = vmatpush1.bf16.msra.mxu0 0
    %1066 = vmatprep.subr.bf16.mxu0 0
    %1067 = vmatpush1.bf16.msra.mxu0 0
    %1068 = vmatprep.subr.bf16.mxu0 0
    %1069 = vmatpush1.bf16.msra.mxu0 0
    %1070 = vmatprep.subr.bf16.mxu0 0
    %1071 = vmatpush1.bf16.msra.mxu0 0
    %1072 = vmatprep.subr.bf16.mxu0 0
    %1073 = vmatpush1.bf16.msra.mxu0 %v1008
    %1074 = vmatprep.subr.bf16.mxu0 0
    %1075 = vmatpush1.bf16.msra.mxu0 %v1007
    %1076 = vmatprep.subr.bf16.mxu0 0
    %1077 = vmatpush2.bf16.msra.mxu0 0
    %1078 = vmatprep.subr.bf16.mxu0 0
    %1079 = vmatpush2.bf16.msra.mxu0 0
    %1080 = vmatprep.subr.bf16.mxu0 0
    %1081 = vmatpush2.bf16.msra.mxu0 0
    %1082 = vmatprep.subr.bf16.mxu0 0
    %1083 = vmatpush2.bf16.msra.mxu0 0
    %1084 = vmatprep.subr.bf16.mxu0 0
    %1085 = vmatpush2.bf16.msra.mxu0 0
    %1086 = vmatprep.subr.bf16.mxu0 0
    %1087 = vmatpush2.bf16.msra.mxu0 0
    %1088 = vmatprep.subr.bf16.mxu0 0
    %1089 = vmatpush2.bf16.msra.mxu0 0
    %1090 = vmatprep.subr.bf16.mxu0 0
    %1091 = vmatpush2.bf16.msra.mxu0 0
    %1092 = vmatprep.mubr.bf16.mxu0 0
    %1093 = vmatmul.mubr.bf16.gmra.mxu0 %v1058
    %v1094 = vpop.f32.mrf.mxu0
    %v1095 = vadd.f32 %v997, %v1094
    %v1096 = vpop.f32.mrf.mxu0
    %v1097 = vpop.f32.mrf.mxu0
    %v1098 = vpop.f32.mrf.mxu0
    %1099 = vdwg.mxu0
    %1100 = vst.msk [vmem:[#allocation7] sm:$0x1] %vm1054, %v1095
    %v1101 = vsub.f32 %v722, %v989
    %v1102 = vadd.f32 %v1101, 1e-06
    %v1103 = vmul.f32 %v1102, %v1102
    %v1104 = vsel %vm990, %v1103, 0.0
    %1105 = vadd.xlane.f32.xlu0 %v1104
    %v1106 = vpop.xlane.xlu0 %1105
    %v1107 = vrsqrt.pop %v1106
    %v1108 = vmul.f32 %v1106, %v1107
    %vm1109 = vcmp.eq.f32.partialorder %v1106, inf
    %v1110 = vsel %vm1109, %v1106, %v1108
    %vm1111 = vcmp.eq.f32.partialorder %v1106, 0.0
    %v1112 = vand.u32 %v1106, 2147483648
    %v1113 = vsel %vm1111, %v1112, %v1110
    %vm1114 = vcmask 0
    %1115 = vst.msk [vmem:[#allocation9] sm:$0x1] %vm1114, %v1113
    // Predicated region
    $region42: #{full_model_forward.13} parent=1 // pred_check
      _
    $region43: #{full_model_forward.13} parent=1 // pred_check_branch
      %1117 = sbr.rel (0) target = $region45
    $region44: #{full_model_forward.13} parent=1 // pred_region
      %s1119 = ssub.s32 16, 16
      %1120 = vsyncadd [#allocation3], %s1119
      %s1122 = sshll.u32 [#allocation2], 4
      %s1123 = int_to_ptr.vmem [resolvable:$true] %s1122
      %1125 = dma.vmem_to_hbm [thread:$0]  %s1123, 16, %s10, [#allocation3]
    $region45: #{full_model_forward.13} parent=1 // pred_fallthru
      _
    // Predicated region
    $region46: #{full_model_forward.13} parent=1 // pred_check
      _
    $region47: #{full_model_forward.13} parent=1 // pred_check_branch
      %1127 = sbr.rel (0) target = $region49
    $region48: #{full_model_forward.13} parent=1 // pred_region
      %s1129 = ssub.s32 16, 16
      %1130 = vsyncadd [#allocation5], %s1129
      %s1132 = sshll.u32 [#allocation4], 4
      %s1133 = int_to_ptr.vmem [resolvable:$true] %s1132
      %1135 = dma.vmem_to_hbm [thread:$0]  %s1133, 16, %s11, [#allocation5]
    $region49: #{full_model_forward.13} parent=1 // pred_fallthru
      _
    // Predicated region
    $region50: #{full_model_forward.13} parent=1 // pred_check
      _
    $region51: #{full_model_forward.13} parent=1 // pred_check_branch
      %1137 = sbr.rel (0) target = $region53
    $region52: #{full_model_forward.13} parent=1 // pred_region
      %s1139 = ssub.s32 16, 16
      %1140 = vsyncadd [#allocation5], %s1139
      %s1142 = sshll.u32 [#allocation6], 4
      %s1143 = int_to_ptr.vmem [resolvable:$true] %s1142
      %1145 = dma.vmem_to_hbm [thread:$0]  %s1143, 16, %s12, [#allocation5]
    $region53: #{full_model_forward.13} parent=1 // pred_fallthru
      _
    // Predicated region
    $region54: #{full_model_forward.13} parent=1 // pred_check
      _
    $region55: #{full_model_forward.13} parent=1 // pred_check_branch
      %1147 = sbr.rel (0) target = $region57
    $region56: #{full_model_forward.13} parent=1 // pred_region
      %s1149 = ssub.s32 16, 16
      %1150 = vsyncadd [#allocation8], %s1149
      %s1152 = sshll.u32 [#allocation7], 4
      %s1153 = int_to_ptr.vmem [resolvable:$true] %s1152
      %1155 = dma.vmem_to_hbm [thread:$0]  %s1153, 16, %s13, [#allocation8]
    $region57: #{full_model_forward.13} parent=1 // pred_fallthru
      _
    // Predicated region
    $region58: #{full_model_forward.13} parent=1 // pred_check
      _
    $region59: #{full_model_forward.13} parent=1 // pred_check_branch
      %1157 = sbr.rel (0) target = $region61
    $region60: #{full_model_forward.13} parent=1 // pred_region
      %s1159 = ssub.s32 16, 16
      %1160 = vsyncadd [#allocation8], %s1159
      %s1162 = sshll.u32 [#allocation9], 4
      %s1163 = int_to_ptr.vmem [resolvable:$true] %s1162
      %1165 = dma.vmem_to_hbm [thread:$0]  %s1163, 16, %s14, [#allocation8]
    $region61: #{full_model_forward.13} parent=1 // pred_fallthru
      _
    // Predicated region
    $region62: #{full_model_forward.13} parent=1 // pred_check
      _
    $region63: #{full_model_forward.13} parent=1 // pred_check_branch
      %1167 = sbr.rel (0) target = $region65
    $region64: #{full_model_forward.13} parent=1 // pred_region
      %1168 = dma.done [#allocation3], 16
    $region65: #{full_model_forward.13} parent=1 // pred_fallthru
      _
    // Predicated region
    $region66: #{full_model_forward.13} parent=1 // pred_check
      _
    $region67: #{full_model_forward.13} parent=1 // pred_check_branch
      %1170 = sbr.rel (0) target = $region69
    $region68: #{full_model_forward.13} parent=1 // pred_region
      %1171 = dma.done [#allocation5], 16
    $region69: #{full_model_forward.13} parent=1 // pred_fallthru
      _
    // Predicated region
    $region70: #{full_model_forward.13} parent=1 // pred_check
      _
    $region71: #{full_model_forward.13} parent=1 // pred_check_branch
      %1173 = sbr.rel (0) target = $region73
    $region72: #{full_model_forward.13} parent=1 // pred_region
      %1174 = dma.done [#allocation5], 16
    $region73: #{full_model_forward.13} parent=1 // pred_fallthru
      _
    // Predicated region
    $region74: #{full_model_forward.13} parent=1 // pred_check
      _
    $region75: #{full_model_forward.13} parent=1 // pred_check_branch
      %1176 = sbr.rel (0) target = $region77
    $region76: #{full_model_forward.13} parent=1 // pred_region
      %1177 = dma.done [#allocation8], 16
    $region77: #{full_model_forward.13} parent=1 // pred_fallthru
      _
    // Predicated region
    $region78: #{full_model_forward.13} parent=1 // pred_check
      _
    $region79: #{full_model_forward.13} parent=1 // pred_check_branch
      %1179 = sbr.rel (0) target = $region81
    $region80: #{full_model_forward.13} parent=1 // pred_region
      %1180 = dma.done [#allocation8], 16
    $region81: #{full_model_forward.13} parent=1 // pred_fallthru
      _
    %1181 = vsyncpa [#allocation3], 1
    %1182 = vsyncpa [#allocation5], 1
    %1183 = vsyncpa [#allocation8], 1

</llo_original>
